<compile_context>
chip_gen: v6e
topology: v6e:2x2x1
jax: 0.10.0
libtpu: 0.0.40
codegen_flags: <defaults>
</compile_context>

<pallas_src>
import functools

import jax
import jax.numpy as jnp
import numpy as np
from jax.experimental import pallas as pl
from jax.experimental.pallas import tpu as pltpu


# ----------------------------------------------------------------------------
# Kernel A: UpSamplingIDWT  =  inverse Haar DWT  +  fused channel concat
# ----------------------------------------------------------------------------
def _idwt_concat_kernel(ll_ref, lh_ref, hl_ref, hh_ref, fm_ref, s0_ref, s1_ref,
                        o_ref, *, Hh, Wh):
    # ll/lh/hl/hh: [1, C, Hh*Wh]   fm: [1, Cf, (2Hh)*(2Wh)]
    # s0/s1:       [Wh, 2*Wh]      o : [1, C+Cf, (2Hh)*(2Wh)]
    C = ll_ref.shape[1]
    Cf = fm_ref.shape[1]
    W = 2 * Wh

    s0 = s0_ref[...]
    s1 = s1_ref[...]

    xll = ll_ref[0]
    xlh = lh_ref[0]
    xhl = hl_ref[0]
    xhh = hh_ref[0]

    # Inverse orthonormal Haar with partial-sum reuse (12 ops instead of 16).
    p = (xll - xlh) * 0.5
    q = (xll + xlh) * 0.5
    r = (xhh - xhl) * 0.5
    s = (xhh + xhl) * 0.5
    a = p + r            # x[2i,   2j]
    b = p - r            # x[2i,   2j+1]
    c = q - s            # x[2i+1, 2j]
    d = q + s            # x[2i+1, 2j+1]

    # Group row-pairs so each output store covers >=128 aligned lanes.
    ppg = 1
    if 2 * W < 128 and 128 % (2 * W) == 0 and Hh % (128 // (2 * W)) == 0:
        ppg = 128 // (2 * W)

    for g in range(Hh // ppg):
        pieces = []
        for t in range(ppg):
            i = g * ppg + t
            sl = slice(i * Wh, (i + 1) * Wh)
            # even/odd column interleave as 0/1 scatter matmuls (MXU)
            even = (jnp.dot(a[:, sl], s0, preferred_element_type=jnp.float32)
                    + jnp.dot(b[:, sl], s1, preferred_element_type=jnp.float32))
            odd = (jnp.dot(c[:, sl], s0, preferred_element_type=jnp.float32)
                   + jnp.dot(d[:, sl], s1, preferred_element_type=jnp.float32))
            pieces.append(even)   # image row 2*i
            pieces.append(odd)    # image row 2*i + 1
        lo = 2 * g * ppg * W
        o_ref[0, 0:C, lo:lo + 2 * ppg * W] = jnp.concatenate(pieces, axis=1)

    # Fused channel concat with the skip-connection feature map.
    o_ref[0, C:C + Cf, :] = fm_ref[0]


# ----------------------------------------------------------------------------
# Kernel B: 3x3 / stride-1 / pad-1 Conv2d + bias + ReLU (one image per step)
# ----------------------------------------------------------------------------
def _conv3x3_bias_relu_kernel(x_ref, w_ref, b_ref, o_ref, *, H, W):
    # x: [1, Cin, H*W]   w: [9, Cout, Cin] (tap index = 3*kh + kw)
    # b: [Cout, 1]       o: [1, Cout, H*W]
    cin = x_ref.shape[1]
    cout = o_ref.shape[1]

    w = w_ref[...]                                    # resident [9, Cout, Cin]
    bias = b_ref[...]                                 # [Cout, 1]
    zrow = jnp.zeros((cin, W + 2), jnp.float32)       # zero-padded boundary row
    zcol = jnp.zeros((cin, 1), jnp.float32)           # width padding column

    # Group output rows so each store is a full, 128-aligned lane store.
    grp = 1
    if W < 128 and 128 % W == 0 and H % (128 // W) == 0:
        grp = 128 // W

    for g in range(H // grp):
        h0 = g * grp
        # Width-padded input rows h0-1 .. h0+grp (in-kernel patch extraction).
        rows = []
        for y in range(h0 - 1, h0 + grp + 1):
            if y < 0 or y >= H:
                rows.append(zrow)
            else:
                r = x_ref[0, :, y * W:(y + 1) * W]                   # [Cin, W]
                rows.append(jnp.concatenate([zcol, r, zcol], axis=1))
        out_rows = []
        for dr in range(grp):
            acc = jnp.zeros((cout, W), jnp.float32)
            for kh in range(3):
                rowp = rows[dr + kh]                                 # [Cin, W+2]
                for kw in range(3):
                    acc = acc + jnp.dot(w[3 * kh + kw], rowp[:, kw:kw + W],
                                        preferred_element_type=jnp.float32)
            out_rows.append(jnp.maximum(acc + bias, 0.0))            # [Cout, W]
        o_ref[0, :, h0 * W:(h0 + grp) * W] = jnp.concatenate(out_rows, axis=1)


# ----------------------------------------------------------------------------
# Module wrappers
# ----------------------------------------------------------------------------
class UpSamplingIDWTPallas:
    """Pallas UpSamplingIDWT: cat(IDWT_2D(LL, LH, HL, HH), feature_map, dim=1)."""

    def __init__(self, in_channels, wavename="haar"):
        assert wavename == "haar"
        self.in_channels = in_channels

    def __call__(self, LL, LH, HL, HH, feature_map):
        N, C, Hh, Wh = LL.shape
        assert C == self.in_channels
        H, W = 2 * Hh, 2 * Wh
        Nf, Cf, Hf, Wf = feature_map.shape
        assert (Nf, Hf, Wf) == (N, H, W)

        # Free contiguous reshapes into the lane-dense flattened-spatial layout.
        ll2 = LL.reshape(N, C, Hh * Wh).astype(jnp.float32)
        lh2 = LH.reshape(N, C, Hh * Wh).astype(jnp.float32)
        hl2 = HL.reshape(N, C, Hh * Wh).astype(jnp.float32)
        hh2 = HH.reshape(N, C, Hh * Wh).astype(jnp.float32)
        fm2 = feature_map.reshape(N, Cf, H * W).astype(jnp.float32)

        # Constant 0/1 lane-scatter matrices (even / odd column placement).
        s0 = np.zeros((Wh, W), np.float32)
        s1 = np.zeros((Wh, W), np.float32)
        s0[np.arange(Wh), 2 * np.arange(Wh)] = 1.0
        s1[np.arange(Wh), 2 * np.arange(Wh) + 1] = 1.0
        s0 = jnp.asarray(s0)
        s1 = jnp.asarray(s1)

        kernel = functools.partial(_idwt_concat_kernel, Hh=Hh, Wh=Wh)
        sub_spec = pl.BlockSpec((1, C, Hh * Wh), lambda n: (n, 0, 0))
        out = pl.pallas_call(
            kernel,
            out_shape=jax.ShapeDtypeStruct((N, C + Cf, H * W), jnp.float32),
            grid=(N,),
            in_specs=[sub_spec, sub_spec, sub_spec, sub_spec,
                      pl.BlockSpec((1, Cf, H * W), lambda n: (n, 0, 0)),
                      pl.BlockSpec((Wh, W), lambda n: (0, 0)),
                      pl.BlockSpec((Wh, W), lambda n: (0, 0))],
            out_specs=pl.BlockSpec((1, C + Cf, H * W), lambda n: (n, 0, 0)),
            compiler_params=pltpu.CompilerParams(
                dimension_semantics=("parallel",)),
        )(ll2, lh2, hl2, hh2, fm2, s0, s1)
        return out.reshape(N, C + Cf, H, W)


class Conv3x3ReLUPallas:
    """Conv2d(k=3, s=1, p=1) + bias + ReLU as a single Pallas kernel."""

    def __init__(self, weight, bias):
        cout, cin, kh, kw = weight.shape
        assert (kh, kw) == (3, 3)
        self.cin, self.cout = cin, cout
        # Tap-major weights [9, Cout, Cin]: Cout rows (sublanes), Cin lanes.
        self.w_taps = (jnp.asarray(weight, jnp.float32)
                       .transpose(2, 3, 0, 1).reshape(9, cout, cin))
        self.b = jnp.asarray(bias, jnp.float32).reshape(cout, 1)

    def __call__(self, x):
        N, cin, H, W = x.shape
        assert cin == self.cin
        x2 = x.reshape(N, cin, H * W).astype(jnp.float32)
        kernel = functools.partial(_conv3x3_bias_relu_kernel, H=H, W=W)
        out = pl.pallas_call(
            kernel,
            out_shape=jax.ShapeDtypeStruct((N, self.cout, H * W), jnp.float32),
            grid=(N,),
            in_specs=[pl.BlockSpec((1, cin, H * W), lambda n: (n, 0, 0)),
                      pl.BlockSpec((9, self.cout, cin), lambda n: (0, 0, 0)),
                      pl.BlockSpec((self.cout, 1), lambda n: (0, 0))],
            out_specs=pl.BlockSpec((1, self.cout, H * W), lambda n: (n, 0, 0)),
            compiler_params=pltpu.CompilerParams(
                dimension_semantics=("parallel",)),
        )(x2, self.w_taps, self.b)
        return out.reshape(N, self.cout, H, W)


class MySequentialRePallas:
    """JAX/Pallas mirror of My_Sequential_re.forward."""

    def __init__(self, *modules):
        self._modules = list(modules)

    def __call__(self, inputs):
        LL = inputs[0]
        index = 1
        for module in self._modules:
            if isinstance(module, UpSamplingIDWTPallas):
                LH = inputs[index]
                HL = inputs[index + 1]
                HH = inputs[index + 2]
                feature_map = inputs[index + 3]
                LL = module(LL, LH, HL, HH, feature_map)
                index += 4
            else:
                LL = module(LL)
        return LL


# ----------------------------------------------------------------------------
# Main
# ----------------------------------------------------------------------------
if __name__ == "__main__":
    key = jax.random.PRNGKey(0)
    k_ll, k_lh, k_hl, k_hh, k_fm, k_w, k_b = jax.random.split(key, 7)

    N, C, Hh, Wh = 2, 4, 8, 8          # subbands 8x8 -> reconstructed 16x16
    H, W = 2 * Hh, 2 * Wh
    Cout = 16

    LL = jax.random.normal(k_ll, (N, C, Hh, Wh), jnp.float32)
    LH = jax.random.normal(k_lh, (N, C, Hh, Wh), jnp.float32)
    HL = jax.random.normal(k_hl, (N, C, Hh, Wh), jnp.float32)
    HH = jax.random.normal(k_hh, (N, C, Hh, Wh), jnp.float32)
    fm = jax.random.normal(k_fm, (N, C, H, W), jnp.float32)
    conv_w = jax.random.normal(k_w, (Cout, 2 * C, 3, 3), jnp.float32) * 0.1
    conv_b = jax.random.normal(k_b, (Cout,), jnp.float32) * 0.1

    model = MySequentialRePallas(
        UpSamplingIDWTPallas(in_channels=C),   # consumes LH, HL, HH, feature_map
        Conv3x3ReLUPallas(conv_w, conv_b),     # ordinary module: applied to LL
    )

    out = model((LL, LH, HL, HH, fm))
    out = jax.block_until_ready(out)

    # ---- pure-JAX reference (same math) ----
    rec = jnp.zeros((N, C, H, W), jnp.float32)
    rec = rec.at[:, :, 0::2, 0::2].set((LL - LH - HL + HH) * 0.5)
    rec = rec.at[:, :, 0::2, 1::2].set((LL - LH + HL - HH) * 0.5)
    rec = rec.at[:, :, 1::2, 0::2].set((LL + LH - HL - HH) * 0.5)
    rec = rec.at[:, :, 1::2, 1::2].set((LL + LH + HL + HH) * 0.5)
    xcat = jnp.concatenate([rec, fm], axis=1)
    ref = jax.lax.conv_general_dilated(
        xcat, conv_w, window_strides=(1, 1), padding=((1, 1), (1, 1)),
        dimension_numbers=("NCHW", "OIHW", "NCHW"))
    ref = jnp.maximum(ref + conv_b[None, :, None, None], 0.0)

    np.testing.assert_allclose(np.asarray(out), np.asarray(ref),
                               rtol=1e-4, atol=1e-4)
    assert out.shape == (N, Cout, H, W)
    print("KERNEL_OK")
</pallas_src>

<mosaic_0001>
module attributes {stable_mosaic.version = 11 : i64} {
  func.func @_idwt_concat_kernel(%arg0: i32, %arg1: memref<1x4x64xf32, #tpu.memory_space<vmem>>, %arg2: memref<1x4x64xf32, #tpu.memory_space<vmem>>, %arg3: memref<1x4x64xf32, #tpu.memory_space<vmem>>, %arg4: memref<1x4x64xf32, #tpu.memory_space<vmem>>, %arg5: memref<1x4x256xf32, #tpu.memory_space<vmem>>, %arg6: memref<8x16xf32, #tpu.memory_space<vmem>>, %arg7: memref<8x16xf32, #tpu.memory_space<vmem>>, %arg8: memref<1x8x256xf32, #tpu.memory_space<vmem>>) attributes {dimension_semantics = [#tpu.dimension_semantics<parallel>], iteration_bounds = array<i64: 2>, scalar_prefetch = 0 : i64, scratch_operands = 0 : i64, tpu.core_type = #tpu.core_type<tc>, window_params = [{transform_indices = @transform_0, window_bounds = array<i64: 1, 4, 64>}, {transform_indices = @transform_1, window_bounds = array<i64: 1, 4, 64>}, {transform_indices = @transform_2, window_bounds = array<i64: 1, 4, 64>}, {transform_indices = @transform_3, window_bounds = array<i64: 1, 4, 64>}, {transform_indices = @transform_4, window_bounds = array<i64: 1, 4, 256>}, {pipeline_mode = #tpu.pipeline_mode<synchronous>, transform_indices = @transform_5, window_bounds = array<i64: 8, 16>}, {pipeline_mode = #tpu.pipeline_mode<synchronous>, transform_indices = @transform_6, window_bounds = array<i64: 8, 16>}, {transform_indices = @transform_7, window_bounds = array<i64: 1, 8, 256>}]} {
    %c0 = arith.constant 0 : index
    %c0_0 = arith.constant 0 : index
    %0 = vector.load %arg6[%c0, %c0_0] : memref<8x16xf32, #tpu.memory_space<vmem>>, vector<8x16xf32>
    %c0_1 = arith.constant 0 : index
    %c0_2 = arith.constant 0 : index
    %1 = vector.load %arg7[%c0_1, %c0_2] : memref<8x16xf32, #tpu.memory_space<vmem>>, vector<8x16xf32>
    %c0_3 = arith.constant 0 : index
    %c0_4 = arith.constant 0 : index
    %c0_5 = arith.constant 0 : index
    %2 = vector.load %arg1[%c0_3, %c0_4, %c0_5] : memref<1x4x64xf32, #tpu.memory_space<vmem>>, vector<1x4x64xf32>
    %3 = vector.shape_cast %2 : vector<1x4x64xf32> to vector<4x64xf32>
    %c0_6 = arith.constant 0 : index
    %c0_7 = arith.constant 0 : index
    %c0_8 = arith.constant 0 : index
    %4 = vector.load %arg2[%c0_6, %c0_7, %c0_8] : memref<1x4x64xf32, #tpu.memory_space<vmem>>, vector<1x4x64xf32>
    %5 = vector.shape_cast %4 : vector<1x4x64xf32> to vector<4x64xf32>
    %c0_9 = arith.constant 0 : index
    %c0_10 = arith.constant 0 : index
    %c0_11 = arith.constant 0 : index
    %6 = vector.load %arg3[%c0_9, %c0_10, %c0_11] : memref<1x4x64xf32, #tpu.memory_space<vmem>>, vector<1x4x64xf32>
    %7 = vector.shape_cast %6 : vector<1x4x64xf32> to vector<4x64xf32>
    %c0_12 = arith.constant 0 : index
    %c0_13 = arith.constant 0 : index
    %c0_14 = arith.constant 0 : index
    %8 = vector.load %arg4[%c0_12, %c0_13, %c0_14] : memref<1x4x64xf32, #tpu.memory_space<vmem>>, vector<1x4x64xf32>
    %9 = vector.shape_cast %8 : vector<1x4x64xf32> to vector<4x64xf32>
    %10 = arith.subf %3, %5 : vector<4x64xf32>
    %cst = arith.constant 5.000000e-01 : f32
    %11 = vector.broadcast %cst : f32 to vector<4x64xf32>
    %12 = arith.mulf %10, %11 : vector<4x64xf32>
    %13 = arith.addf %3, %5 : vector<4x64xf32>
    %cst_15 = arith.constant 5.000000e-01 : f32
    %14 = vector.broadcast %cst_15 : f32 to vector<4x64xf32>
    %15 = arith.mulf %13, %14 : vector<4x64xf32>
    %16 = arith.subf %9, %7 : vector<4x64xf32>
    %cst_16 = arith.constant 5.000000e-01 : f32
    %17 = vector.broadcast %cst_16 : f32 to vector<4x64xf32>
    %18 = arith.mulf %16, %17 : vector<4x64xf32>
    %19 = arith.addf %9, %7 : vector<4x64xf32>
    %cst_17 = arith.constant 5.000000e-01 : f32
    %20 = vector.broadcast %cst_17 : f32 to vector<4x64xf32>
    %21 = arith.mulf %19, %20 : vector<4x64xf32>
    %22 = arith.addf %12, %18 : vector<4x64xf32>
    %23 = arith.subf %12, %18 : vector<4x64xf32>
    %24 = arith.subf %15, %21 : vector<4x64xf32>
    %25 = arith.addf %15, %21 : vector<4x64xf32>
    %26 = vector.extract_strided_slice %22 {offsets = [0, 0], sizes = [4, 8], strides = [1, 1]} : vector<4x64xf32> to vector<4x8xf32>
    %cst_18 = arith.constant dense<0.000000e+00> : vector<4x16xf32>
    %27 = tpu.matmul %26, %0, %cst_18 {dimension_numbers = #tpu.dot_dimension_numbers<[1], [0], [0], [1], [0, 0, 1, 1], [], []>} : vector<4x8xf32>, vector<8x16xf32>, vector<4x16xf32> -> vector<4x16xf32>
    %28 = vector.extract_strided_slice %23 {offsets = [0, 0], sizes = [4, 8], strides = [1, 1]} : vector<4x64xf32> to vector<4x8xf32>
    %cst_19 = arith.constant dense<0.000000e+00> : vector<4x16xf32>
    %29 = tpu.matmul %28, %1, %cst_19 {dimension_numbers = #tpu.dot_dimension_numbers<[1], [0], [0], [1], [0, 0, 1, 1], [], []>} : vector<4x8xf32>, vector<8x16xf32>, vector<4x16xf32> -> vector<4x16xf32>
    %30 = arith.addf %27, %29 : vector<4x16xf32>
    %31 = vector.extract_strided_slice %24 {offsets = [0, 0], sizes = [4, 8], strides = [1, 1]} : vector<4x64xf32> to vector<4x8xf32>
    %cst_20 = arith.constant dense<0.000000e+00> : vector<4x16xf32>
    %32 = tpu.matmul %31, %0, %cst_20 {dimension_numbers = #tpu.dot_dimension_numbers<[1], [0], [0], [1], [0, 0, 1, 1], [], []>} : vector<4x8xf32>, vector<8x16xf32>, vector<4x16xf32> -> vector<4x16xf32>
    %33 = vector.extract_strided_slice %25 {offsets = [0, 0], sizes = [4, 8], strides = [1, 1]} : vector<4x64xf32> to vector<4x8xf32>
    %cst_21 = arith.constant dense<0.000000e+00> : vector<4x16xf32>
    %34 = tpu.matmul %33, %1, %cst_21 {dimension_numbers = #tpu.dot_dimension_numbers<[1], [0], [0], [1], [0, 0, 1, 1], [], []>} : vector<4x8xf32>, vector<8x16xf32>, vector<4x16xf32> -> vector<4x16xf32>
    %35 = arith.addf %32, %34 : vector<4x16xf32>
    %36 = vector.extract_strided_slice %22 {offsets = [0, 8], sizes = [4, 8], strides = [1, 1]} : vector<4x64xf32> to vector<4x8xf32>
    %cst_22 = arith.constant dense<0.000000e+00> : vector<4x16xf32>
    %37 = tpu.matmul %36, %0, %cst_22 {dimension_numbers = #tpu.dot_dimension_numbers<[1], [0], [0], [1], [0, 0, 1, 1], [], []>} : vector<4x8xf32>, vector<8x16xf32>, vector<4x16xf32> -> vector<4x16xf32>
    %38 = vector.extract_strided_slice %23 {offsets = [0, 8], sizes = [4, 8], strides = [1, 1]} : vector<4x64xf32> to vector<4x8xf32>
    %cst_23 = arith.constant dense<0.000000e+00> : vector<4x16xf32>
    %39 = tpu.matmul %38, %1, %cst_23 {dimension_numbers = #tpu.dot_dimension_numbers<[1], [0], [0], [1], [0, 0, 1, 1], [], []>} : vector<4x8xf32>, vector<8x16xf32>, vector<4x16xf32> -> vector<4x16xf32>
    %40 = arith.addf %37, %39 : vector<4x16xf32>
    %41 = vector.extract_strided_slice %24 {offsets = [0, 8], sizes = [4, 8], strides = [1, 1]} : vector<4x64xf32> to vector<4x8xf32>
    %cst_24 = arith.constant dense<0.000000e+00> : vector<4x16xf32>
    %42 = tpu.matmul %41, %0, %cst_24 {dimension_numbers = #tpu.dot_dimension_numbers<[1], [0], [0], [1], [0, 0, 1, 1], [], []>} : vector<4x8xf32>, vector<8x16xf32>, vector<4x16xf32> -> vector<4x16xf32>
    %43 = vector.extract_strided_slice %25 {offsets = [0, 8], sizes = [4, 8], strides = [1, 1]} : vector<4x64xf32> to vector<4x8xf32>
    %cst_25 = arith.constant dense<0.000000e+00> : vector<4x16xf32>
    %44 = tpu.matmul %43, %1, %cst_25 {dimension_numbers = #tpu.dot_dimension_numbers<[1], [0], [0], [1], [0, 0, 1, 1], [], []>} : vector<4x8xf32>, vector<8x16xf32>, vector<4x16xf32> -> vector<4x16xf32>
    %45 = arith.addf %42, %44 : vector<4x16xf32>
    %46 = vector.extract_strided_slice %22 {offsets = [0, 16], sizes = [4, 8], strides = [1, 1]} : vector<4x64xf32> to vector<4x8xf32>
    %cst_26 = arith.constant dense<0.000000e+00> : vector<4x16xf32>
    %47 = tpu.matmul %46, %0, %cst_26 {dimension_numbers = #tpu.dot_dimension_numbers<[1], [0], [0], [1], [0, 0, 1, 1], [], []>} : vector<4x8xf32>, vector<8x16xf32>, vector<4x16xf32> -> vector<4x16xf32>
    %48 = vector.extract_strided_slice %23 {offsets = [0, 16], sizes = [4, 8], strides = [1, 1]} : vector<4x64xf32> to vector<4x8xf32>
    %cst_27 = arith.constant dense<0.000000e+00> : vector<4x16xf32>
    %49 = tpu.matmul %48, %1, %cst_27 {dimension_numbers = #tpu.dot_dimension_numbers<[1], [0], [0], [1], [0, 0, 1, 1], [], []>} : vector<4x8xf32>, vector<8x16xf32>, vector<4x16xf32> -> vector<4x16xf32>
    %50 = arith.addf %47, %49 : vector<4x16xf32>
    %51 = vector.extract_strided_slice %24 {offsets = [0, 16], sizes = [4, 8], strides = [1, 1]} : vector<4x64xf32> to vector<4x8xf32>
    %cst_28 = arith.constant dense<0.000000e+00> : vector<4x16xf32>
    %52 = tpu.matmul %51, %0, %cst_28 {dimension_numbers = #tpu.dot_dimension_numbers<[1], [0], [0], [1], [0, 0, 1, 1], [], []>} : vector<4x8xf32>, vector<8x16xf32>, vector<4x16xf32> -> vector<4x16xf32>
    %53 = vector.extract_strided_slice %25 {offsets = [0, 16], sizes = [4, 8], strides = [1, 1]} : vector<4x64xf32> to vector<4x8xf32>
    %cst_29 = arith.constant dense<0.000000e+00> : vector<4x16xf32>
    %54 = tpu.matmul %53, %1, %cst_29 {dimension_numbers = #tpu.dot_dimension_numbers<[1], [0], [0], [1], [0, 0, 1, 1], [], []>} : vector<4x8xf32>, vector<8x16xf32>, vector<4x16xf32> -> vector<4x16xf32>
    %55 = arith.addf %52, %54 : vector<4x16xf32>
    %56 = vector.extract_strided_slice %22 {offsets = [0, 24], sizes = [4, 8], strides = [1, 1]} : vector<4x64xf32> to vector<4x8xf32>
    %cst_30 = arith.constant dense<0.000000e+00> : vector<4x16xf32>
    %57 = tpu.matmul %56, %0, %cst_30 {dimension_numbers = #tpu.dot_dimension_numbers<[1], [0], [0], [1], [0, 0, 1, 1], [], []>} : vector<4x8xf32>, vector<8x16xf32>, vector<4x16xf32> -> vector<4x16xf32>
    %58 = vector.extract_strided_slice %23 {offsets = [0, 24], sizes = [4, 8], strides = [1, 1]} : vector<4x64xf32> to vector<4x8xf32>
    %cst_31 = arith.constant dense<0.000000e+00> : vector<4x16xf32>
    %59 = tpu.matmul %58, %1, %cst_31 {dimension_numbers = #tpu.dot_dimension_numbers<[1], [0], [0], [1], [0, 0, 1, 1], [], []>} : vector<4x8xf32>, vector<8x16xf32>, vector<4x16xf32> -> vector<4x16xf32>
    %60 = arith.addf %57, %59 : vector<4x16xf32>
    %61 = vector.extract_strided_slice %24 {offsets = [0, 24], sizes = [4, 8], strides = [1, 1]} : vector<4x64xf32> to vector<4x8xf32>
    %cst_32 = arith.constant dense<0.000000e+00> : vector<4x16xf32>
    %62 = tpu.matmul %61, %0, %cst_32 {dimension_numbers = #tpu.dot_dimension_numbers<[1], [0], [0], [1], [0, 0, 1, 1], [], []>} : vector<4x8xf32>, vector<8x16xf32>, vector<4x16xf32> -> vector<4x16xf32>
    %63 = vector.extract_strided_slice %25 {offsets = [0, 24], sizes = [4, 8], strides = [1, 1]} : vector<4x64xf32> to vector<4x8xf32>
    %cst_33 = arith.constant dense<0.000000e+00> : vector<4x16xf32>
    %64 = tpu.matmul %63, %1, %cst_33 {dimension_numbers = #tpu.dot_dimension_numbers<[1], [0], [0], [1], [0, 0, 1, 1], [], []>} : vector<4x8xf32>, vector<8x16xf32>, vector<4x16xf32> -> vector<4x16xf32>
    %65 = arith.addf %62, %64 : vector<4x16xf32>
    %66 = tpu.concatenate %30, %35, %40, %45, %50, %55, %60, %65 in 1 : vector<4x16xf32>, vector<4x16xf32>, vector<4x16xf32>, vector<4x16xf32>, vector<4x16xf32>, vector<4x16xf32>, vector<4x16xf32>, vector<4x16xf32> -> vector<4x128xf32>
    %c0_34 = arith.constant 0 : index
    %c0_35 = arith.constant 0 : index
    %c0_36 = arith.constant 0 : index
    %67 = vector.load %arg8[%c0_34, %c0_35, %c0_36] : memref<1x8x256xf32, #tpu.memory_space<vmem>>, vector<1x4x128xf32>
    %68 = vector.shape_cast %67 : vector<1x4x128xf32> to vector<4x128xf32>
    %69 = vector.shape_cast %66 : vector<4x128xf32> to vector<1x4x128xf32>
    tpu.vector_store %arg8[%c0_34, %c0_35, %c0_36], %69 {strides = array<i32>} : memref<1x8x256xf32, #tpu.memory_space<vmem>>, vector<1x4x128xf32>,
    %70 = vector.extract_strided_slice %22 {offsets = [0, 32], sizes = [4, 8], strides = [1, 1]} : vector<4x64xf32> to vector<4x8xf32>
    %cst_37 = arith.constant dense<0.000000e+00> : vector<4x16xf32>
    %71 = tpu.matmul %70, %0, %cst_37 {dimension_numbers = #tpu.dot_dimension_numbers<[1], [0], [0], [1], [0, 0, 1, 1], [], []>} : vector<4x8xf32>, vector<8x16xf32>, vector<4x16xf32> -> vector<4x16xf32>
    %72 = vector.extract_strided_slice %23 {offsets = [0, 32], sizes = [4, 8], strides = [1, 1]} : vector<4x64xf32> to vector<4x8xf32>
    %cst_38 = arith.constant dense<0.000000e+00> : vector<4x16xf32>
    %73 = tpu.matmul %72, %1, %cst_38 {dimension_numbers = #tpu.dot_dimension_numbers<[1], [0], [0], [1], [0, 0, 1, 1], [], []>} : vector<4x8xf32>, vector<8x16xf32>, vector<4x16xf32> -> vector<4x16xf32>
    %74 = arith.addf %71, %73 : vector<4x16xf32>
    %75 = vector.extract_strided_slice %24 {offsets = [0, 32], sizes = [4, 8], strides = [1, 1]} : vector<4x64xf32> to vector<4x8xf32>
    %cst_39 = arith.constant dense<0.000000e+00> : vector<4x16xf32>
    %76 = tpu.matmul %75, %0, %cst_39 {dimension_numbers = #tpu.dot_dimension_numbers<[1], [0], [0], [1], [0, 0, 1, 1], [], []>} : vector<4x8xf32>, vector<8x16xf32>, vector<4x16xf32> -> vector<4x16xf32>
    %77 = vector.extract_strided_slice %25 {offsets = [0, 32], sizes = [4, 8], strides = [1, 1]} : vector<4x64xf32> to vector<4x8xf32>
    %cst_40 = arith.constant dense<0.000000e+00> : vector<4x16xf32>
    %78 = tpu.matmul %77, %1, %cst_40 {dimension_numbers = #tpu.dot_dimension_numbers<[1], [0], [0], [1], [0, 0, 1, 1], [], []>} : vector<4x8xf32>, vector<8x16xf32>, vector<4x16xf32> -> vector<4x16xf32>
    %79 = arith.addf %76, %78 : vector<4x16xf32>
    %80 = vector.extract_strided_slice %22 {offsets = [0, 40], sizes = [4, 8], strides = [1, 1]} : vector<4x64xf32> to vector<4x8xf32>
    %cst_41 = arith.constant dense<0.000000e+00> : vector<4x16xf32>
    %81 = tpu.matmul %80, %0, %cst_41 {dimension_numbers = #tpu.dot_dimension_numbers<[1], [0], [0], [1], [0, 0, 1, 1], [], []>} : vector<4x8xf32>, vector<8x16xf32>, vector<4x16xf32> -> vector<4x16xf32>
    %82 = vector.extract_strided_slice %23 {offsets = [0, 40], sizes = [4, 8], strides = [1, 1]} : vector<4x64xf32> to vector<4x8xf32>
    %cst_42 = arith.constant dense<0.000000e+00> : vector<4x16xf32>
    %83 = tpu.matmul %82, %1, %cst_42 {dimension_numbers = #tpu.dot_dimension_numbers<[1], [0], [0], [1], [0, 0, 1, 1], [], []>} : vector<4x8xf32>, vector<8x16xf32>, vector<4x16xf32> -> vector<4x16xf32>
    %84 = arith.addf %81, %83 : vector<4x16xf32>
    %85 = vector.extract_strided_slice %24 {offsets = [0, 40], sizes = [4, 8], strides = [1, 1]} : vector<4x64xf32> to vector<4x8xf32>
    %cst_43 = arith.constant dense<0.000000e+00> : vector<4x16xf32>
    %86 = tpu.matmul %85, %0, %cst_43 {dimension_numbers = #tpu.dot_dimension_numbers<[1], [0], [0], [1], [0, 0, 1, 1], [], []>} : vector<4x8xf32>, vector<8x16xf32>, vector<4x16xf32> -> vector<4x16xf32>
    %87 = vector.extract_strided_slice %25 {offsets = [0, 40], sizes = [4, 8], strides = [1, 1]} : vector<4x64xf32> to vector<4x8xf32>
    %cst_44 = arith.constant dense<0.000000e+00> : vector<4x16xf32>
    %88 = tpu.matmul %87, %1, %cst_44 {dimension_numbers = #tpu.dot_dimension_numbers<[1], [0], [0], [1], [0, 0, 1, 1], [], []>} : vector<4x8xf32>, vector<8x16xf32>, vector<4x16xf32> -> vector<4x16xf32>
    %89 = arith.addf %86, %88 : vector<4x16xf32>
    %90 = vector.extract_strided_slice %22 {offsets = [0, 48], sizes = [4, 8], strides = [1, 1]} : vector<4x64xf32> to vector<4x8xf32>
    %cst_45 = arith.constant dense<0.000000e+00> : vector<4x16xf32>
    %91 = tpu.matmul %90, %0, %cst_45 {dimension_numbers = #tpu.dot_dimension_numbers<[1], [0], [0], [1], [0, 0, 1, 1], [], []>} : vector<4x8xf32>, vector<8x16xf32>, vector<4x16xf32> -> vector<4x16xf32>
    %92 = vector.extract_strided_slice %23 {offsets = [0, 48], sizes = [4, 8], strides = [1, 1]} : vector<4x64xf32> to vector<4x8xf32>
    %cst_46 = arith.constant dense<0.000000e+00> : vector<4x16xf32>
    %93 = tpu.matmul %92, %1, %cst_46 {dimension_numbers = #tpu.dot_dimension_numbers<[1], [0], [0], [1], [0, 0, 1, 1], [], []>} : vector<4x8xf32>, vector<8x16xf32>, vector<4x16xf32> -> vector<4x16xf32>
    %94 = arith.addf %91, %93 : vector<4x16xf32>
    %95 = vector.extract_strided_slice %24 {offsets = [0, 48], sizes = [4, 8], strides = [1, 1]} : vector<4x64xf32> to vector<4x8xf32>
    %cst_47 = arith.constant dense<0.000000e+00> : vector<4x16xf32>
    %96 = tpu.matmul %95, %0, %cst_47 {dimension_numbers = #tpu.dot_dimension_numbers<[1], [0], [0], [1], [0, 0, 1, 1], [], []>} : vector<4x8xf32>, vector<8x16xf32>, vector<4x16xf32> -> vector<4x16xf32>
    %97 = vector.extract_strided_slice %25 {offsets = [0, 48], sizes = [4, 8], strides = [1, 1]} : vector<4x64xf32> to vector<4x8xf32>
    %cst_48 = arith.constant dense<0.000000e+00> : vector<4x16xf32>
    %98 = tpu.matmul %97, %1, %cst_48 {dimension_numbers = #tpu.dot_dimension_numbers<[1], [0], [0], [1], [0, 0, 1, 1], [], []>} : vector<4x8xf32>, vector<8x16xf32>, vector<4x16xf32> -> vector<4x16xf32>
    %99 = arith.addf %96, %98 : vector<4x16xf32>
    %100 = vector.extract_strided_slice %22 {offsets = [0, 56], sizes = [4, 8], strides = [1, 1]} : vector<4x64xf32> to vector<4x8xf32>
    %cst_49 = arith.constant dense<0.000000e+00> : vector<4x16xf32>
    %101 = tpu.matmul %100, %0, %cst_49 {dimension_numbers = #tpu.dot_dimension_numbers<[1], [0], [0], [1], [0, 0, 1, 1], [], []>} : vector<4x8xf32>, vector<8x16xf32>, vector<4x16xf32> -> vector<4x16xf32>
    %102 = vector.extract_strided_slice %23 {offsets = [0, 56], sizes = [4, 8], strides = [1, 1]} : vector<4x64xf32> to vector<4x8xf32>
    %cst_50 = arith.constant dense<0.000000e+00> : vector<4x16xf32>
    %103 = tpu.matmul %102, %1, %cst_50 {dimension_numbers = #tpu.dot_dimension_numbers<[1], [0], [0], [1], [0, 0, 1, 1], [], []>} : vector<4x8xf32>, vector<8x16xf32>, vector<4x16xf32> -> vector<4x16xf32>
    %104 = arith.addf %101, %103 : vector<4x16xf32>
    %105 = vector.extract_strided_slice %24 {offsets = [0, 56], sizes = [4, 8], strides = [1, 1]} : vector<4x64xf32> to vector<4x8xf32>
    %cst_51 = arith.constant dense<0.000000e+00> : vector<4x16xf32>
    %106 = tpu.matmul %105, %0, %cst_51 {dimension_numbers = #tpu.dot_dimension_numbers<[1], [0], [0], [1], [0, 0, 1, 1], [], []>} : vector<4x8xf32>, vector<8x16xf32>, vector<4x16xf32> -> vector<4x16xf32>
    %107 = vector.extract_strided_slice %25 {offsets = [0, 56], sizes = [4, 8], strides = [1, 1]} : vector<4x64xf32> to vector<4x8xf32>
    %cst_52 = arith.constant dense<0.000000e+00> : vector<4x16xf32>
    %108 = tpu.matmul %107, %1, %cst_52 {dimension_numbers = #tpu.dot_dimension_numbers<[1], [0], [0], [1], [0, 0, 1, 1], [], []>} : vector<4x8xf32>, vector<8x16xf32>, vector<4x16xf32> -> vector<4x16xf32>
    %109 = arith.addf %106, %108 : vector<4x16xf32>
    %110 = tpu.concatenate %74, %79, %84, %89, %94, %99, %104, %109 in 1 : vector<4x16xf32>, vector<4x16xf32>, vector<4x16xf32>, vector<4x16xf32>, vector<4x16xf32>, vector<4x16xf32>, vector<4x16xf32>, vector<4x16xf32> -> vector<4x128xf32>
    %c0_53 = arith.constant 0 : index
    %c0_54 = arith.constant 0 : index
    %c128 = arith.constant 128 : index
    %111 = vector.load %arg8[%c0_53, %c0_54, %c128] : memref<1x8x256xf32, #tpu.memory_space<vmem>>, vector<1x4x128xf32>
    %112 = vector.shape_cast %111 : vector<1x4x128xf32> to vector<4x128xf32>
    %113 = vector.shape_cast %110 : vector<4x128xf32> to vector<1x4x128xf32>
    tpu.vector_store %arg8[%c0_53, %c0_54, %c128], %113 {strides = array<i32>} : memref<1x8x256xf32, #tpu.memory_space<vmem>>, vector<1x4x128xf32>,
    %c0_55 = arith.constant 0 : index
    %c0_56 = arith.constant 0 : index
    %c0_57 = arith.constant 0 : index
    %114 = vector.load %arg5[%c0_55, %c0_56, %c0_57] : memref<1x4x256xf32, #tpu.memory_space<vmem>>, vector<1x4x256xf32>
    %115 = vector.shape_cast %114 : vector<1x4x256xf32> to vector<4x256xf32>
    %c0_58 = arith.constant 0 : index
    %c4 = arith.constant 4 : index
    %c0_59 = arith.constant 0 : index
    %116 = vector.load %arg8[%c0_58, %c4, %c0_59] : memref<1x8x256xf32, #tpu.memory_space<vmem>>, vector<1x4x256xf32>
    %117 = vector.shape_cast %116 : vector<1x4x256xf32> to vector<4x256xf32>
    %118 = vector.shape_cast %115 : vector<4x256xf32> to vector<1x4x256xf32>
    tpu.vector_store %arg8[%c0_58, %c4, %c0_59], %118 {strides = array<i32>} : memref<1x8x256xf32, #tpu.memory_space<vmem>>, vector<1x4x256xf32>,
    return
  }
  func.func @transform_0(%arg0: i32) -> (i32, i32, i32) {
    %c0_i32 = arith.constant 0 : i32
    %c0_i32_0 = arith.constant 0 : i32
    %c0_i32_1 = arith.constant 0 : i32
    return %arg0, %c0_i32, %c0_i32_0 : i32, i32, i32
  }
  func.func @transform_1(%arg0: i32) -> (i32, i32, i32) {
    %c0_i32 = arith.constant 0 : i32
    %c0_i32_0 = arith.constant 0 : i32
    %c0_i32_1 = arith.constant 0 : i32
    return %arg0, %c0_i32, %c0_i32_0 : i32, i32, i32
  }
  func.func @transform_2(%arg0: i32) -> (i32, i32, i32) {
    %c0_i32 = arith.constant 0 : i32
    %c0_i32_0 = arith.constant 0 : i32
    %c0_i32_1 = arith.constant 0 : i32
    return %arg0, %c0_i32, %c0_i32_0 : i32, i32, i32
  }
  func.func @transform_3(%arg0: i32) -> (i32, i32, i32) {
    %c0_i32 = arith.constant 0 : i32
    %c0_i32_0 = arith.constant 0 : i32
    %c0_i32_1 = arith.constant 0 : i32
    return %arg0, %c0_i32, %c0_i32_0 : i32, i32, i32
  }
  func.func @transform_4(%arg0: i32) -> (i32, i32, i32) {
    %c0_i32 = arith.constant 0 : i32
    %c0_i32_0 = arith.constant 0 : i32
    %c0_i32_1 = arith.constant 0 : i32
    return %arg0, %c0_i32, %c0_i32_0 : i32, i32, i32
  }
  func.func @transform_5(%arg0: i32) -> (i32, i32) {
    %c0_i32 = arith.constant 0 : i32
    %c0_i32_0 = arith.constant 0 : i32
    %c0_i32_1 = arith.constant 0 : i32
    return %c0_i32, %c0_i32_0 : i32, i32
  }
  func.func @transform_6(%arg0: i32) -> (i32, i32) {
    %c0_i32 = arith.constant 0 : i32
    %c0_i32_0 = arith.constant 0 : i32
    %c0_i32_1 = arith.constant 0 : i32
    return %c0_i32, %c0_i32_0 : i32, i32
  }
  func.func @transform_7(%arg0: i32) -> (i32, i32, i32) {
    %c0_i32 = arith.constant 0 : i32
    %c0_i32_0 = arith.constant 0 : i32
    %c0_i32_1 = arith.constant 0 : i32
    return %arg0, %c0_i32, %c0_i32_0 : i32, i32, i32
  }
}

</mosaic_0001>

<llo_original>
// kernel: tpu_custom_call.1
$region0: #{tpu_custom_call.1}
  #allocation0 [shape = 'u32[]', space=smem, size = 0x4, offset = 0x4, fixed_abs, tag = 'smem constant byte address 0x4 - core index']
  #allocation1 [shape = 'u32[144,128]{1,0:T(1,128)}', space=vmem, size = 0x12000, scoped, tag = 'internal scratch']
  %s0 = inlined_call_operand.hbm [shape: f32[2,4,64], index: 0, kind: input, shape index: {}]
  %s1 = inlined_call_operand.hbm [shape: f32[2,4,64], index: 1, kind: input, shape index: {}]
  %s2 = inlined_call_operand.hbm [shape: f32[2,4,64], index: 2, kind: input, shape index: {}]
  %s3 = inlined_call_operand.hbm [shape: f32[2,4,64], index: 3, kind: input, shape index: {}]
  %s4 = inlined_call_operand.hbm [shape: f32[2,4,256], index: 4, kind: input, shape index: {}]
  %s5 = inlined_call_operand.vmem [shape: f32[8,16], index: 5, kind: input, shape index: {}]
  %s6 = inlined_call_operand.hbm [shape: f32[8,16], index: 6, kind: input, shape index: {}]
  %s7 = inlined_call_operand.hbm [shape: f32[2,8,256], index: 7, kind: output, shape index: {}]
  %s8 = sld [smem:[#allocation0]]
  $region85: #{tpu_custom_call.1} parent=0
    _
  %s10 = ssub.s32 1, %s8
  %s11 = scalar_select 0, %s10, %s8
  $region1: #{tpu_custom_call.1} parent=0
    #allocation2 [shape = 'u8[4096]{0}', space=vmem, size = 0x1000, scoped, tag = 'input window, operand 0']
    #allocation3 [shape = 's32[2]{0}', space=sflag, size = 0x8, scoped, tag = 'scoped memory for tpu_custom_call.1']
    #allocation4 [shape = 's32[2]{0}', space=sflag, size = 0x8, scoped, tag = 'scoped memory for tpu_custom_call.1']
    #allocation5 [shape = 'u8[4096]{0}', space=vmem, size = 0x1000, scoped, tag = 'input window, operand 1']
    #allocation6 [shape = 's32[2]{0}', space=sflag, size = 0x8, scoped, tag = 'scoped memory for tpu_custom_call.1']
    #allocation7 [shape = 'u8[4096]{0}', space=vmem, size = 0x1000, scoped, tag = 'input window, operand 2']
    #allocation8 [shape = 'u8[4096]{0}', space=vmem, size = 0x1000, scoped, tag = 'input window, operand 3']
    #allocation9 [shape = 's32[2]{0}', space=sflag, size = 0x8, scoped, tag = 'scoped memory for tpu_custom_call.1']
    #allocation10 [shape = 'u8[8192]{0}', space=vmem, size = 0x2000, scoped, tag = 'input window, operand 4']
    #allocation11 [shape = 'u8[4096]{0}', space=vmem, size = 0x1000, scoped, tag = 'input window, operand 6, single buffered']
    #allocation12 [shape = 's32[1]{0}', space=sflag, size = 0x4, scoped, tag = 'scoped memory for tpu_custom_call.1']
    #allocation13 [shape = 'u8[16384]{0}', space=vmem, size = 0x4000, scoped, tag = 'output window, operand 0']
    %12 = vsyncpa [#allocation3], 0
    %s13 = scalar_lea.sflag [#allocation3], 1
    %14 = vsyncpa %s13, 0
    %15 = vsyncpa [#allocation6], 0
    %s16 = scalar_lea.sflag [#allocation6], 1
    %17 = vsyncpa %s16, 0
    %18 = vsyncpa [#allocation9], 0
    %s19 = scalar_lea.sflag [#allocation9], 1
    %20 = vsyncpa %s19, 0
    %21 = vsyncpa [#allocation12], 0
    %22 = vsyncpa [#allocation4], 0
    %s23 = scalar_lea.sflag [#allocation4], 1
    %24 = vsyncpa %s23, 0
    loop: start=0, step=1, limit=4
    $region2: #{tpu_custom_call.1} parent=1 // loop_pre_header
      _
    $region3: #{tpu_custom_call.1} parent=1 // loop_header
      %s26 = sphi 0, %s30
      %p27 = scmp.ge.s32.totalorder %s26, 4
      %s36 = sphi 0, %s38
      %s39 = sphi 0, %s36
      %s40 = sphi 0, %s39
      %s56 = sphi 0, %s40
      %s62 = sphi 0, %s64
      %s65 = sphi 0, %s62
      %s66 = sphi 0, %s65
      %s82 = sphi 0, %s66
      %s88 = sphi 0, %s90
      %s91 = sphi 0, %s88
      %s92 = sphi 0, %s91
      %s108 = sphi 0, %s92
      %s114 = sphi 0, %s116
      %s117 = sphi 0, %s114
      %s118 = sphi 0, %s117
      %s134 = sphi 0, %s118
      %s140 = sphi 0, %s142
      %s143 = sphi 0, %s140
      %s144 = sphi 0, %s143
      %s160 = sphi 0, %s144
      %s164 = sphi 0, %s164
      %s166 = sphi 0, %s164
      %s167 = sphi 0, %s166
      %s181 = sphi 0, %s167
      %s185 = sphi 0, %s185
      %s187 = sphi 0, %s185
      %s188 = sphi 0, %s187
      %s202 = sphi 0, %s188
      %s208 = sphi 0, %s210
      %s211 = sphi 0, %s208
      %s212 = sphi 0, %s211
      %s228 = sphi 0, %s212
    $region4: #{tpu_custom_call.1} parent=1 // loop_header_branch
      %29 = sbr.rel (%p27) target = $region8
    $region5: #{tpu_custom_call.1} parent=1 // loop_body
      %s31 = ssub.s32 %s26, 1
      %s32 = ssub.s32 %s26, 2
      %s33 = sadd.s32 %s26, 1
      %s34 = ssub.s32 %s26, %s33
      %p35 = scmp.eq.s32.totalorder %s34, 0
      %s37 = sadd.s32 %s36, 1
      %s38 = scalar_select %p35, %s36, %s37
      %p41 = pneg %p35
      %p42 = scmp.eq.s32.totalorder %s26, 1
      %p43 = por %p41, %p42
      %p44 = scmp.ne.s32.totalorder %s36, %s39
      %p45 = scmp.eq.s32.totalorder %s26, 0
      %p46 = por %p44, %p45
      %p47 = scmp.ne.s32.totalorder %s36, %s39
      %p48 = scmp.eq.s32.totalorder %s31, 1
      %p49 = por %p47, %p48
      %p50 = scmp.ne.s32.totalorder %s39, %s40
      %p51 = scmp.eq.s32.totalorder %s31, 0
      %p52 = por %p50, %p51
      %p53 = scmp.ne.s32.totalorder %s39, %s40
      %p54 = scmp.eq.s32.totalorder %s32, 1
      %p55 = por %p53, %p54
      %p57 = scmp.ne.s32.totalorder %s40, %s56
      %p58 = scmp.eq.s32.totalorder %s32, 0
      %p59 = por %p57, %p58
      %s60 = ssub.s32 %s26, %s33
      %p61 = scmp.eq.s32.totalorder %s60, 0
      %s63 = sadd.s32 %s62, 1
      %s64 = scalar_select %p61, %s62, %s63
      %p67 = pneg %p61
      %p68 = scmp.eq.s32.totalorder %s26, 1
      %p69 = por %p67, %p68
      %p70 = scmp.ne.s32.totalorder %s62, %s65
      %p71 = scmp.eq.s32.totalorder %s26, 0
      %p72 = por %p70, %p71
      %p73 = scmp.ne.s32.totalorder %s62, %s65
      %p74 = scmp.eq.s32.totalorder %s31, 1
      %p75 = por %p73, %p74
      %p76 = scmp.ne.s32.totalorder %s65, %s66
      %p77 = scmp.eq.s32.totalorder %s31, 0
      %p78 = por %p76, %p77
      %p79 = scmp.ne.s32.totalorder %s65, %s66
      %p80 = scmp.eq.s32.totalorder %s32, 1
      %p81 = por %p79, %p80
      %p83 = scmp.ne.s32.totalorder %s66, %s82
      %p84 = scmp.eq.s32.totalorder %s32, 0
      %p85 = por %p83, %p84
      %s86 = ssub.s32 %s26, %s33
      %p87 = scmp.eq.s32.totalorder %s86, 0
      %s89 = sadd.s32 %s88, 1
      %s90 = scalar_select %p87, %s88, %s89
      %p93 = pneg %p87
      %p94 = scmp.eq.s32.totalorder %s26, 1
      %p95 = por %p93, %p94
      %p96 = scmp.ne.s32.totalorder %s88, %s91
      %p97 = scmp.eq.s32.totalorder %s26, 0
      %p98 = por %p96, %p97
      %p99 = scmp.ne.s32.totalorder %s88, %s91
      %p100 = scmp.eq.s32.totalorder %s31, 1
      %p101 = por %p99, %p100
      %p102 = scmp.ne.s32.totalorder %s91, %s92
      %p103 = scmp.eq.s32.totalorder %s31, 0
      %p104 = por %p102, %p103
      %p105 = scmp.ne.s32.totalorder %s91, %s92
      %p106 = scmp.eq.s32.totalorder %s32, 1
      %p107 = por %p105, %p106
      %p109 = scmp.ne.s32.totalorder %s92, %s108
      %p110 = scmp.eq.s32.totalorder %s32, 0
      %p111 = por %p109, %p110
      %s112 = ssub.s32 %s26, %s33
      %p113 = scmp.eq.s32.totalorder %s112, 0
      %s115 = sadd.s32 %s114, 1
      %s116 = scalar_select %p113, %s114, %s115
      %p119 = pneg %p113
      %p120 = scmp.eq.s32.totalorder %s26, 1
      %p121 = por %p119, %p120
      %p122 = scmp.ne.s32.totalorder %s114, %s117
      %p123 = scmp.eq.s32.totalorder %s26, 0
      %p124 = por %p122, %p123
      %p125 = scmp.ne.s32.totalorder %s114, %s117
      %p126 = scmp.eq.s32.totalorder %s31, 1
      %p127 = por %p125, %p126
      %p128 = scmp.ne.s32.totalorder %s117, %s118
      %p129 = scmp.eq.s32.totalorder %s31, 0
      %p130 = por %p128, %p129
      %p131 = scmp.ne.s32.totalorder %s117, %s118
      %p132 = scmp.eq.s32.totalorder %s32, 1
      %p133 = por %p131, %p132
      %p135 = scmp.ne.s32.totalorder %s118, %s134
      %p136 = scmp.eq.s32.totalorder %s32, 0
      %p137 = por %p135, %p136
      %s138 = ssub.s32 %s26, %s33
      %p139 = scmp.eq.s32.totalorder %s138, 0
      %s141 = sadd.s32 %s140, 1
      %s142 = scalar_select %p139, %s140, %s141
      %p145 = pneg %p139
      %p146 = scmp.eq.s32.totalorder %s26, 1
      %p147 = por %p145, %p146
      %p148 = scmp.ne.s32.totalorder %s140, %s143
      %p149 = scmp.eq.s32.totalorder %s26, 0
      %p150 = por %p148, %p149
      %p151 = scmp.ne.s32.totalorder %s140, %s143
      %p152 = scmp.eq.s32.totalorder %s31, 1
      %p153 = por %p151, %p152
      %p154 = scmp.ne.s32.totalorder %s143, %s144
      %p155 = scmp.eq.s32.totalorder %s31, 0
      %p156 = por %p154, %p155
      %p157 = scmp.ne.s32.totalorder %s143, %s144
      %p158 = scmp.eq.s32.totalorder %s32, 1
      %p159 = por %p157, %p158
      %p161 = scmp.ne.s32.totalorder %s144, %s160
      %p162 = scmp.eq.s32.totalorder %s32, 0
      %p163 = por %p161, %p162
      %s165 = sadd.s32 %s164, 1
      %p168 = scmp.eq.s32.totalorder %s26, 1
      %p169 = scmp.ne.s32.totalorder %s164, %s166
      %p170 = scmp.eq.s32.totalorder %s26, 0
      %p171 = por %p169, %p170
      %p172 = scmp.ne.s32.totalorder %s164, %s166
      %p173 = scmp.eq.s32.totalorder %s31, 1
      %p174 = por %p172, %p173
      %p175 = scmp.ne.s32.totalorder %s166, %s167
      %p176 = scmp.eq.s32.totalorder %s31, 0
      %p177 = por %p175, %p176
      %p178 = scmp.ne.s32.totalorder %s166, %s167
      %p179 = scmp.eq.s32.totalorder %s32, 1
      %p180 = por %p178, %p179
      %p182 = scmp.ne.s32.totalorder %s167, %s181
      %p183 = scmp.eq.s32.totalorder %s32, 0
      %p184 = por %p182, %p183
      %s186 = sadd.s32 %s185, 1
      %p189 = scmp.eq.s32.totalorder %s26, 1
      %p190 = scmp.ne.s32.totalorder %s185, %s187
      %p191 = scmp.eq.s32.totalorder %s26, 0
      %p192 = por %p190, %p191
      %p193 = scmp.ne.s32.totalorder %s185, %s187
      %p194 = scmp.eq.s32.totalorder %s31, 1
      %p195 = por %p193, %p194
      %p196 = scmp.ne.s32.totalorder %s187, %s188
      %p197 = scmp.eq.s32.totalorder %s31, 0
      %p198 = por %p196, %p197
      %p199 = scmp.ne.s32.totalorder %s187, %s188
      %p200 = scmp.eq.s32.totalorder %s32, 1
      %p201 = por %p199, %p200
      %p203 = scmp.ne.s32.totalorder %s188, %s202
      %p204 = scmp.eq.s32.totalorder %s32, 0
      %p205 = por %p203, %p204
      %s206 = ssub.s32 %s26, %s33
      %p207 = scmp.eq.s32.totalorder %s206, 0
      %s209 = sadd.s32 %s208, 1
      %s210 = scalar_select %p207, %s208, %s209
      %p213 = pneg %p207
      %p214 = scmp.eq.s32.totalorder %s26, 1
      %p215 = por %p213, %p214
      %p216 = scmp.ne.s32.totalorder %s208, %s211
      %p217 = scmp.eq.s32.totalorder %s26, 0
      %p218 = por %p216, %p217
      %p219 = scmp.ne.s32.totalorder %s208, %s211
      %p220 = scmp.eq.s32.totalorder %s31, 1
      %p221 = por %p219, %p220
      %p222 = scmp.ne.s32.totalorder %s211, %s212
      %p223 = scmp.eq.s32.totalorder %s31, 0
      %p224 = por %p222, %p223
      %p225 = scmp.ne.s32.totalorder %s211, %s212
      %p226 = scmp.eq.s32.totalorder %s32, 1
      %p227 = por %p225, %p226
      %p229 = scmp.ne.s32.totalorder %s212, %s228
      %p230 = scmp.eq.s32.totalorder %s32, 0
      %p231 = por %p229, %p230
      %p232 = scmp.le.s32.totalorder 1, %s26
      %p233 = scmp.lt.s32.totalorder %s26, 3
      %p234 = pnand %p232, %p233
      %p235 = pneg %p234
      // Predicated region
      $region9: #{tpu_custom_call.1} parent=5 // pred_check
        _
      $region10: #{tpu_custom_call.1} parent=5 // pred_check_branch
        %237 = sbr.rel (%p234) target = $region12
      $region11: #{tpu_custom_call.1} parent=5 // pred_region
        %s238 = ssub.s32 %s26, 1
        // Predicated region
        $region13: #{tpu_custom_call.1} parent=11 // pred_check
          %p239 = pneg %p177
        $region14: #{tpu_custom_call.1} parent=11 // pred_check_branch
          %241 = sbr.rel (%p239) target = $region16
        $region15: #{tpu_custom_call.1} parent=11 // pred_region
          _
        $region16: #{tpu_custom_call.1} parent=11 // pred_fallthru
          _
        // Predicated region
        $region17: #{tpu_custom_call.1} parent=11 // pred_check
          %p242 = pneg %p198
        $region18: #{tpu_custom_call.1} parent=11 // pred_check_branch
          %244 = sbr.rel (%p242) target = $region20
        $region19: #{tpu_custom_call.1} parent=11 // pred_region
          %s246 = ssub.s32 128, 128
          %247 = vsyncadd [#allocation12], %s246
          %s249 = sshll.u32 [#allocation11], 4
          %s250 = int_to_ptr.vmem [resolvable:$true] %s249
          %252 = dma.hbm_to_vmem [thread:$0]  %s6, 128, %s250, [#allocation12]
        $region20: #{tpu_custom_call.1} parent=11 // pred_fallthru
          _
      $region12: #{tpu_custom_call.1} parent=5 // pred_fallthru
        _
      %p253 = scmp.lt.s32.totalorder %s26, 2
      // Predicated region
      $region21: #{tpu_custom_call.1} parent=5 // pred_check
        %p254 = pneg %p253
      $region22: #{tpu_custom_call.1} parent=5 // pred_check_branch
        %256 = sbr.rel (%p254) target = $region24
      $region23: #{tpu_custom_call.1} parent=5 // pred_region
        // Predicated region
        $region25: #{tpu_custom_call.1} parent=23 // pred_check
          %p257 = pneg %p46
        $region26: #{tpu_custom_call.1} parent=23 // pred_check_branch
          %259 = sbr.rel (%p257) target = $region28
        $region27: #{tpu_custom_call.1} parent=23 // pred_region
          %s260 = sand.u32 %s36, 1
          %s261 = scalar_lea.sflag [#allocation3], %s260
          %s262 = sand.u32 %s36, 1
          %s263 = smul.addr %s262, 4
          %s264 = scalar_lea.vmem [#allocation2], %s263
          %s266 = ssub.s32 64, 64
          %267 = vsyncadd %s261, %s266
          %s268 = smul.addr %s26, 64
          %s269 = scalar_lea.hbm %s0, %s268
          %s271 = sshll.u32 %s264, 4
          %s272 = int_to_ptr.vmem [resolvable:$true] %s271
          %274 = dma.hbm_to_vmem [thread:$0]  %s269, 64, %s272, %s261
        $region28: #{tpu_custom_call.1} parent=23 // pred_fallthru
          _
        // Predicated region
        $region29: #{tpu_custom_call.1} parent=23 // pred_check
          %p275 = pneg %p72
        $region30: #{tpu_custom_call.1} parent=23 // pred_check_branch
          %277 = sbr.rel (%p275) target = $region32
        $region31: #{tpu_custom_call.1} parent=23 // pred_region
          %s278 = sand.u32 %s26, 1
          %s279 = scalar_lea.sflag [#allocation6], %s278
          %s280 = sand.u32 %s62, 1
          %s281 = smul.addr %s280, 4
          %s282 = scalar_lea.vmem [#allocation5], %s281
          %s284 = ssub.s32 64, 64
          %285 = vsyncadd %s279, %s284
          %s286 = smul.addr %s26, 64
          %s287 = scalar_lea.hbm %s1, %s286
          %s289 = sshll.u32 %s282, 4
          %s290 = int_to_ptr.vmem [resolvable:$true] %s289
          %292 = dma.hbm_to_vmem [thread:$0]  %s287, 64, %s290, %s279
        $region32: #{tpu_custom_call.1} parent=23 // pred_fallthru
          _
        // Predicated region
        $region33: #{tpu_custom_call.1} parent=23 // pred_check
          %p293 = pneg %p98
        $region34: #{tpu_custom_call.1} parent=23 // pred_check_branch
          %295 = sbr.rel (%p293) target = $region36
        $region35: #{tpu_custom_call.1} parent=23 // pred_region
          %s296 = sand.u32 %s26, 1
          %s297 = scalar_lea.sflag [#allocation6], %s296
          %s298 = sand.u32 %s88, 1
          %s299 = smul.addr %s298, 4
          %s300 = scalar_lea.vmem [#allocation7], %s299
          %s302 = ssub.s32 64, 64
          %303 = vsyncadd %s297, %s302
          %s304 = smul.addr %s26, 64
          %s305 = scalar_lea.hbm %s2, %s304
          %s307 = sshll.u32 %s300, 4
          %s308 = int_to_ptr.vmem [resolvable:$true] %s307
          %310 = dma.hbm_to_vmem [thread:$0]  %s305, 64, %s308, %s297
        $region36: #{tpu_custom_call.1} parent=23 // pred_fallthru
          _
        // Predicated region
        $region37: #{tpu_custom_call.1} parent=23 // pred_check
          %p311 = pneg %p124
        $region38: #{tpu_custom_call.1} parent=23 // pred_check_branch
          %313 = sbr.rel (%p311) target = $region40
        $region39: #{tpu_custom_call.1} parent=23 // pred_region
          %s314 = sand.u32 %s26, 1
          %s315 = scalar_lea.sflag [#allocation9], %s314
          %s316 = sand.u32 %s114, 1
          %s317 = smul.addr %s316, 4
          %s318 = scalar_lea.vmem [#allocation8], %s317
          %s320 = ssub.s32 64, 64
          %321 = vsyncadd %s315, %s320
          %s322 = smul.addr %s26, 64
          %s323 = scalar_lea.hbm %s3, %s322
          %s325 = sshll.u32 %s318, 4
          %s326 = int_to_ptr.vmem [resolvable:$true] %s325
          %328 = dma.hbm_to_vmem [thread:$0]  %s323, 64, %s326, %s315
        $region40: #{tpu_custom_call.1} parent=23 // pred_fallthru
          _
        // Predicated region
        $region41: #{tpu_custom_call.1} parent=23 // pred_check
          %p329 = pneg %p150
        $region42: #{tpu_custom_call.1} parent=23 // pred_check_branch
          %331 = sbr.rel (%p329) target = $region44
        $region43: #{tpu_custom_call.1} parent=23 // pred_region
          %s332 = sand.u32 %s26, 1
          %s333 = scalar_lea.sflag [#allocation9], %s332
          %s334 = sand.u32 %s140, 1
          %s335 = smul.addr %s334, 8
          %s336 = scalar_lea.vmem [#allocation10], %s335
          %s338 = ssub.s32 128, 128
          %339 = vsyncadd %s333, %s338
          %s340 = smul.addr %s26, 2
          %s341 = smul.addr %s340, 64
          %s342 = scalar_lea.hbm %s4, %s341
          %s344 = sshll.u32 %s336, 4
          %s345 = int_to_ptr.vmem [resolvable:$true] %s344
          %347 = dma.hbm_to_vmem [thread:$0]  %s342, 128, %s345, %s333
        $region44: #{tpu_custom_call.1} parent=23 // pred_fallthru
          _
      $region24: #{tpu_custom_call.1} parent=5 // pred_fallthru
        _
      %p348 = scmp.le.s32.totalorder 1, %s26
      %p349 = scmp.lt.s32.totalorder %s26, 3
      %p350 = pnand %p348, %p349
      %p351 = pneg %p350
      // Predicated region
      $region45: #{tpu_custom_call.1} parent=5 // pred_check
        _
      $region46: #{tpu_custom_call.1} parent=5 // pred_check_branch
        %353 = sbr.rel (%p350) target = $region48
      $region47: #{tpu_custom_call.1} parent=5 // pred_region
        %s354 = ssub.s32 %s26, 1
        %s355 = sand.u32 %s39, 1
        %s356 = scalar_lea.sflag [#allocation3], %s355
        %s357 = sand.u32 %s39, 1
        %s358 = smul.addr %s357, 4
        %s359 = scalar_lea.vmem [#allocation2], %s358
        // Predicated region
        $region49: #{tpu_custom_call.1} parent=47 // pred_check
          %p360 = pneg %p52
        $region50: #{tpu_custom_call.1} parent=47 // pred_check_branch
          %362 = sbr.rel (%p360) target = $region52
        $region51: #{tpu_custom_call.1} parent=47 // pred_region
          %363 = dma.done %s356, 64
        $region52: #{tpu_custom_call.1} parent=47 // pred_fallthru
          _
        %s364 = sand.u32 %s31, 1
        %s365 = scalar_lea.sflag [#allocation6], %s364
        %s366 = sand.u32 %s65, 1
        %s367 = smul.addr %s366, 4
        %s368 = scalar_lea.vmem [#allocation5], %s367
        // Predicated region
        $region53: #{tpu_custom_call.1} parent=47 // pred_check
          %p369 = pneg %p78
        $region54: #{tpu_custom_call.1} parent=47 // pred_check_branch
          %371 = sbr.rel (%p369) target = $region56
        $region55: #{tpu_custom_call.1} parent=47 // pred_region
          %372 = dma.done %s365, 64
        $region56: #{tpu_custom_call.1} parent=47 // pred_fallthru
          _
        %s373 = sand.u32 %s31, 1
        %s374 = scalar_lea.sflag [#allocation6], %s373
        %s375 = sand.u32 %s91, 1
        %s376 = smul.addr %s375, 4
        %s377 = scalar_lea.vmem [#allocation7], %s376
        // Predicated region
        $region57: #{tpu_custom_call.1} parent=47 // pred_check
          %p378 = pneg %p104
        $region58: #{tpu_custom_call.1} parent=47 // pred_check_branch
          %380 = sbr.rel (%p378) target = $region60
        $region59: #{tpu_custom_call.1} parent=47 // pred_region
          %381 = dma.done %s374, 64
        $region60: #{tpu_custom_call.1} parent=47 // pred_fallthru
          _
        %s382 = sand.u32 %s31, 1
        %s383 = scalar_lea.sflag [#allocation9], %s382
        %s384 = sand.u32 %s117, 1
        %s385 = smul.addr %s384, 4
        %s386 = scalar_lea.vmem [#allocation8], %s385
        // Predicated region
        $region61: #{tpu_custom_call.1} parent=47 // pred_check
          %p387 = pneg %p130
        $region62: #{tpu_custom_call.1} parent=47 // pred_check_branch
          %389 = sbr.rel (%p387) target = $region64
        $region63: #{tpu_custom_call.1} parent=47 // pred_region
          %390 = dma.done %s383, 64
        $region64: #{tpu_custom_call.1} parent=47 // pred_fallthru
          _
        %s391 = sand.u32 %s31, 1
        %s392 = scalar_lea.sflag [#allocation9], %s391
        %s393 = sand.u32 %s143, 1
        %s394 = smul.addr %s393, 8
        %s395 = scalar_lea.vmem [#allocation10], %s394
        // Predicated region
        $region65: #{tpu_custom_call.1} parent=47 // pred_check
          %p396 = pneg %p156
        $region66: #{tpu_custom_call.1} parent=47 // pred_check_branch
          %398 = sbr.rel (%p396) target = $region68
        $region67: #{tpu_custom_call.1} parent=47 // pred_region
          %399 = dma.done %s392, 128
        $region68: #{tpu_custom_call.1} parent=47 // pred_fallthru
          _
        // Predicated region
        $region69: #{tpu_custom_call.1} parent=47 // pred_check
          %p400 = pneg %p198
        $region70: #{tpu_custom_call.1} parent=47 // pred_check_branch
          %402 = sbr.rel (%p400) target = $region72
        $region71: #{tpu_custom_call.1} parent=47 // pred_region
          %403 = dma.done [#allocation12], 128
        $region72: #{tpu_custom_call.1} parent=47 // pred_fallthru
          _
        %s404 = sand.u32 %s39, 1
        %s405 = scalar_lea.sflag [#allocation3], %s404
        %s406 = sand.u32 %s39, 1
        %s407 = smul.addr %s406, 4
        %s408 = scalar_lea.vmem [#allocation2], %s407
        %p409 = pneg %p52
        %p410 = pneg %p49
        %s411 = sand.u32 %s31, 1
        %s412 = scalar_lea.sflag [#allocation6], %s411
        %s413 = sand.u32 %s65, 1
        %s414 = smul.addr %s413, 4
        %s415 = scalar_lea.vmem [#allocation5], %s414
        %p416 = pneg %p78
        %p417 = pneg %p75
        %s418 = sand.u32 %s31, 1
        %s419 = scalar_lea.sflag [#allocation6], %s418
        %s420 = sand.u32 %s91, 1
        %s421 = smul.addr %s420, 4
        %s422 = scalar_lea.vmem [#allocation7], %s421
        %p423 = pneg %p104
        %p424 = pneg %p101
        %s425 = sand.u32 %s31, 1
        %s426 = scalar_lea.sflag [#allocation9], %s425
        %s427 = sand.u32 %s117, 1
        %s428 = smul.addr %s427, 4
        %s429 = scalar_lea.vmem [#allocation8], %s428
        %p430 = pneg %p130
        %p431 = pneg %p127
        %s432 = sand.u32 %s31, 1
        %s433 = scalar_lea.sflag [#allocation9], %s432
        %s434 = sand.u32 %s143, 1
        %s435 = smul.addr %s434, 8
        %s436 = scalar_lea.vmem [#allocation10], %s435
        %p437 = pneg %p156
        %p438 = pneg %p153
        %p439 = pneg %p177
        %p440 = pneg %p174
        %p441 = pneg %p198
        %p442 = pneg %p195
        %p443 = pneg %p224
        %p444 = pneg %p221
        %s445 = sand.u32 %s211, 1
        %s446 = scalar_lea.sflag [#allocation4], %s445
        %s447 = sand.u32 %s211, 1
        %s448 = smul.addr %s447, 16
        %s449 = scalar_lea.vmem [#allocation13], %s448
        %v450 = vld [vmem:[%s5] sm:$0xff]
        %v451 = vld [vmem:[#allocation11] sm:$0xff]
        %v452 = vld [vmem:[%s359] sm:$0xf]
        %v453 = vld [vmem:[%s368] sm:$0xf]
        %v454 = vld [vmem:[%s377] sm:$0xf]
        %v455 = vld [vmem:[%s386] sm:$0xf]
        %v456 = vsub.f32 %v452, %v453
        %v457 = vmul.f32 %v456, 0.5
        %v458 = vadd.f32 %v452, %v453
        %v459 = vmul.f32 %v458, 0.5
        %v460 = vsub.f32 %v455, %v454
        %v461 = vmul.f32 %v460, 0.5
        %v462 = vadd.f32 %v455, %v454
        %v463 = vmul.f32 %v462, 0.5
        %v464 = vadd.f32 %v457, %v461
        %v465 = vsub.f32 %v457, %v461
        %v466 = vsub.f32 %v459, %v463
        %v467 = vadd.f32 %v459, %v463
        %vm468 = vcmask 64512
        %v470 = vsel %vm468, %v465, 0
        %472 = vmatprep.subr.mxu0 0.0
        %473 = vmatpush1.msra.mxu0 0.0
        %474 = vmatprep.subr.mxu0 0.0
        %475 = vmatpush1.msra.mxu0 0.0
        %476 = vmatprep.subr.mxu0 0.0
        %477 = vmatpush1.msra.mxu0 0.0
        %478 = vmatprep.subr.mxu0 0.0
        %479 = vmatpush1.msra.mxu0 0.0
        %480 = vmatprep.subr.mxu0 0.0
        %481 = vmatpush1.msra.mxu0 0.0
        %482 = vmatprep.subr.mxu0 0.0
        %483 = vmatpush1.msra.mxu0 0.0
        %484 = vmatprep.subr.mxu0 0.0
        %485 = vmatpush1.msra.mxu0 0.0
        %486 = vmatprep.subr.mxu0 0.0
        %487 = vmatpush1.msra.mxu0 0.0
        %488 = vmatprep.subr.mxu0 0.0
        %489 = vmatpush1.msra.mxu0 0.0
        %490 = vmatprep.subr.mxu0 0.0
        %491 = vmatpush1.msra.mxu0 0.0
        %492 = vmatprep.subr.mxu0 0.0
        %493 = vmatpush1.msra.mxu0 0.0
        %494 = vmatprep.subr.mxu0 0.0
        %495 = vmatpush1.msra.mxu0 0.0
        %496 = vmatprep.subr.mxu0 0.0
        %497 = vmatpush1.msra.mxu0 0.0
        %498 = vmatprep.subr.mxu0 0.0
        %499 = vmatpush1.msra.mxu0 0.0
        %500 = vmatprep.subr.mxu0 0.0
        %501 = vmatpush1.msra.mxu0 0.0
        %502 = vmatprep.subr.mxu0 0.0
        %503 = vmatpush1.msra.mxu0 %v451
        %504 = vmatprep.subr.mxu0 0.0
        %505 = vmatpush2.msra.mxu0 0.0
        %506 = vmatprep.subr.mxu0 0.0
        %507 = vmatpush2.msra.mxu0 0.0
        %508 = vmatprep.subr.mxu0 0.0
        %509 = vmatpush2.msra.mxu0 0.0
        %510 = vmatprep.subr.mxu0 0.0
        %511 = vmatpush2.msra.mxu0 0.0
        %512 = vmatprep.subr.mxu0 0.0
        %513 = vmatpush2.msra.mxu0 0.0
        %514 = vmatprep.subr.mxu0 0.0
        %515 = vmatpush2.msra.mxu0 0.0
        %516 = vmatprep.subr.mxu0 0.0
        %517 = vmatpush2.msra.mxu0 0.0
        %518 = vmatprep.subr.mxu0 0.0
        %519 = vmatpush2.msra.mxu0 0.0
        %520 = vmatprep.subr.mxu0 0.0
        %521 = vmatpush2.msra.mxu0 0.0
        %522 = vmatprep.subr.mxu0 0.0
        %523 = vmatpush2.msra.mxu0 0.0
        %524 = vmatprep.subr.mxu0 0.0
        %525 = vmatpush2.msra.mxu0 0.0
        %526 = vmatprep.subr.mxu0 0.0
        %527 = vmatpush2.msra.mxu0 0.0
        %528 = vmatprep.subr.mxu0 0.0
        %529 = vmatpush2.msra.mxu0 0.0
        %530 = vmatprep.subr.mxu0 0.0
        %531 = vmatpush2.msra.mxu0 0.0
        %532 = vmatprep.subr.mxu0 0.0
        %533 = vmatpush2.msra.mxu0 0.0
        %534 = vmatprep.subr.mxu0 0.0
        %535 = vmatpush2.msra.mxu0 0.0
        %536 = vmatprep.mubr.f32.mxu0 0.0
        %537 = vmatmul.mubr.f32.gmra.mxu0 %v470
        %v538 = vpop.f32.mrf.mxu0
        %v539 = vadd.f32 0.0, %v538
        %v540 = vpop.f32.mrf.mxu0
        %541 = vdwg.mxu0
        %v543 = vsel %vm468, %v464, 0
        %545 = vmatprep.subr.mxu0 0.0
        %546 = vmatpush1.msra.mxu0 0.0
        %547 = vmatprep.subr.mxu0 0.0
        %548 = vmatpush1.msra.mxu0 0.0
        %549 = vmatprep.subr.mxu0 0.0
        %550 = vmatpush1.msra.mxu0 0.0
        %551 = vmatprep.subr.mxu0 0.0
        %552 = vmatpush1.msra.mxu0 0.0
        %553 = vmatprep.subr.mxu0 0.0
        %554 = vmatpush1.msra.mxu0 0.0
        %555 = vmatprep.subr.mxu0 0.0
        %556 = vmatpush1.msra.mxu0 0.0
        %557 = vmatprep.subr.mxu0 0.0
        %558 = vmatpush1.msra.mxu0 0.0
        %559 = vmatprep.subr.mxu0 0.0
        %560 = vmatpush1.msra.mxu0 0.0
        %561 = vmatprep.subr.mxu0 0.0
        %562 = vmatpush1.msra.mxu0 0.0
        %563 = vmatprep.subr.mxu0 0.0
        %564 = vmatpush1.msra.mxu0 0.0
        %565 = vmatprep.subr.mxu0 0.0
        %566 = vmatpush1.msra.mxu0 0.0
        %567 = vmatprep.subr.mxu0 0.0
        %568 = vmatpush1.msra.mxu0 0.0
        %569 = vmatprep.subr.mxu0 0.0
        %570 = vmatpush1.msra.mxu0 0.0
        %571 = vmatprep.subr.mxu0 0.0
        %572 = vmatpush1.msra.mxu0 0.0
        %573 = vmatprep.subr.mxu0 0.0
        %574 = vmatpush1.msra.mxu0 0.0
        %575 = vmatprep.subr.mxu0 0.0
        %576 = vmatpush1.msra.mxu0 %v450
        %577 = vmatprep.subr.mxu0 0.0
        %578 = vmatpush2.msra.mxu0 0.0
        %579 = vmatprep.subr.mxu0 0.0
        %580 = vmatpush2.msra.mxu0 0.0
        %581 = vmatprep.subr.mxu0 0.0
        %582 = vmatpush2.msra.mxu0 0.0
        %583 = vmatprep.subr.mxu0 0.0
        %584 = vmatpush2.msra.mxu0 0.0
        %585 = vmatprep.subr.mxu0 0.0
        %586 = vmatpush2.msra.mxu0 0.0
        %587 = vmatprep.subr.mxu0 0.0
        %588 = vmatpush2.msra.mxu0 0.0
        %589 = vmatprep.subr.mxu0 0.0
        %590 = vmatpush2.msra.mxu0 0.0
        %591 = vmatprep.subr.mxu0 0.0
        %592 = vmatpush2.msra.mxu0 0.0
        %593 = vmatprep.subr.mxu0 0.0
        %594 = vmatpush2.msra.mxu0 0.0
        %595 = vmatprep.subr.mxu0 0.0
        %596 = vmatpush2.msra.mxu0 0.0
        %597 = vmatprep.subr.mxu0 0.0
        %598 = vmatpush2.msra.mxu0 0.0
        %599 = vmatprep.subr.mxu0 0.0
        %600 = vmatpush2.msra.mxu0 0.0
        %601 = vmatprep.subr.mxu0 0.0
        %602 = vmatpush2.msra.mxu0 0.0
        %603 = vmatprep.subr.mxu0 0.0
        %604 = vmatpush2.msra.mxu0 0.0
        %605 = vmatprep.subr.mxu0 0.0
        %606 = vmatpush2.msra.mxu0 0.0
        %607 = vmatprep.subr.mxu0 0.0
        %608 = vmatpush2.msra.mxu0 0.0
        %609 = vmatprep.mubr.f32.mxu0 0.0
        %610 = vmatmul.mubr.f32.gmra.mxu0 %v543
        %v611 = vpop.f32.mrf.mxu0
        %v612 = vadd.f32 %v539, %v611
        %v613 = vpop.f32.mrf.mxu0
        %614 = vdwg.mxu0
        %v616 = vsel %vm468, %v467, 0
        %618 = vmatprep.subr.mxu0 0.0
        %619 = vmatpush1.msra.mxu0 0.0
        %620 = vmatprep.subr.mxu0 0.0
        %621 = vmatpush1.msra.mxu0 0.0
        %622 = vmatprep.subr.mxu0 0.0
        %623 = vmatpush1.msra.mxu0 0.0
        %624 = vmatprep.subr.mxu0 0.0
        %625 = vmatpush1.msra.mxu0 0.0
        %626 = vmatprep.subr.mxu0 0.0
        %627 = vmatpush1.msra.mxu0 0.0
        %628 = vmatprep.subr.mxu0 0.0
        %629 = vmatpush1.msra.mxu0 0.0
        %630 = vmatprep.subr.mxu0 0.0
        %631 = vmatpush1.msra.mxu0 0.0
        %632 = vmatprep.subr.mxu0 0.0
        %633 = vmatpush1.msra.mxu0 0.0
        %634 = vmatprep.subr.mxu0 0.0
        %635 = vmatpush1.msra.mxu0 0.0
        %636 = vmatprep.subr.mxu0 0.0
        %637 = vmatpush1.msra.mxu0 0.0
        %638 = vmatprep.subr.mxu0 0.0
        %639 = vmatpush1.msra.mxu0 0.0
        %640 = vmatprep.subr.mxu0 0.0
        %641 = vmatpush1.msra.mxu0 0.0
        %642 = vmatprep.subr.mxu0 0.0
        %643 = vmatpush1.msra.mxu0 0.0
        %644 = vmatprep.subr.mxu0 0.0
        %645 = vmatpush1.msra.mxu0 0.0
        %646 = vmatprep.subr.mxu0 0.0
        %647 = vmatpush1.msra.mxu0 0.0
        %648 = vmatprep.subr.mxu0 0.0
        %649 = vmatpush1.msra.mxu0 %v451
        %650 = vmatprep.subr.mxu0 0.0
        %651 = vmatpush2.msra.mxu0 0.0
        %652 = vmatprep.subr.mxu0 0.0
        %653 = vmatpush2.msra.mxu0 0.0
        %654 = vmatprep.subr.mxu0 0.0
        %655 = vmatpush2.msra.mxu0 0.0
        %656 = vmatprep.subr.mxu0 0.0
        %657 = vmatpush2.msra.mxu0 0.0
        %658 = vmatprep.subr.mxu0 0.0
        %659 = vmatpush2.msra.mxu0 0.0
        %660 = vmatprep.subr.mxu0 0.0
        %661 = vmatpush2.msra.mxu0 0.0
        %662 = vmatprep.subr.mxu0 0.0
        %663 = vmatpush2.msra.mxu0 0.0
        %664 = vmatprep.subr.mxu0 0.0
        %665 = vmatpush2.msra.mxu0 0.0
        %666 = vmatprep.subr.mxu0 0.0
        %667 = vmatpush2.msra.mxu0 0.0
        %668 = vmatprep.subr.mxu0 0.0
        %669 = vmatpush2.msra.mxu0 0.0
        %670 = vmatprep.subr.mxu0 0.0
        %671 = vmatpush2.msra.mxu0 0.0
        %672 = vmatprep.subr.mxu0 0.0
        %673 = vmatpush2.msra.mxu0 0.0
        %674 = vmatprep.subr.mxu0 0.0
        %675 = vmatpush2.msra.mxu0 0.0
        %676 = vmatprep.subr.mxu0 0.0
        %677 = vmatpush2.msra.mxu0 0.0
        %678 = vmatprep.subr.mxu0 0.0
        %679 = vmatpush2.msra.mxu0 0.0
        %680 = vmatprep.subr.mxu0 0.0
        %681 = vmatpush2.msra.mxu0 0.0
        %682 = vmatprep.mubr.f32.mxu0 0.0
        %683 = vmatmul.mubr.f32.gmra.mxu0 %v616
        %v684 = vpop.f32.mrf.mxu0
        %v685 = vadd.f32 0.0, %v684
        %v686 = vpop.f32.mrf.mxu0
        %687 = vdwg.mxu0
        %v689 = vsel %vm468, %v466, 0
        %691 = vmatprep.subr.mxu0 0.0
        %692 = vmatpush1.msra.mxu0 0.0
        %693 = vmatprep.subr.mxu0 0.0
        %694 = vmatpush1.msra.mxu0 0.0
        %695 = vmatprep.subr.mxu0 0.0
        %696 = vmatpush1.msra.mxu0 0.0
        %697 = vmatprep.subr.mxu0 0.0
        %698 = vmatpush1.msra.mxu0 0.0
        %699 = vmatprep.subr.mxu0 0.0
        %700 = vmatpush1.msra.mxu0 0.0
        %701 = vmatprep.subr.mxu0 0.0
        %702 = vmatpush1.msra.mxu0 0.0
        %703 = vmatprep.subr.mxu0 0.0
        %704 = vmatpush1.msra.mxu0 0.0
        %705 = vmatprep.subr.mxu0 0.0
        %706 = vmatpush1.msra.mxu0 0.0
        %707 = vmatprep.subr.mxu0 0.0
        %708 = vmatpush1.msra.mxu0 0.0
        %709 = vmatprep.subr.mxu0 0.0
        %710 = vmatpush1.msra.mxu0 0.0
        %711 = vmatprep.subr.mxu0 0.0
        %712 = vmatpush1.msra.mxu0 0.0
        %713 = vmatprep.subr.mxu0 0.0
        %714 = vmatpush1.msra.mxu0 0.0
        %715 = vmatprep.subr.mxu0 0.0
        %716 = vmatpush1.msra.mxu0 0.0
        %717 = vmatprep.subr.mxu0 0.0
        %718 = vmatpush1.msra.mxu0 0.0
        %719 = vmatprep.subr.mxu0 0.0
        %720 = vmatpush1.msra.mxu0 0.0
        %721 = vmatprep.subr.mxu0 0.0
        %722 = vmatpush1.msra.mxu0 %v450
        %723 = vmatprep.subr.mxu0 0.0
        %724 = vmatpush2.msra.mxu0 0.0
        %725 = vmatprep.subr.mxu0 0.0
        %726 = vmatpush2.msra.mxu0 0.0
        %727 = vmatprep.subr.mxu0 0.0
        %728 = vmatpush2.msra.mxu0 0.0
        %729 = vmatprep.subr.mxu0 0.0
        %730 = vmatpush2.msra.mxu0 0.0
        %731 = vmatprep.subr.mxu0 0.0
        %732 = vmatpush2.msra.mxu0 0.0
        %733 = vmatprep.subr.mxu0 0.0
        %734 = vmatpush2.msra.mxu0 0.0
        %735 = vmatprep.subr.mxu0 0.0
        %736 = vmatpush2.msra.mxu0 0.0
        %737 = vmatprep.subr.mxu0 0.0
        %738 = vmatpush2.msra.mxu0 0.0
        %739 = vmatprep.subr.mxu0 0.0
        %740 = vmatpush2.msra.mxu0 0.0
        %741 = vmatprep.subr.mxu0 0.0
        %742 = vmatpush2.msra.mxu0 0.0
        %743 = vmatprep.subr.mxu0 0.0
        %744 = vmatpush2.msra.mxu0 0.0
        %745 = vmatprep.subr.mxu0 0.0
        %746 = vmatpush2.msra.mxu0 0.0
        %747 = vmatprep.subr.mxu0 0.0
        %748 = vmatpush2.msra.mxu0 0.0
        %749 = vmatprep.subr.mxu0 0.0
        %750 = vmatpush2.msra.mxu0 0.0
        %751 = vmatprep.subr.mxu0 0.0
        %752 = vmatpush2.msra.mxu0 0.0
        %753 = vmatprep.subr.mxu0 0.0
        %754 = vmatpush2.msra.mxu0 0.0
        %755 = vmatprep.mubr.f32.mxu0 0.0
        %756 = vmatmul.mubr.f32.gmra.mxu0 %v689
        %v757 = vpop.f32.mrf.mxu0
        %v758 = vadd.f32 %v685, %v757
        %v759 = vpop.f32.mrf.mxu0
        %760 = vdwg.mxu0
        %761 = vrot.lane.b32.xlu0 %v465, 120
        %v762 = vpop.permute.xlu0 %761
        %v763 = vsel %vm468, %v762, 0
        %765 = vmatprep.subr.mxu0 0.0
        %766 = vmatpush1.msra.mxu0 0.0
        %767 = vmatprep.subr.mxu0 0.0
        %768 = vmatpush1.msra.mxu0 0.0
        %769 = vmatprep.subr.mxu0 0.0
        %770 = vmatpush1.msra.mxu0 0.0
        %771 = vmatprep.subr.mxu0 0.0
        %772 = vmatpush1.msra.mxu0 0.0
        %773 = vmatprep.subr.mxu0 0.0
        %774 = vmatpush1.msra.mxu0 0.0
        %775 = vmatprep.subr.mxu0 0.0
        %776 = vmatpush1.msra.mxu0 0.0
        %777 = vmatprep.subr.mxu0 0.0
        %778 = vmatpush1.msra.mxu0 0.0
        %779 = vmatprep.subr.mxu0 0.0
        %780 = vmatpush1.msra.mxu0 0.0
        %781 = vmatprep.subr.mxu0 0.0
        %782 = vmatpush1.msra.mxu0 0.0
        %783 = vmatprep.subr.mxu0 0.0
        %784 = vmatpush1.msra.mxu0 0.0
        %785 = vmatprep.subr.mxu0 0.0
        %786 = vmatpush1.msra.mxu0 0.0
        %787 = vmatprep.subr.mxu0 0.0
        %788 = vmatpush1.msra.mxu0 0.0
        %789 = vmatprep.subr.mxu0 0.0
        %790 = vmatpush1.msra.mxu0 0.0
        %791 = vmatprep.subr.mxu0 0.0
        %792 = vmatpush1.msra.mxu0 0.0
        %793 = vmatprep.subr.mxu0 0.0
        %794 = vmatpush1.msra.mxu0 0.0
        %795 = vmatprep.subr.mxu0 0.0
        %796 = vmatpush1.msra.mxu0 %v451
        %797 = vmatprep.subr.mxu0 0.0
        %798 = vmatpush2.msra.mxu0 0.0
        %799 = vmatprep.subr.mxu0 0.0
        %800 = vmatpush2.msra.mxu0 0.0
        %801 = vmatprep.subr.mxu0 0.0
        %802 = vmatpush2.msra.mxu0 0.0
        %803 = vmatprep.subr.mxu0 0.0
        %804 = vmatpush2.msra.mxu0 0.0
        %805 = vmatprep.subr.mxu0 0.0
        %806 = vmatpush2.msra.mxu0 0.0
        %807 = vmatprep.subr.mxu0 0.0
        %808 = vmatpush2.msra.mxu0 0.0
        %809 = vmatprep.subr.mxu0 0.0
        %810 = vmatpush2.msra.mxu0 0.0
        %811 = vmatprep.subr.mxu0 0.0
        %812 = vmatpush2.msra.mxu0 0.0
        %813 = vmatprep.subr.mxu0 0.0
        %814 = vmatpush2.msra.mxu0 0.0
        %815 = vmatprep.subr.mxu0 0.0
        %816 = vmatpush2.msra.mxu0 0.0
        %817 = vmatprep.subr.mxu0 0.0
        %818 = vmatpush2.msra.mxu0 0.0
        %819 = vmatprep.subr.mxu0 0.0
        %820 = vmatpush2.msra.mxu0 0.0
        %821 = vmatprep.subr.mxu0 0.0
        %822 = vmatpush2.msra.mxu0 0.0
        %823 = vmatprep.subr.mxu0 0.0
        %824 = vmatpush2.msra.mxu0 0.0
        %825 = vmatprep.subr.mxu0 0.0
        %826 = vmatpush2.msra.mxu0 0.0
        %827 = vmatprep.subr.mxu0 0.0
        %828 = vmatpush2.msra.mxu0 0.0
        %829 = vmatprep.mubr.f32.mxu0 0.0
        %830 = vmatmul.mubr.f32.gmra.mxu0 %v763
        %v831 = vpop.f32.mrf.mxu0
        %v832 = vadd.f32 0.0, %v831
        %v833 = vpop.f32.mrf.mxu0
        %834 = vdwg.mxu0
        %835 = vrot.lane.b32.xlu0 %v464, 120
        %v836 = vpop.permute.xlu0 %835
        %v837 = vsel %vm468, %v836, 0
        %839 = vmatprep.subr.mxu0 0.0
        %840 = vmatpush1.msra.mxu0 0.0
        %841 = vmatprep.subr.mxu0 0.0
        %842 = vmatpush1.msra.mxu0 0.0
        %843 = vmatprep.subr.mxu0 0.0
        %844 = vmatpush1.msra.mxu0 0.0
        %845 = vmatprep.subr.mxu0 0.0
        %846 = vmatpush1.msra.mxu0 0.0
        %847 = vmatprep.subr.mxu0 0.0
        %848 = vmatpush1.msra.mxu0 0.0
        %849 = vmatprep.subr.mxu0 0.0
        %850 = vmatpush1.msra.mxu0 0.0
        %851 = vmatprep.subr.mxu0 0.0
        %852 = vmatpush1.msra.mxu0 0.0
        %853 = vmatprep.subr.mxu0 0.0
        %854 = vmatpush1.msra.mxu0 0.0
        %855 = vmatprep.subr.mxu0 0.0
        %856 = vmatpush1.msra.mxu0 0.0
        %857 = vmatprep.subr.mxu0 0.0
        %858 = vmatpush1.msra.mxu0 0.0
        %859 = vmatprep.subr.mxu0 0.0
        %860 = vmatpush1.msra.mxu0 0.0
        %861 = vmatprep.subr.mxu0 0.0
        %862 = vmatpush1.msra.mxu0 0.0
        %863 = vmatprep.subr.mxu0 0.0
        %864 = vmatpush1.msra.mxu0 0.0
        %865 = vmatprep.subr.mxu0 0.0
        %866 = vmatpush1.msra.mxu0 0.0
        %867 = vmatprep.subr.mxu0 0.0
        %868 = vmatpush1.msra.mxu0 0.0
        %869 = vmatprep.subr.mxu0 0.0
        %870 = vmatpush1.msra.mxu0 %v450
        %871 = vmatprep.subr.mxu0 0.0
        %872 = vmatpush2.msra.mxu0 0.0
        %873 = vmatprep.subr.mxu0 0.0
        %874 = vmatpush2.msra.mxu0 0.0
        %875 = vmatprep.subr.mxu0 0.0
        %876 = vmatpush2.msra.mxu0 0.0
        %877 = vmatprep.subr.mxu0 0.0
        %878 = vmatpush2.msra.mxu0 0.0
        %879 = vmatprep.subr.mxu0 0.0
        %880 = vmatpush2.msra.mxu0 0.0
        %881 = vmatprep.subr.mxu0 0.0
        %882 = vmatpush2.msra.mxu0 0.0
        %883 = vmatprep.subr.mxu0 0.0
        %884 = vmatpush2.msra.mxu0 0.0
        %885 = vmatprep.subr.mxu0 0.0
        %886 = vmatpush2.msra.mxu0 0.0
        %887 = vmatprep.subr.mxu0 0.0
        %888 = vmatpush2.msra.mxu0 0.0
        %889 = vmatprep.subr.mxu0 0.0
        %890 = vmatpush2.msra.mxu0 0.0
        %891 = vmatprep.subr.mxu0 0.0
        %892 = vmatpush2.msra.mxu0 0.0
        %893 = vmatprep.subr.mxu0 0.0
        %894 = vmatpush2.msra.mxu0 0.0
        %895 = vmatprep.subr.mxu0 0.0
        %896 = vmatpush2.msra.mxu0 0.0
        %897 = vmatprep.subr.mxu0 0.0
        %898 = vmatpush2.msra.mxu0 0.0
        %899 = vmatprep.subr.mxu0 0.0
        %900 = vmatpush2.msra.mxu0 0.0
        %901 = vmatprep.subr.mxu0 0.0
        %902 = vmatpush2.msra.mxu0 0.0
        %903 = vmatprep.mubr.f32.mxu0 0.0
        %904 = vmatmul.mubr.f32.gmra.mxu0 %v837
        %v905 = vpop.f32.mrf.mxu0
        %v906 = vadd.f32 %v832, %v905
        %v907 = vpop.f32.mrf.mxu0
        %908 = vdwg.mxu0
        %909 = vrot.lane.b32.xlu0 %v467, 120
        %v910 = vpop.permute.xlu0 %909
        %v911 = vsel %vm468, %v910, 0
        %913 = vmatprep.subr.mxu0 0.0
        %914 = vmatpush1.msra.mxu0 0.0
        %915 = vmatprep.subr.mxu0 0.0
        %916 = vmatpush1.msra.mxu0 0.0
        %917 = vmatprep.subr.mxu0 0.0
        %918 = vmatpush1.msra.mxu0 0.0
        %919 = vmatprep.subr.mxu0 0.0
        %920 = vmatpush1.msra.mxu0 0.0
        %921 = vmatprep.subr.mxu0 0.0
        %922 = vmatpush1.msra.mxu0 0.0
        %923 = vmatprep.subr.mxu0 0.0
        %924 = vmatpush1.msra.mxu0 0.0
        %925 = vmatprep.subr.mxu0 0.0
        %926 = vmatpush1.msra.mxu0 0.0
        %927 = vmatprep.subr.mxu0 0.0
        %928 = vmatpush1.msra.mxu0 0.0
        %929 = vmatprep.subr.mxu0 0.0
        %930 = vmatpush1.msra.mxu0 0.0
        %931 = vmatprep.subr.mxu0 0.0
        %932 = vmatpush1.msra.mxu0 0.0
        %933 = vmatprep.subr.mxu0 0.0
        %934 = vmatpush1.msra.mxu0 0.0
        %935 = vmatprep.subr.mxu0 0.0
        %936 = vmatpush1.msra.mxu0 0.0
        %937 = vmatprep.subr.mxu0 0.0
        %938 = vmatpush1.msra.mxu0 0.0
        %939 = vmatprep.subr.mxu0 0.0
        %940 = vmatpush1.msra.mxu0 0.0
        %941 = vmatprep.subr.mxu0 0.0
        %942 = vmatpush1.msra.mxu0 0.0
        %943 = vmatprep.subr.mxu0 0.0
        %944 = vmatpush1.msra.mxu0 %v451
        %945 = vmatprep.subr.mxu0 0.0
        %946 = vmatpush2.msra.mxu0 0.0
        %947 = vmatprep.subr.mxu0 0.0
        %948 = vmatpush2.msra.mxu0 0.0
        %949 = vmatprep.subr.mxu0 0.0
        %950 = vmatpush2.msra.mxu0 0.0
        %951 = vmatprep.subr.mxu0 0.0
        %952 = vmatpush2.msra.mxu0 0.0
        %953 = vmatprep.subr.mxu0 0.0
        %954 = vmatpush2.msra.mxu0 0.0
        %955 = vmatprep.subr.mxu0 0.0
        %956 = vmatpush2.msra.mxu0 0.0
        %957 = vmatprep.subr.mxu0 0.0
        %958 = vmatpush2.msra.mxu0 0.0
        %959 = vmatprep.subr.mxu0 0.0
        %960 = vmatpush2.msra.mxu0 0.0
        %961 = vmatprep.subr.mxu0 0.0
        %962 = vmatpush2.msra.mxu0 0.0
        %963 = vmatprep.subr.mxu0 0.0
        %964 = vmatpush2.msra.mxu0 0.0
        %965 = vmatprep.subr.mxu0 0.0
        %966 = vmatpush2.msra.mxu0 0.0
        %967 = vmatprep.subr.mxu0 0.0
        %968 = vmatpush2.msra.mxu0 0.0
        %969 = vmatprep.subr.mxu0 0.0
        %970 = vmatpush2.msra.mxu0 0.0
        %971 = vmatprep.subr.mxu0 0.0
        %972 = vmatpush2.msra.mxu0 0.0
        %973 = vmatprep.subr.mxu0 0.0
        %974 = vmatpush2.msra.mxu0 0.0
        %975 = vmatprep.subr.mxu0 0.0
        %976 = vmatpush2.msra.mxu0 0.0
        %977 = vmatprep.mubr.f32.mxu0 0.0
        %978 = vmatmul.mubr.f32.gmra.mxu0 %v911
        %v979 = vpop.f32.mrf.mxu0
        %v980 = vadd.f32 0.0, %v979
        %v981 = vpop.f32.mrf.mxu0
        %982 = vdwg.mxu0
        %983 = vrot.lane.b32.xlu0 %v466, 120
        %v984 = vpop.permute.xlu0 %983
        %v985 = vsel %vm468, %v984, 0
        %987 = vmatprep.subr.mxu0 0.0
        %988 = vmatpush1.msra.mxu0 0.0
        %989 = vmatprep.subr.mxu0 0.0
        %990 = vmatpush1.msra.mxu0 0.0
        %991 = vmatprep.subr.mxu0 0.0
        %992 = vmatpush1.msra.mxu0 0.0
        %993 = vmatprep.subr.mxu0 0.0
        %994 = vmatpush1.msra.mxu0 0.0
        %995 = vmatprep.subr.mxu0 0.0
        %996 = vmatpush1.msra.mxu0 0.0
        %997 = vmatprep.subr.mxu0 0.0
        %998 = vmatpush1.msra.mxu0 0.0
        %999 = vmatprep.subr.mxu0 0.0
        %1000 = vmatpush1.msra.mxu0 0.0
        %1001 = vmatprep.subr.mxu0 0.0
        %1002 = vmatpush1.msra.mxu0 0.0
        %1003 = vmatprep.subr.mxu0 0.0
        %1004 = vmatpush1.msra.mxu0 0.0
        %1005 = vmatprep.subr.mxu0 0.0
        %1006 = vmatpush1.msra.mxu0 0.0
        %1007 = vmatprep.subr.mxu0 0.0
        %1008 = vmatpush1.msra.mxu0 0.0
        %1009 = vmatprep.subr.mxu0 0.0
        %1010 = vmatpush1.msra.mxu0 0.0
        %1011 = vmatprep.subr.mxu0 0.0
        %1012 = vmatpush1.msra.mxu0 0.0
        %1013 = vmatprep.subr.mxu0 0.0
        %1014 = vmatpush1.msra.mxu0 0.0
        %1015 = vmatprep.subr.mxu0 0.0
        %1016 = vmatpush1.msra.mxu0 0.0
        %1017 = vmatprep.subr.mxu0 0.0
        %1018 = vmatpush1.msra.mxu0 %v450
        %1019 = vmatprep.subr.mxu0 0.0
        %1020 = vmatpush2.msra.mxu0 0.0
        %1021 = vmatprep.subr.mxu0 0.0
        %1022 = vmatpush2.msra.mxu0 0.0
        %1023 = vmatprep.subr.mxu0 0.0
        %1024 = vmatpush2.msra.mxu0 0.0
        %1025 = vmatprep.subr.mxu0 0.0
        %1026 = vmatpush2.msra.mxu0 0.0
        %1027 = vmatprep.subr.mxu0 0.0
        %1028 = vmatpush2.msra.mxu0 0.0
        %1029 = vmatprep.subr.mxu0 0.0
        %1030 = vmatpush2.msra.mxu0 0.0
        %1031 = vmatprep.subr.mxu0 0.0
        %1032 = vmatpush2.msra.mxu0 0.0
        %1033 = vmatprep.subr.mxu0 0.0
        %1034 = vmatpush2.msra.mxu0 0.0
        %1035 = vmatprep.subr.mxu0 0.0
        %1036 = vmatpush2.msra.mxu0 0.0
        %1037 = vmatprep.subr.mxu0 0.0
        %1038 = vmatpush2.msra.mxu0 0.0
        %1039 = vmatprep.subr.mxu0 0.0
        %1040 = vmatpush2.msra.mxu0 0.0
        %1041 = vmatprep.subr.mxu0 0.0
        %1042 = vmatpush2.msra.mxu0 0.0
        %1043 = vmatprep.subr.mxu0 0.0
        %1044 = vmatpush2.msra.mxu0 0.0
        %1045 = vmatprep.subr.mxu0 0.0
        %1046 = vmatpush2.msra.mxu0 0.0
        %1047 = vmatprep.subr.mxu0 0.0
        %1048 = vmatpush2.msra.mxu0 0.0
        %1049 = vmatprep.subr.mxu0 0.0
        %1050 = vmatpush2.msra.mxu0 0.0
        %1051 = vmatprep.mubr.f32.mxu0 0.0
        %1052 = vmatmul.mubr.f32.gmra.mxu0 %v985
        %v1053 = vpop.f32.mrf.mxu0
        %v1054 = vadd.f32 %v980, %v1053
        %v1055 = vpop.f32.mrf.mxu0
        %1056 = vdwg.mxu0
        %1057 = vrot.lane.b32.xlu0 %v465, 112
        %v1058 = vpop.permute.xlu0 %1057
        %v1059 = vsel %vm468, %v1058, 0
        %1061 = vmatprep.subr.mxu0 0.0
        %1062 = vmatpush1.msra.mxu0 0.0
        %1063 = vmatprep.subr.mxu0 0.0
        %1064 = vmatpush1.msra.mxu0 0.0
        %1065 = vmatprep.subr.mxu0 0.0
        %1066 = vmatpush1.msra.mxu0 0.0
        %1067 = vmatprep.subr.mxu0 0.0
        %1068 = vmatpush1.msra.mxu0 0.0
        %1069 = vmatprep.subr.mxu0 0.0
        %1070 = vmatpush1.msra.mxu0 0.0
        %1071 = vmatprep.subr.mxu0 0.0
        %1072 = vmatpush1.msra.mxu0 0.0
        %1073 = vmatprep.subr.mxu0 0.0
        %1074 = vmatpush1.msra.mxu0 0.0
        %1075 = vmatprep.subr.mxu0 0.0
        %1076 = vmatpush1.msra.mxu0 0.0
        %1077 = vmatprep.subr.mxu0 0.0
        %1078 = vmatpush1.msra.mxu0 0.0
        %1079 = vmatprep.subr.mxu0 0.0
        %1080 = vmatpush1.msra.mxu0 0.0
        %1081 = vmatprep.subr.mxu0 0.0
        %1082 = vmatpush1.msra.mxu0 0.0
        %1083 = vmatprep.subr.mxu0 0.0
        %1084 = vmatpush1.msra.mxu0 0.0
        %1085 = vmatprep.subr.mxu0 0.0
        %1086 = vmatpush1.msra.mxu0 0.0
        %1087 = vmatprep.subr.mxu0 0.0
        %1088 = vmatpush1.msra.mxu0 0.0
        %1089 = vmatprep.subr.mxu0 0.0
        %1090 = vmatpush1.msra.mxu0 0.0
        %1091 = vmatprep.subr.mxu0 0.0
        %1092 = vmatpush1.msra.mxu0 %v451
        %1093 = vmatprep.subr.mxu0 0.0
        %1094 = vmatpush2.msra.mxu0 0.0
        %1095 = vmatprep.subr.mxu0 0.0
        %1096 = vmatpush2.msra.mxu0 0.0
        %1097 = vmatprep.subr.mxu0 0.0
        %1098 = vmatpush2.msra.mxu0 0.0
        %1099 = vmatprep.subr.mxu0 0.0
        %1100 = vmatpush2.msra.mxu0 0.0
        %1101 = vmatprep.subr.mxu0 0.0
        %1102 = vmatpush2.msra.mxu0 0.0
        %1103 = vmatprep.subr.mxu0 0.0
        %1104 = vmatpush2.msra.mxu0 0.0
        %1105 = vmatprep.subr.mxu0 0.0
        %1106 = vmatpush2.msra.mxu0 0.0
        %1107 = vmatprep.subr.mxu0 0.0
        %1108 = vmatpush2.msra.mxu0 0.0
        %1109 = vmatprep.subr.mxu0 0.0
        %1110 = vmatpush2.msra.mxu0 0.0
        %1111 = vmatprep.subr.mxu0 0.0
        %1112 = vmatpush2.msra.mxu0 0.0
        %1113 = vmatprep.subr.mxu0 0.0
        %1114 = vmatpush2.msra.mxu0 0.0
        %1115 = vmatprep.subr.mxu0 0.0
        %1116 = vmatpush2.msra.mxu0 0.0
        %1117 = vmatprep.subr.mxu0 0.0
        %1118 = vmatpush2.msra.mxu0 0.0
        %1119 = vmatprep.subr.mxu0 0.0
        %1120 = vmatpush2.msra.mxu0 0.0
        %1121 = vmatprep.subr.mxu0 0.0
        %1122 = vmatpush2.msra.mxu0 0.0
        %1123 = vmatprep.subr.mxu0 0.0
        %1124 = vmatpush2.msra.mxu0 0.0
        %1125 = vmatprep.mubr.f32.mxu0 0.0
        %1126 = vmatmul.mubr.f32.gmra.mxu0 %v1059
        %v1127 = vpop.f32.mrf.mxu0
        %v1128 = vadd.f32 0.0, %v1127
        %v1129 = vpop.f32.mrf.mxu0
        %1130 = vdwg.mxu0
        %1131 = vrot.lane.b32.xlu0 %v464, 112
        %v1132 = vpop.permute.xlu0 %1131
        %v1133 = vsel %vm468, %v1132, 0
        %1135 = vmatprep.subr.mxu0 0.0
        %1136 = vmatpush1.msra.mxu0 0.0
        %1137 = vmatprep.subr.mxu0 0.0
        %1138 = vmatpush1.msra.mxu0 0.0
        %1139 = vmatprep.subr.mxu0 0.0
        %1140 = vmatpush1.msra.mxu0 0.0
        %1141 = vmatprep.subr.mxu0 0.0
        %1142 = vmatpush1.msra.mxu0 0.0
        %1143 = vmatprep.subr.mxu0 0.0
        %1144 = vmatpush1.msra.mxu0 0.0
        %1145 = vmatprep.subr.mxu0 0.0
        %1146 = vmatpush1.msra.mxu0 0.0
        %1147 = vmatprep.subr.mxu0 0.0
        %1148 = vmatpush1.msra.mxu0 0.0
        %1149 = vmatprep.subr.mxu0 0.0
        %1150 = vmatpush1.msra.mxu0 0.0
        %1151 = vmatprep.subr.mxu0 0.0
        %1152 = vmatpush1.msra.mxu0 0.0
        %1153 = vmatprep.subr.mxu0 0.0
        %1154 = vmatpush1.msra.mxu0 0.0
        %1155 = vmatprep.subr.mxu0 0.0
        %1156 = vmatpush1.msra.mxu0 0.0
        %1157 = vmatprep.subr.mxu0 0.0
        %1158 = vmatpush1.msra.mxu0 0.0
        %1159 = vmatprep.subr.mxu0 0.0
        %1160 = vmatpush1.msra.mxu0 0.0
        %1161 = vmatprep.subr.mxu0 0.0
        %1162 = vmatpush1.msra.mxu0 0.0
        %1163 = vmatprep.subr.mxu0 0.0
        %1164 = vmatpush1.msra.mxu0 0.0
        %1165 = vmatprep.subr.mxu0 0.0
        %1166 = vmatpush1.msra.mxu0 %v450
        %1167 = vmatprep.subr.mxu0 0.0
        %1168 = vmatpush2.msra.mxu0 0.0
        %1169 = vmatprep.subr.mxu0 0.0
        %1170 = vmatpush2.msra.mxu0 0.0
        %1171 = vmatprep.subr.mxu0 0.0
        %1172 = vmatpush2.msra.mxu0 0.0
        %1173 = vmatprep.subr.mxu0 0.0
        %1174 = vmatpush2.msra.mxu0 0.0
        %1175 = vmatprep.subr.mxu0 0.0
        %1176 = vmatpush2.msra.mxu0 0.0
        %1177 = vmatprep.subr.mxu0 0.0
        %1178 = vmatpush2.msra.mxu0 0.0
        %1179 = vmatprep.subr.mxu0 0.0
        %1180 = vmatpush2.msra.mxu0 0.0
        %1181 = vmatprep.subr.mxu0 0.0
        %1182 = vmatpush2.msra.mxu0 0.0
        %1183 = vmatprep.subr.mxu0 0.0
        %1184 = vmatpush2.msra.mxu0 0.0
        %1185 = vmatprep.subr.mxu0 0.0
        %1186 = vmatpush2.msra.mxu0 0.0
        %1187 = vmatprep.subr.mxu0 0.0
        %1188 = vmatpush2.msra.mxu0 0.0
        %1189 = vmatprep.subr.mxu0 0.0
        %1190 = vmatpush2.msra.mxu0 0.0
        %1191 = vmatprep.subr.mxu0 0.0
        %1192 = vmatpush2.msra.mxu0 0.0
        %1193 = vmatprep.subr.mxu0 0.0
        %1194 = vmatpush2.msra.mxu0 0.0
        %1195 = vmatprep.subr.mxu0 0.0
        %1196 = vmatpush2.msra.mxu0 0.0
        %1197 = vmatprep.subr.mxu0 0.0
        %1198 = vmatpush2.msra.mxu0 0.0
        %1199 = vmatprep.mubr.f32.mxu0 0.0
        %1200 = vmatmul.mubr.f32.gmra.mxu0 %v1133
        %v1201 = vpop.f32.mrf.mxu0
        %v1202 = vadd.f32 %v1128, %v1201
        %v1203 = vpop.f32.mrf.mxu0
        %1204 = vdwg.mxu0
        %1205 = vrot.lane.b32.xlu0 %v467, 112
        %v1206 = vpop.permute.xlu0 %1205
        %v1207 = vsel %vm468, %v1206, 0
        %1209 = vmatprep.subr.mxu0 0.0
        %1210 = vmatpush1.msra.mxu0 0.0
        %1211 = vmatprep.subr.mxu0 0.0
        %1212 = vmatpush1.msra.mxu0 0.0
        %1213 = vmatprep.subr.mxu0 0.0
        %1214 = vmatpush1.msra.mxu0 0.0
        %1215 = vmatprep.subr.mxu0 0.0
        %1216 = vmatpush1.msra.mxu0 0.0
        %1217 = vmatprep.subr.mxu0 0.0
        %1218 = vmatpush1.msra.mxu0 0.0
        %1219 = vmatprep.subr.mxu0 0.0
        %1220 = vmatpush1.msra.mxu0 0.0
        %1221 = vmatprep.subr.mxu0 0.0
        %1222 = vmatpush1.msra.mxu0 0.0
        %1223 = vmatprep.subr.mxu0 0.0
        %1224 = vmatpush1.msra.mxu0 0.0
        %1225 = vmatprep.subr.mxu0 0.0
        %1226 = vmatpush1.msra.mxu0 0.0
        %1227 = vmatprep.subr.mxu0 0.0
        %1228 = vmatpush1.msra.mxu0 0.0
        %1229 = vmatprep.subr.mxu0 0.0
        %1230 = vmatpush1.msra.mxu0 0.0
        %1231 = vmatprep.subr.mxu0 0.0
        %1232 = vmatpush1.msra.mxu0 0.0
        %1233 = vmatprep.subr.mxu0 0.0
        %1234 = vmatpush1.msra.mxu0 0.0
        %1235 = vmatprep.subr.mxu0 0.0
        %1236 = vmatpush1.msra.mxu0 0.0
        %1237 = vmatprep.subr.mxu0 0.0
        %1238 = vmatpush1.msra.mxu0 0.0
        %1239 = vmatprep.subr.mxu0 0.0
        %1240 = vmatpush1.msra.mxu0 %v451
        %1241 = vmatprep.subr.mxu0 0.0
        %1242 = vmatpush2.msra.mxu0 0.0
        %1243 = vmatprep.subr.mxu0 0.0
        %1244 = vmatpush2.msra.mxu0 0.0
        %1245 = vmatprep.subr.mxu0 0.0
        %1246 = vmatpush2.msra.mxu0 0.0
        %1247 = vmatprep.subr.mxu0 0.0
        %1248 = vmatpush2.msra.mxu0 0.0
        %1249 = vmatprep.subr.mxu0 0.0
        %1250 = vmatpush2.msra.mxu0 0.0
        %1251 = vmatprep.subr.mxu0 0.0
        %1252 = vmatpush2.msra.mxu0 0.0
        %1253 = vmatprep.subr.mxu0 0.0
        %1254 = vmatpush2.msra.mxu0 0.0
        %1255 = vmatprep.subr.mxu0 0.0
        %1256 = vmatpush2.msra.mxu0 0.0
        %1257 = vmatprep.subr.mxu0 0.0
        %1258 = vmatpush2.msra.mxu0 0.0
        %1259 = vmatprep.subr.mxu0 0.0
        %1260 = vmatpush2.msra.mxu0 0.0
        %1261 = vmatprep.subr.mxu0 0.0
        %1262 = vmatpush2.msra.mxu0 0.0
        %1263 = vmatprep.subr.mxu0 0.0
        %1264 = vmatpush2.msra.mxu0 0.0
        %1265 = vmatprep.subr.mxu0 0.0
        %1266 = vmatpush2.msra.mxu0 0.0
        %1267 = vmatprep.subr.mxu0 0.0
        %1268 = vmatpush2.msra.mxu0 0.0
        %1269 = vmatprep.subr.mxu0 0.0
        %1270 = vmatpush2.msra.mxu0 0.0
        %1271 = vmatprep.subr.mxu0 0.0
        %1272 = vmatpush2.msra.mxu0 0.0
        %1273 = vmatprep.mubr.f32.mxu0 0.0
        %1274 = vmatmul.mubr.f32.gmra.mxu0 %v1207
        %v1275 = vpop.f32.mrf.mxu0
        %v1276 = vadd.f32 0.0, %v1275
        %v1277 = vpop.f32.mrf.mxu0
        %1278 = vdwg.mxu0
        %1279 = vrot.lane.b32.xlu0 %v466, 112
        %v1280 = vpop.permute.xlu0 %1279
        %v1281 = vsel %vm468, %v1280, 0
        %1283 = vmatprep.subr.mxu0 0.0
        %1284 = vmatpush1.msra.mxu0 0.0
        %1285 = vmatprep.subr.mxu0 0.0
        %1286 = vmatpush1.msra.mxu0 0.0
        %1287 = vmatprep.subr.mxu0 0.0
        %1288 = vmatpush1.msra.mxu0 0.0
        %1289 = vmatprep.subr.mxu0 0.0
        %1290 = vmatpush1.msra.mxu0 0.0
        %1291 = vmatprep.subr.mxu0 0.0
        %1292 = vmatpush1.msra.mxu0 0.0
        %1293 = vmatprep.subr.mxu0 0.0
        %1294 = vmatpush1.msra.mxu0 0.0
        %1295 = vmatprep.subr.mxu0 0.0
        %1296 = vmatpush1.msra.mxu0 0.0
        %1297 = vmatprep.subr.mxu0 0.0
        %1298 = vmatpush1.msra.mxu0 0.0
        %1299 = vmatprep.subr.mxu0 0.0
        %1300 = vmatpush1.msra.mxu0 0.0
        %1301 = vmatprep.subr.mxu0 0.0
        %1302 = vmatpush1.msra.mxu0 0.0
        %1303 = vmatprep.subr.mxu0 0.0
        %1304 = vmatpush1.msra.mxu0 0.0
        %1305 = vmatprep.subr.mxu0 0.0
        %1306 = vmatpush1.msra.mxu0 0.0
        %1307 = vmatprep.subr.mxu0 0.0
        %1308 = vmatpush1.msra.mxu0 0.0
        %1309 = vmatprep.subr.mxu0 0.0
        %1310 = vmatpush1.msra.mxu0 0.0
        %1311 = vmatprep.subr.mxu0 0.0
        %1312 = vmatpush1.msra.mxu0 0.0
        %1313 = vmatprep.subr.mxu0 0.0
        %1314 = vmatpush1.msra.mxu0 %v450
        %1315 = vmatprep.subr.mxu0 0.0
        %1316 = vmatpush2.msra.mxu0 0.0
        %1317 = vmatprep.subr.mxu0 0.0
        %1318 = vmatpush2.msra.mxu0 0.0
        %1319 = vmatprep.subr.mxu0 0.0
        %1320 = vmatpush2.msra.mxu0 0.0
        %1321 = vmatprep.subr.mxu0 0.0
        %1322 = vmatpush2.msra.mxu0 0.0
        %1323 = vmatprep.subr.mxu0 0.0
        %1324 = vmatpush2.msra.mxu0 0.0
        %1325 = vmatprep.subr.mxu0 0.0
        %1326 = vmatpush2.msra.mxu0 0.0
        %1327 = vmatprep.subr.mxu0 0.0
        %1328 = vmatpush2.msra.mxu0 0.0
        %1329 = vmatprep.subr.mxu0 0.0
        %1330 = vmatpush2.msra.mxu0 0.0
        %1331 = vmatprep.subr.mxu0 0.0
        %1332 = vmatpush2.msra.mxu0 0.0
        %1333 = vmatprep.subr.mxu0 0.0
        %1334 = vmatpush2.msra.mxu0 0.0
        %1335 = vmatprep.subr.mxu0 0.0
        %1336 = vmatpush2.msra.mxu0 0.0
        %1337 = vmatprep.subr.mxu0 0.0
        %1338 = vmatpush2.msra.mxu0 0.0
        %1339 = vmatprep.subr.mxu0 0.0
        %1340 = vmatpush2.msra.mxu0 0.0
        %1341 = vmatprep.subr.mxu0 0.0
        %1342 = vmatpush2.msra.mxu0 0.0
        %1343 = vmatprep.subr.mxu0 0.0
        %1344 = vmatpush2.msra.mxu0 0.0
        %1345 = vmatprep.subr.mxu0 0.0
        %1346 = vmatpush2.msra.mxu0 0.0
        %1347 = vmatprep.mubr.f32.mxu0 0.0
        %1348 = vmatmul.mubr.f32.gmra.mxu0 %v1281
        %v1349 = vpop.f32.mrf.mxu0
        %v1350 = vadd.f32 %v1276, %v1349
        %v1351 = vpop.f32.mrf.mxu0
        %1352 = vdwg.mxu0
        %1353 = vrot.lane.b32.xlu0 %v465, 104
        %v1354 = vpop.permute.xlu0 %1353
        %v1355 = vsel %vm468, %v1354, 0
        %1357 = vmatprep.subr.mxu0 0.0
        %1358 = vmatpush1.msra.mxu0 0.0
        %1359 = vmatprep.subr.mxu0 0.0
        %1360 = vmatpush1.msra.mxu0 0.0
        %1361 = vmatprep.subr.mxu0 0.0
        %1362 = vmatpush1.msra.mxu0 0.0
        %1363 = vmatprep.subr.mxu0 0.0
        %1364 = vmatpush1.msra.mxu0 0.0
        %1365 = vmatprep.subr.mxu0 0.0
        %1366 = vmatpush1.msra.mxu0 0.0
        %1367 = vmatprep.subr.mxu0 0.0
        %1368 = vmatpush1.msra.mxu0 0.0
        %1369 = vmatprep.subr.mxu0 0.0
        %1370 = vmatpush1.msra.mxu0 0.0
        %1371 = vmatprep.subr.mxu0 0.0
        %1372 = vmatpush1.msra.mxu0 0.0
        %1373 = vmatprep.subr.mxu0 0.0
        %1374 = vmatpush1.msra.mxu0 0.0
        %1375 = vmatprep.subr.mxu0 0.0
        %1376 = vmatpush1.msra.mxu0 0.0
        %1377 = vmatprep.subr.mxu0 0.0
        %1378 = vmatpush1.msra.mxu0 0.0
        %1379 = vmatprep.subr.mxu0 0.0
        %1380 = vmatpush1.msra.mxu0 0.0
        %1381 = vmatprep.subr.mxu0 0.0
        %1382 = vmatpush1.msra.mxu0 0.0
        %1383 = vmatprep.subr.mxu0 0.0
        %1384 = vmatpush1.msra.mxu0 0.0
        %1385 = vmatprep.subr.mxu0 0.0
        %1386 = vmatpush1.msra.mxu0 0.0
        %1387 = vmatprep.subr.mxu0 0.0
        %1388 = vmatpush1.msra.mxu0 %v451
        %1389 = vmatprep.subr.mxu0 0.0
        %1390 = vmatpush2.msra.mxu0 0.0
        %1391 = vmatprep.subr.mxu0 0.0
        %1392 = vmatpush2.msra.mxu0 0.0
        %1393 = vmatprep.subr.mxu0 0.0
        %1394 = vmatpush2.msra.mxu0 0.0
        %1395 = vmatprep.subr.mxu0 0.0
        %1396 = vmatpush2.msra.mxu0 0.0
        %1397 = vmatprep.subr.mxu0 0.0
        %1398 = vmatpush2.msra.mxu0 0.0
        %1399 = vmatprep.subr.mxu0 0.0
        %1400 = vmatpush2.msra.mxu0 0.0
        %1401 = vmatprep.subr.mxu0 0.0
        %1402 = vmatpush2.msra.mxu0 0.0
        %1403 = vmatprep.subr.mxu0 0.0
        %1404 = vmatpush2.msra.mxu0 0.0
        %1405 = vmatprep.subr.mxu0 0.0
        %1406 = vmatpush2.msra.mxu0 0.0
        %1407 = vmatprep.subr.mxu0 0.0
        %1408 = vmatpush2.msra.mxu0 0.0
        %1409 = vmatprep.subr.mxu0 0.0
        %1410 = vmatpush2.msra.mxu0 0.0
        %1411 = vmatprep.subr.mxu0 0.0
        %1412 = vmatpush2.msra.mxu0 0.0
        %1413 = vmatprep.subr.mxu0 0.0
        %1414 = vmatpush2.msra.mxu0 0.0
        %1415 = vmatprep.subr.mxu0 0.0
        %1416 = vmatpush2.msra.mxu0 0.0
        %1417 = vmatprep.subr.mxu0 0.0
        %1418 = vmatpush2.msra.mxu0 0.0
        %1419 = vmatprep.subr.mxu0 0.0
        %1420 = vmatpush2.msra.mxu0 0.0
        %1421 = vmatprep.mubr.f32.mxu0 0.0
        %1422 = vmatmul.mubr.f32.gmra.mxu0 %v1355
        %v1423 = vpop.f32.mrf.mxu0
        %v1424 = vadd.f32 0.0, %v1423
        %v1425 = vpop.f32.mrf.mxu0
        %1426 = vdwg.mxu0
        %1427 = vrot.lane.b32.xlu0 %v464, 104
        %v1428 = vpop.permute.xlu0 %1427
        %v1429 = vsel %vm468, %v1428, 0
        %1431 = vmatprep.subr.mxu0 0.0
        %1432 = vmatpush1.msra.mxu0 0.0
        %1433 = vmatprep.subr.mxu0 0.0
        %1434 = vmatpush1.msra.mxu0 0.0
        %1435 = vmatprep.subr.mxu0 0.0
        %1436 = vmatpush1.msra.mxu0 0.0
        %1437 = vmatprep.subr.mxu0 0.0
        %1438 = vmatpush1.msra.mxu0 0.0
        %1439 = vmatprep.subr.mxu0 0.0
        %1440 = vmatpush1.msra.mxu0 0.0
        %1441 = vmatprep.subr.mxu0 0.0
        %1442 = vmatpush1.msra.mxu0 0.0
        %1443 = vmatprep.subr.mxu0 0.0
        %1444 = vmatpush1.msra.mxu0 0.0
        %1445 = vmatprep.subr.mxu0 0.0
        %1446 = vmatpush1.msra.mxu0 0.0
        %1447 = vmatprep.subr.mxu0 0.0
        %1448 = vmatpush1.msra.mxu0 0.0
        %1449 = vmatprep.subr.mxu0 0.0
        %1450 = vmatpush1.msra.mxu0 0.0
        %1451 = vmatprep.subr.mxu0 0.0
        %1452 = vmatpush1.msra.mxu0 0.0
        %1453 = vmatprep.subr.mxu0 0.0
        %1454 = vmatpush1.msra.mxu0 0.0
        %1455 = vmatprep.subr.mxu0 0.0
        %1456 = vmatpush1.msra.mxu0 0.0
        %1457 = vmatprep.subr.mxu0 0.0
        %1458 = vmatpush1.msra.mxu0 0.0
        %1459 = vmatprep.subr.mxu0 0.0
        %1460 = vmatpush1.msra.mxu0 0.0
        %1461 = vmatprep.subr.mxu0 0.0
        %1462 = vmatpush1.msra.mxu0 %v450
        %1463 = vmatprep.subr.mxu0 0.0
        %1464 = vmatpush2.msra.mxu0 0.0
        %1465 = vmatprep.subr.mxu0 0.0
        %1466 = vmatpush2.msra.mxu0 0.0
        %1467 = vmatprep.subr.mxu0 0.0
        %1468 = vmatpush2.msra.mxu0 0.0
        %1469 = vmatprep.subr.mxu0 0.0
        %1470 = vmatpush2.msra.mxu0 0.0
        %1471 = vmatprep.subr.mxu0 0.0
        %1472 = vmatpush2.msra.mxu0 0.0
        %1473 = vmatprep.subr.mxu0 0.0
        %1474 = vmatpush2.msra.mxu0 0.0
        %1475 = vmatprep.subr.mxu0 0.0
        %1476 = vmatpush2.msra.mxu0 0.0
        %1477 = vmatprep.subr.mxu0 0.0
        %1478 = vmatpush2.msra.mxu0 0.0
        %1479 = vmatprep.subr.mxu0 0.0
        %1480 = vmatpush2.msra.mxu0 0.0
        %1481 = vmatprep.subr.mxu0 0.0
        %1482 = vmatpush2.msra.mxu0 0.0
        %1483 = vmatprep.subr.mxu0 0.0
        %1484 = vmatpush2.msra.mxu0 0.0
        %1485 = vmatprep.subr.mxu0 0.0
        %1486 = vmatpush2.msra.mxu0 0.0
        %1487 = vmatprep.subr.mxu0 0.0
        %1488 = vmatpush2.msra.mxu0 0.0
        %1489 = vmatprep.subr.mxu0 0.0
        %1490 = vmatpush2.msra.mxu0 0.0
        %1491 = vmatprep.subr.mxu0 0.0
        %1492 = vmatpush2.msra.mxu0 0.0
        %1493 = vmatprep.subr.mxu0 0.0
        %1494 = vmatpush2.msra.mxu0 0.0
        %1495 = vmatprep.mubr.f32.mxu0 0.0
        %1496 = vmatmul.mubr.f32.gmra.mxu0 %v1429
        %v1497 = vpop.f32.mrf.mxu0
        %v1498 = vadd.f32 %v1424, %v1497
        %v1499 = vpop.f32.mrf.mxu0
        %1500 = vdwg.mxu0
        %1501 = vrot.lane.b32.xlu0 %v467, 104
        %v1502 = vpop.permute.xlu0 %1501
        %v1503 = vsel %vm468, %v1502, 0
        %1505 = vmatprep.subr.mxu0 0.0
        %1506 = vmatpush1.msra.mxu0 0.0
        %1507 = vmatprep.subr.mxu0 0.0
        %1508 = vmatpush1.msra.mxu0 0.0
        %1509 = vmatprep.subr.mxu0 0.0
        %1510 = vmatpush1.msra.mxu0 0.0
        %1511 = vmatprep.subr.mxu0 0.0
        %1512 = vmatpush1.msra.mxu0 0.0
        %1513 = vmatprep.subr.mxu0 0.0
        %1514 = vmatpush1.msra.mxu0 0.0
        %1515 = vmatprep.subr.mxu0 0.0
        %1516 = vmatpush1.msra.mxu0 0.0
        %1517 = vmatprep.subr.mxu0 0.0
        %1518 = vmatpush1.msra.mxu0 0.0
        %1519 = vmatprep.subr.mxu0 0.0
        %1520 = vmatpush1.msra.mxu0 0.0
        %1521 = vmatprep.subr.mxu0 0.0
        %1522 = vmatpush1.msra.mxu0 0.0
        %1523 = vmatprep.subr.mxu0 0.0
        %1524 = vmatpush1.msra.mxu0 0.0
        %1525 = vmatprep.subr.mxu0 0.0
        %1526 = vmatpush1.msra.mxu0 0.0
        %1527 = vmatprep.subr.mxu0 0.0
        %1528 = vmatpush1.msra.mxu0 0.0
        %1529 = vmatprep.subr.mxu0 0.0
        %1530 = vmatpush1.msra.mxu0 0.0
        %1531 = vmatprep.subr.mxu0 0.0
        %1532 = vmatpush1.msra.mxu0 0.0
        %1533 = vmatprep.subr.mxu0 0.0
        %1534 = vmatpush1.msra.mxu0 0.0
        %1535 = vmatprep.subr.mxu0 0.0
        %1536 = vmatpush1.msra.mxu0 %v451
        %1537 = vmatprep.subr.mxu0 0.0
        %1538 = vmatpush2.msra.mxu0 0.0
        %1539 = vmatprep.subr.mxu0 0.0
        %1540 = vmatpush2.msra.mxu0 0.0
        %1541 = vmatprep.subr.mxu0 0.0
        %1542 = vmatpush2.msra.mxu0 0.0
        %1543 = vmatprep.subr.mxu0 0.0
        %1544 = vmatpush2.msra.mxu0 0.0
        %1545 = vmatprep.subr.mxu0 0.0
        %1546 = vmatpush2.msra.mxu0 0.0
        %1547 = vmatprep.subr.mxu0 0.0
        %1548 = vmatpush2.msra.mxu0 0.0
        %1549 = vmatprep.subr.mxu0 0.0
        %1550 = vmatpush2.msra.mxu0 0.0
        %1551 = vmatprep.subr.mxu0 0.0
        %1552 = vmatpush2.msra.mxu0 0.0
        %1553 = vmatprep.subr.mxu0 0.0
        %1554 = vmatpush2.msra.mxu0 0.0
        %1555 = vmatprep.subr.mxu0 0.0
        %1556 = vmatpush2.msra.mxu0 0.0
        %1557 = vmatprep.subr.mxu0 0.0
        %1558 = vmatpush2.msra.mxu0 0.0
        %1559 = vmatprep.subr.mxu0 0.0
        %1560 = vmatpush2.msra.mxu0 0.0
        %1561 = vmatprep.subr.mxu0 0.0
        %1562 = vmatpush2.msra.mxu0 0.0
        %1563 = vmatprep.subr.mxu0 0.0
        %1564 = vmatpush2.msra.mxu0 0.0
        %1565 = vmatprep.subr.mxu0 0.0
        %1566 = vmatpush2.msra.mxu0 0.0
        %1567 = vmatprep.subr.mxu0 0.0
        %1568 = vmatpush2.msra.mxu0 0.0
        %1569 = vmatprep.mubr.f32.mxu0 0.0
        %1570 = vmatmul.mubr.f32.gmra.mxu0 %v1503
        %v1571 = vpop.f32.mrf.mxu0
        %v1572 = vadd.f32 0.0, %v1571
        %v1573 = vpop.f32.mrf.mxu0
        %1574 = vdwg.mxu0
        %1575 = vrot.lane.b32.xlu0 %v466, 104
        %v1576 = vpop.permute.xlu0 %1575
        %v1577 = vsel %vm468, %v1576, 0
        %1579 = vmatprep.subr.mxu0 0.0
        %1580 = vmatpush1.msra.mxu0 0.0
        %1581 = vmatprep.subr.mxu0 0.0
        %1582 = vmatpush1.msra.mxu0 0.0
        %1583 = vmatprep.subr.mxu0 0.0
        %1584 = vmatpush1.msra.mxu0 0.0
        %1585 = vmatprep.subr.mxu0 0.0
        %1586 = vmatpush1.msra.mxu0 0.0
        %1587 = vmatprep.subr.mxu0 0.0
        %1588 = vmatpush1.msra.mxu0 0.0
        %1589 = vmatprep.subr.mxu0 0.0
        %1590 = vmatpush1.msra.mxu0 0.0
        %1591 = vmatprep.subr.mxu0 0.0
        %1592 = vmatpush1.msra.mxu0 0.0
        %1593 = vmatprep.subr.mxu0 0.0
        %1594 = vmatpush1.msra.mxu0 0.0
        %1595 = vmatprep.subr.mxu0 0.0
        %1596 = vmatpush1.msra.mxu0 0.0
        %1597 = vmatprep.subr.mxu0 0.0
        %1598 = vmatpush1.msra.mxu0 0.0
        %1599 = vmatprep.subr.mxu0 0.0
        %1600 = vmatpush1.msra.mxu0 0.0
        %1601 = vmatprep.subr.mxu0 0.0
        %1602 = vmatpush1.msra.mxu0 0.0
        %1603 = vmatprep.subr.mxu0 0.0
        %1604 = vmatpush1.msra.mxu0 0.0
        %1605 = vmatprep.subr.mxu0 0.0
        %1606 = vmatpush1.msra.mxu0 0.0
        %1607 = vmatprep.subr.mxu0 0.0
        %1608 = vmatpush1.msra.mxu0 0.0
        %1609 = vmatprep.subr.mxu0 0.0
        %1610 = vmatpush1.msra.mxu0 %v450
        %1611 = vmatprep.subr.mxu0 0.0
        %1612 = vmatpush2.msra.mxu0 0.0
        %1613 = vmatprep.subr.mxu0 0.0
        %1614 = vmatpush2.msra.mxu0 0.0
        %1615 = vmatprep.subr.mxu0 0.0
        %1616 = vmatpush2.msra.mxu0 0.0
        %1617 = vmatprep.subr.mxu0 0.0
        %1618 = vmatpush2.msra.mxu0 0.0
        %1619 = vmatprep.subr.mxu0 0.0
        %1620 = vmatpush2.msra.mxu0 0.0
        %1621 = vmatprep.subr.mxu0 0.0
        %1622 = vmatpush2.msra.mxu0 0.0
        %1623 = vmatprep.subr.mxu0 0.0
        %1624 = vmatpush2.msra.mxu0 0.0
        %1625 = vmatprep.subr.mxu0 0.0
        %1626 = vmatpush2.msra.mxu0 0.0
        %1627 = vmatprep.subr.mxu0 0.0
        %1628 = vmatpush2.msra.mxu0 0.0
        %1629 = vmatprep.subr.mxu0 0.0
        %1630 = vmatpush2.msra.mxu0 0.0
        %1631 = vmatprep.subr.mxu0 0.0
        %1632 = vmatpush2.msra.mxu0 0.0
        %1633 = vmatprep.subr.mxu0 0.0
        %1634 = vmatpush2.msra.mxu0 0.0
        %1635 = vmatprep.subr.mxu0 0.0
        %1636 = vmatpush2.msra.mxu0 0.0
        %1637 = vmatprep.subr.mxu0 0.0
        %1638 = vmatpush2.msra.mxu0 0.0
        %1639 = vmatprep.subr.mxu0 0.0
        %1640 = vmatpush2.msra.mxu0 0.0
        %1641 = vmatprep.subr.mxu0 0.0
        %1642 = vmatpush2.msra.mxu0 0.0
        %1643 = vmatprep.mubr.f32.mxu0 0.0
        %1644 = vmatmul.mubr.f32.gmra.mxu0 %v1577
        %v1645 = vpop.f32.mrf.mxu0
        %v1646 = vadd.f32 %v1572, %v1645
        %v1647 = vpop.f32.mrf.mxu0
        %1648 = vdwg.mxu0
        %1650 = vrot.lane.b32.xlu0 %v758, 16
        %v1651 = vpop.permute.xlu0 %1650
        %1654 = vrot.lane.b32.xlu0 %v906, 32
        %v1655 = vpop.permute.xlu0 %1654
        %1658 = vrot.lane.b32.xlu0 %v1054, 48
        %v1659 = vpop.permute.xlu0 %1658
        %1662 = vrot.lane.b32.xlu0 %v1202, 64
        %v1663 = vpop.permute.xlu0 %1662
        %1666 = vrot.lane.b32.xlu0 %v1350, 80
        %v1667 = vpop.permute.xlu0 %1666
        %1670 = vrot.lane.b32.xlu0 %v1498, 96
        %v1671 = vpop.permute.xlu0 %1670
        %1674 = vrot.lane.b32.xlu0 %v1646, 112
        %v1675 = vpop.permute.xlu0 %1674
        %vm1677 = vcmask 130048
        %v1678 = vsel %vm1677, %v612, %v1651
        %vm1679 = vcmask 261120
        %v1680 = vsel %vm1679, %v1678, %v1655
        %vm1681 = vcmask 392192
        %v1682 = vsel %vm1681, %v1680, %v1659
        %vm1683 = vcmask 523264
        %v1684 = vsel %vm1683, %v1682, %v1663
        %vm1685 = vcmask 654336
        %v1686 = vsel %vm1685, %v1684, %v1667
        %vm1687 = vcmask 785408
        %v1688 = vsel %vm1687, %v1686, %v1671
        %vm1689 = vcmask 916480
        %v1690 = vsel %vm1689, %v1688, %v1675
        %1691 = vst [vmem:[%s449] sm:$0xf] %v1690
        %1692 = vrot.lane.b32.xlu0 %v465, 96
        %v1693 = vpop.permute.xlu0 %1692
        %v1694 = vsel %vm468, %v1693, 0
        %1696 = vmatprep.subr.mxu0 0.0
        %1697 = vmatpush1.msra.mxu0 0.0
        %1698 = vmatprep.subr.mxu0 0.0
        %1699 = vmatpush1.msra.mxu0 0.0
        %1700 = vmatprep.subr.mxu0 0.0
        %1701 = vmatpush1.msra.mxu0 0.0
        %1702 = vmatprep.subr.mxu0 0.0
        %1703 = vmatpush1.msra.mxu0 0.0
        %1704 = vmatprep.subr.mxu0 0.0
        %1705 = vmatpush1.msra.mxu0 0.0
        %1706 = vmatprep.subr.mxu0 0.0
        %1707 = vmatpush1.msra.mxu0 0.0
        %1708 = vmatprep.subr.mxu0 0.0
        %1709 = vmatpush1.msra.mxu0 0.0
        %1710 = vmatprep.subr.mxu0 0.0
        %1711 = vmatpush1.msra.mxu0 0.0
        %1712 = vmatprep.subr.mxu0 0.0
        %1713 = vmatpush1.msra.mxu0 0.0
        %1714 = vmatprep.subr.mxu0 0.0
        %1715 = vmatpush1.msra.mxu0 0.0
        %1716 = vmatprep.subr.mxu0 0.0
        %1717 = vmatpush1.msra.mxu0 0.0
        %1718 = vmatprep.subr.mxu0 0.0
        %1719 = vmatpush1.msra.mxu0 0.0
        %1720 = vmatprep.subr.mxu0 0.0
        %1721 = vmatpush1.msra.mxu0 0.0
        %1722 = vmatprep.subr.mxu0 0.0
        %1723 = vmatpush1.msra.mxu0 0.0
        %1724 = vmatprep.subr.mxu0 0.0
        %1725 = vmatpush1.msra.mxu0 0.0
        %1726 = vmatprep.subr.mxu0 0.0
        %1727 = vmatpush1.msra.mxu0 %v451
        %1728 = vmatprep.subr.mxu0 0.0
        %1729 = vmatpush2.msra.mxu0 0.0
        %1730 = vmatprep.subr.mxu0 0.0
        %1731 = vmatpush2.msra.mxu0 0.0
        %1732 = vmatprep.subr.mxu0 0.0
        %1733 = vmatpush2.msra.mxu0 0.0
        %1734 = vmatprep.subr.mxu0 0.0
        %1735 = vmatpush2.msra.mxu0 0.0
        %1736 = vmatprep.subr.mxu0 0.0
        %1737 = vmatpush2.msra.mxu0 0.0
        %1738 = vmatprep.subr.mxu0 0.0
        %1739 = vmatpush2.msra.mxu0 0.0
        %1740 = vmatprep.subr.mxu0 0.0
        %1741 = vmatpush2.msra.mxu0 0.0
        %1742 = vmatprep.subr.mxu0 0.0
        %1743 = vmatpush2.msra.mxu0 0.0
        %1744 = vmatprep.subr.mxu0 0.0
        %1745 = vmatpush2.msra.mxu0 0.0
        %1746 = vmatprep.subr.mxu0 0.0
        %1747 = vmatpush2.msra.mxu0 0.0
        %1748 = vmatprep.subr.mxu0 0.0
        %1749 = vmatpush2.msra.mxu0 0.0
        %1750 = vmatprep.subr.mxu0 0.0
        %1751 = vmatpush2.msra.mxu0 0.0
        %1752 = vmatprep.subr.mxu0 0.0
        %1753 = vmatpush2.msra.mxu0 0.0
        %1754 = vmatprep.subr.mxu0 0.0
        %1755 = vmatpush2.msra.mxu0 0.0
        %1756 = vmatprep.subr.mxu0 0.0
        %1757 = vmatpush2.msra.mxu0 0.0
        %1758 = vmatprep.subr.mxu0 0.0
        %1759 = vmatpush2.msra.mxu0 0.0
        %1760 = vmatprep.mubr.f32.mxu0 0.0
        %1761 = vmatmul.mubr.f32.gmra.mxu0 %v1694
        %v1762 = vpop.f32.mrf.mxu0
        %v1763 = vadd.f32 0.0, %v1762
        %v1764 = vpop.f32.mrf.mxu0
        %1765 = vdwg.mxu0
        %1766 = vrot.lane.b32.xlu0 %v464, 96
        %v1767 = vpop.permute.xlu0 %1766
        %v1768 = vsel %vm468, %v1767, 0
        %1770 = vmatprep.subr.mxu0 0.0
        %1771 = vmatpush1.msra.mxu0 0.0
        %1772 = vmatprep.subr.mxu0 0.0
        %1773 = vmatpush1.msra.mxu0 0.0
        %1774 = vmatprep.subr.mxu0 0.0
        %1775 = vmatpush1.msra.mxu0 0.0
        %1776 = vmatprep.subr.mxu0 0.0
        %1777 = vmatpush1.msra.mxu0 0.0
        %1778 = vmatprep.subr.mxu0 0.0
        %1779 = vmatpush1.msra.mxu0 0.0
        %1780 = vmatprep.subr.mxu0 0.0
        %1781 = vmatpush1.msra.mxu0 0.0
        %1782 = vmatprep.subr.mxu0 0.0
        %1783 = vmatpush1.msra.mxu0 0.0
        %1784 = vmatprep.subr.mxu0 0.0
        %1785 = vmatpush1.msra.mxu0 0.0
        %1786 = vmatprep.subr.mxu0 0.0
        %1787 = vmatpush1.msra.mxu0 0.0
        %1788 = vmatprep.subr.mxu0 0.0
        %1789 = vmatpush1.msra.mxu0 0.0
        %1790 = vmatprep.subr.mxu0 0.0
        %1791 = vmatpush1.msra.mxu0 0.0
        %1792 = vmatprep.subr.mxu0 0.0
        %1793 = vmatpush1.msra.mxu0 0.0
        %1794 = vmatprep.subr.mxu0 0.0
        %1795 = vmatpush1.msra.mxu0 0.0
        %1796 = vmatprep.subr.mxu0 0.0
        %1797 = vmatpush1.msra.mxu0 0.0
        %1798 = vmatprep.subr.mxu0 0.0
        %1799 = vmatpush1.msra.mxu0 0.0
        %1800 = vmatprep.subr.mxu0 0.0
        %1801 = vmatpush1.msra.mxu0 %v450
        %1802 = vmatprep.subr.mxu0 0.0
        %1803 = vmatpush2.msra.mxu0 0.0
        %1804 = vmatprep.subr.mxu0 0.0
        %1805 = vmatpush2.msra.mxu0 0.0
        %1806 = vmatprep.subr.mxu0 0.0
        %1807 = vmatpush2.msra.mxu0 0.0
        %1808 = vmatprep.subr.mxu0 0.0
        %1809 = vmatpush2.msra.mxu0 0.0
        %1810 = vmatprep.subr.mxu0 0.0
        %1811 = vmatpush2.msra.mxu0 0.0
        %1812 = vmatprep.subr.mxu0 0.0
        %1813 = vmatpush2.msra.mxu0 0.0
        %1814 = vmatprep.subr.mxu0 0.0
        %1815 = vmatpush2.msra.mxu0 0.0
        %1816 = vmatprep.subr.mxu0 0.0
        %1817 = vmatpush2.msra.mxu0 0.0
        %1818 = vmatprep.subr.mxu0 0.0
        %1819 = vmatpush2.msra.mxu0 0.0
        %1820 = vmatprep.subr.mxu0 0.0
        %1821 = vmatpush2.msra.mxu0 0.0
        %1822 = vmatprep.subr.mxu0 0.0
        %1823 = vmatpush2.msra.mxu0 0.0
        %1824 = vmatprep.subr.mxu0 0.0
        %1825 = vmatpush2.msra.mxu0 0.0
        %1826 = vmatprep.subr.mxu0 0.0
        %1827 = vmatpush2.msra.mxu0 0.0
        %1828 = vmatprep.subr.mxu0 0.0
        %1829 = vmatpush2.msra.mxu0 0.0
        %1830 = vmatprep.subr.mxu0 0.0
        %1831 = vmatpush2.msra.mxu0 0.0
        %1832 = vmatprep.subr.mxu0 0.0
        %1833 = vmatpush2.msra.mxu0 0.0
        %1834 = vmatprep.mubr.f32.mxu0 0.0
        %1835 = vmatmul.mubr.f32.gmra.mxu0 %v1768
        %v1836 = vpop.f32.mrf.mxu0
        %v1837 = vadd.f32 %v1763, %v1836
        %v1838 = vpop.f32.mrf.mxu0
        %1839 = vdwg.mxu0
        %1840 = vrot.lane.b32.xlu0 %v467, 96
        %v1841 = vpop.permute.xlu0 %1840
        %v1842 = vsel %vm468, %v1841, 0
        %1844 = vmatprep.subr.mxu0 0.0
        %1845 = vmatpush1.msra.mxu0 0.0
        %1846 = vmatprep.subr.mxu0 0.0
        %1847 = vmatpush1.msra.mxu0 0.0
        %1848 = vmatprep.subr.mxu0 0.0
        %1849 = vmatpush1.msra.mxu0 0.0
        %1850 = vmatprep.subr.mxu0 0.0
        %1851 = vmatpush1.msra.mxu0 0.0
        %1852 = vmatprep.subr.mxu0 0.0
        %1853 = vmatpush1.msra.mxu0 0.0
        %1854 = vmatprep.subr.mxu0 0.0
        %1855 = vmatpush1.msra.mxu0 0.0
        %1856 = vmatprep.subr.mxu0 0.0
        %1857 = vmatpush1.msra.mxu0 0.0
        %1858 = vmatprep.subr.mxu0 0.0
        %1859 = vmatpush1.msra.mxu0 0.0
        %1860 = vmatprep.subr.mxu0 0.0
        %1861 = vmatpush1.msra.mxu0 0.0
        %1862 = vmatprep.subr.mxu0 0.0
        %1863 = vmatpush1.msra.mxu0 0.0
        %1864 = vmatprep.subr.mxu0 0.0
        %1865 = vmatpush1.msra.mxu0 0.0
        %1866 = vmatprep.subr.mxu0 0.0
        %1867 = vmatpush1.msra.mxu0 0.0
        %1868 = vmatprep.subr.mxu0 0.0
        %1869 = vmatpush1.msra.mxu0 0.0
        %1870 = vmatprep.subr.mxu0 0.0
        %1871 = vmatpush1.msra.mxu0 0.0
        %1872 = vmatprep.subr.mxu0 0.0
        %1873 = vmatpush1.msra.mxu0 0.0
        %1874 = vmatprep.subr.mxu0 0.0
        %1875 = vmatpush1.msra.mxu0 %v451
        %1876 = vmatprep.subr.mxu0 0.0
        %1877 = vmatpush2.msra.mxu0 0.0
        %1878 = vmatprep.subr.mxu0 0.0
        %1879 = vmatpush2.msra.mxu0 0.0
        %1880 = vmatprep.subr.mxu0 0.0
        %1881 = vmatpush2.msra.mxu0 0.0
        %1882 = vmatprep.subr.mxu0 0.0
        %1883 = vmatpush2.msra.mxu0 0.0
        %1884 = vmatprep.subr.mxu0 0.0
        %1885 = vmatpush2.msra.mxu0 0.0
        %1886 = vmatprep.subr.mxu0 0.0
        %1887 = vmatpush2.msra.mxu0 0.0
        %1888 = vmatprep.subr.mxu0 0.0
        %1889 = vmatpush2.msra.mxu0 0.0
        %1890 = vmatprep.subr.mxu0 0.0
        %1891 = vmatpush2.msra.mxu0 0.0
        %1892 = vmatprep.subr.mxu0 0.0
        %1893 = vmatpush2.msra.mxu0 0.0
        %1894 = vmatprep.subr.mxu0 0.0
        %1895 = vmatpush2.msra.mxu0 0.0
        %1896 = vmatprep.subr.mxu0 0.0
        %1897 = vmatpush2.msra.mxu0 0.0
        %1898 = vmatprep.subr.mxu0 0.0
        %1899 = vmatpush2.msra.mxu0 0.0
        %1900 = vmatprep.subr.mxu0 0.0
        %1901 = vmatpush2.msra.mxu0 0.0
        %1902 = vmatprep.subr.mxu0 0.0
        %1903 = vmatpush2.msra.mxu0 0.0
        %1904 = vmatprep.subr.mxu0 0.0
        %1905 = vmatpush2.msra.mxu0 0.0
        %1906 = vmatprep.subr.mxu0 0.0
        %1907 = vmatpush2.msra.mxu0 0.0
        %1908 = vmatprep.mubr.f32.mxu0 0.0
        %1909 = vmatmul.mubr.f32.gmra.mxu0 %v1842
        %v1910 = vpop.f32.mrf.mxu0
        %v1911 = vadd.f32 0.0, %v1910
        %v1912 = vpop.f32.mrf.mxu0
        %1913 = vdwg.mxu0
        %1914 = vrot.lane.b32.xlu0 %v466, 96
        %v1915 = vpop.permute.xlu0 %1914
        %v1916 = vsel %vm468, %v1915, 0
        %1918 = vmatprep.subr.mxu0 0.0
        %1919 = vmatpush1.msra.mxu0 0.0
        %1920 = vmatprep.subr.mxu0 0.0
        %1921 = vmatpush1.msra.mxu0 0.0
        %1922 = vmatprep.subr.mxu0 0.0
        %1923 = vmatpush1.msra.mxu0 0.0
        %1924 = vmatprep.subr.mxu0 0.0
        %1925 = vmatpush1.msra.mxu0 0.0
        %1926 = vmatprep.subr.mxu0 0.0
        %1927 = vmatpush1.msra.mxu0 0.0
        %1928 = vmatprep.subr.mxu0 0.0
        %1929 = vmatpush1.msra.mxu0 0.0
        %1930 = vmatprep.subr.mxu0 0.0
        %1931 = vmatpush1.msra.mxu0 0.0
        %1932 = vmatprep.subr.mxu0 0.0
        %1933 = vmatpush1.msra.mxu0 0.0
        %1934 = vmatprep.subr.mxu0 0.0
        %1935 = vmatpush1.msra.mxu0 0.0
        %1936 = vmatprep.subr.mxu0 0.0
        %1937 = vmatpush1.msra.mxu0 0.0
        %1938 = vmatprep.subr.mxu0 0.0
        %1939 = vmatpush1.msra.mxu0 0.0
        %1940 = vmatprep.subr.mxu0 0.0
        %1941 = vmatpush1.msra.mxu0 0.0
        %1942 = vmatprep.subr.mxu0 0.0
        %1943 = vmatpush1.msra.mxu0 0.0
        %1944 = vmatprep.subr.mxu0 0.0
        %1945 = vmatpush1.msra.mxu0 0.0
        %1946 = vmatprep.subr.mxu0 0.0
        %1947 = vmatpush1.msra.mxu0 0.0
        %1948 = vmatprep.subr.mxu0 0.0
        %1949 = vmatpush1.msra.mxu0 %v450
        %1950 = vmatprep.subr.mxu0 0.0
        %1951 = vmatpush2.msra.mxu0 0.0
        %1952 = vmatprep.subr.mxu0 0.0
        %1953 = vmatpush2.msra.mxu0 0.0
        %1954 = vmatprep.subr.mxu0 0.0
        %1955 = vmatpush2.msra.mxu0 0.0
        %1956 = vmatprep.subr.mxu0 0.0
        %1957 = vmatpush2.msra.mxu0 0.0
        %1958 = vmatprep.subr.mxu0 0.0
        %1959 = vmatpush2.msra.mxu0 0.0
        %1960 = vmatprep.subr.mxu0 0.0
        %1961 = vmatpush2.msra.mxu0 0.0
        %1962 = vmatprep.subr.mxu0 0.0
        %1963 = vmatpush2.msra.mxu0 0.0
        %1964 = vmatprep.subr.mxu0 0.0
        %1965 = vmatpush2.msra.mxu0 0.0
        %1966 = vmatprep.subr.mxu0 0.0
        %1967 = vmatpush2.msra.mxu0 0.0
        %1968 = vmatprep.subr.mxu0 0.0
        %1969 = vmatpush2.msra.mxu0 0.0
        %1970 = vmatprep.subr.mxu0 0.0
        %1971 = vmatpush2.msra.mxu0 0.0
        %1972 = vmatprep.subr.mxu0 0.0
        %1973 = vmatpush2.msra.mxu0 0.0
        %1974 = vmatprep.subr.mxu0 0.0
        %1975 = vmatpush2.msra.mxu0 0.0
        %1976 = vmatprep.subr.mxu0 0.0
        %1977 = vmatpush2.msra.mxu0 0.0
        %1978 = vmatprep.subr.mxu0 0.0
        %1979 = vmatpush2.msra.mxu0 0.0
        %1980 = vmatprep.subr.mxu0 0.0
        %1981 = vmatpush2.msra.mxu0 0.0
        %1982 = vmatprep.mubr.f32.mxu0 0.0
        %1983 = vmatmul.mubr.f32.gmra.mxu0 %v1916
        %v1984 = vpop.f32.mrf.mxu0
        %v1985 = vadd.f32 %v1911, %v1984
        %v1986 = vpop.f32.mrf.mxu0
        %1987 = vdwg.mxu0
        %1988 = vrot.lane.b32.xlu0 %v465, 88
        %v1989 = vpop.permute.xlu0 %1988
        %v1990 = vsel %vm468, %v1989, 0
        %1992 = vmatprep.subr.mxu0 0.0
        %1993 = vmatpush1.msra.mxu0 0.0
        %1994 = vmatprep.subr.mxu0 0.0
        %1995 = vmatpush1.msra.mxu0 0.0
        %1996 = vmatprep.subr.mxu0 0.0
        %1997 = vmatpush1.msra.mxu0 0.0
        %1998 = vmatprep.subr.mxu0 0.0
        %1999 = vmatpush1.msra.mxu0 0.0
        %2000 = vmatprep.subr.mxu0 0.0
        %2001 = vmatpush1.msra.mxu0 0.0
        %2002 = vmatprep.subr.mxu0 0.0
        %2003 = vmatpush1.msra.mxu0 0.0
        %2004 = vmatprep.subr.mxu0 0.0
        %2005 = vmatpush1.msra.mxu0 0.0
        %2006 = vmatprep.subr.mxu0 0.0
        %2007 = vmatpush1.msra.mxu0 0.0
        %2008 = vmatprep.subr.mxu0 0.0
        %2009 = vmatpush1.msra.mxu0 0.0
        %2010 = vmatprep.subr.mxu0 0.0
        %2011 = vmatpush1.msra.mxu0 0.0
        %2012 = vmatprep.subr.mxu0 0.0
        %2013 = vmatpush1.msra.mxu0 0.0
        %2014 = vmatprep.subr.mxu0 0.0
        %2015 = vmatpush1.msra.mxu0 0.0
        %2016 = vmatprep.subr.mxu0 0.0
        %2017 = vmatpush1.msra.mxu0 0.0
        %2018 = vmatprep.subr.mxu0 0.0
        %2019 = vmatpush1.msra.mxu0 0.0
        %2020 = vmatprep.subr.mxu0 0.0
        %2021 = vmatpush1.msra.mxu0 0.0
        %2022 = vmatprep.subr.mxu0 0.0
        %2023 = vmatpush1.msra.mxu0 %v451
        %2024 = vmatprep.subr.mxu0 0.0
        %2025 = vmatpush2.msra.mxu0 0.0
        %2026 = vmatprep.subr.mxu0 0.0
        %2027 = vmatpush2.msra.mxu0 0.0
        %2028 = vmatprep.subr.mxu0 0.0
        %2029 = vmatpush2.msra.mxu0 0.0
        %2030 = vmatprep.subr.mxu0 0.0
        %2031 = vmatpush2.msra.mxu0 0.0
        %2032 = vmatprep.subr.mxu0 0.0
        %2033 = vmatpush2.msra.mxu0 0.0
        %2034 = vmatprep.subr.mxu0 0.0
        %2035 = vmatpush2.msra.mxu0 0.0
        %2036 = vmatprep.subr.mxu0 0.0
        %2037 = vmatpush2.msra.mxu0 0.0
        %2038 = vmatprep.subr.mxu0 0.0
        %2039 = vmatpush2.msra.mxu0 0.0
        %2040 = vmatprep.subr.mxu0 0.0
        %2041 = vmatpush2.msra.mxu0 0.0
        %2042 = vmatprep.subr.mxu0 0.0
        %2043 = vmatpush2.msra.mxu0 0.0
        %2044 = vmatprep.subr.mxu0 0.0
        %2045 = vmatpush2.msra.mxu0 0.0
        %2046 = vmatprep.subr.mxu0 0.0
        %2047 = vmatpush2.msra.mxu0 0.0
        %2048 = vmatprep.subr.mxu0 0.0
        %2049 = vmatpush2.msra.mxu0 0.0
        %2050 = vmatprep.subr.mxu0 0.0
        %2051 = vmatpush2.msra.mxu0 0.0
        %2052 = vmatprep.subr.mxu0 0.0
        %2053 = vmatpush2.msra.mxu0 0.0
        %2054 = vmatprep.subr.mxu0 0.0
        %2055 = vmatpush2.msra.mxu0 0.0
        %2056 = vmatprep.mubr.f32.mxu0 0.0
        %2057 = vmatmul.mubr.f32.gmra.mxu0 %v1990
        %v2058 = vpop.f32.mrf.mxu0
        %v2059 = vadd.f32 0.0, %v2058
        %v2060 = vpop.f32.mrf.mxu0
        %2061 = vdwg.mxu0
        %2062 = vrot.lane.b32.xlu0 %v464, 88
        %v2063 = vpop.permute.xlu0 %2062
        %v2064 = vsel %vm468, %v2063, 0
        %2066 = vmatprep.subr.mxu0 0.0
        %2067 = vmatpush1.msra.mxu0 0.0
        %2068 = vmatprep.subr.mxu0 0.0
        %2069 = vmatpush1.msra.mxu0 0.0
        %2070 = vmatprep.subr.mxu0 0.0
        %2071 = vmatpush1.msra.mxu0 0.0
        %2072 = vmatprep.subr.mxu0 0.0
        %2073 = vmatpush1.msra.mxu0 0.0
        %2074 = vmatprep.subr.mxu0 0.0
        %2075 = vmatpush1.msra.mxu0 0.0
        %2076 = vmatprep.subr.mxu0 0.0
        %2077 = vmatpush1.msra.mxu0 0.0
        %2078 = vmatprep.subr.mxu0 0.0
        %2079 = vmatpush1.msra.mxu0 0.0
        %2080 = vmatprep.subr.mxu0 0.0
        %2081 = vmatpush1.msra.mxu0 0.0
        %2082 = vmatprep.subr.mxu0 0.0
        %2083 = vmatpush1.msra.mxu0 0.0
        %2084 = vmatprep.subr.mxu0 0.0
        %2085 = vmatpush1.msra.mxu0 0.0
        %2086 = vmatprep.subr.mxu0 0.0
        %2087 = vmatpush1.msra.mxu0 0.0
        %2088 = vmatprep.subr.mxu0 0.0
        %2089 = vmatpush1.msra.mxu0 0.0
        %2090 = vmatprep.subr.mxu0 0.0
        %2091 = vmatpush1.msra.mxu0 0.0
        %2092 = vmatprep.subr.mxu0 0.0
        %2093 = vmatpush1.msra.mxu0 0.0
        %2094 = vmatprep.subr.mxu0 0.0
        %2095 = vmatpush1.msra.mxu0 0.0
        %2096 = vmatprep.subr.mxu0 0.0
        %2097 = vmatpush1.msra.mxu0 %v450
        %2098 = vmatprep.subr.mxu0 0.0
        %2099 = vmatpush2.msra.mxu0 0.0
        %2100 = vmatprep.subr.mxu0 0.0
        %2101 = vmatpush2.msra.mxu0 0.0
        %2102 = vmatprep.subr.mxu0 0.0
        %2103 = vmatpush2.msra.mxu0 0.0
        %2104 = vmatprep.subr.mxu0 0.0
        %2105 = vmatpush2.msra.mxu0 0.0
        %2106 = vmatprep.subr.mxu0 0.0
        %2107 = vmatpush2.msra.mxu0 0.0
        %2108 = vmatprep.subr.mxu0 0.0
        %2109 = vmatpush2.msra.mxu0 0.0
        %2110 = vmatprep.subr.mxu0 0.0
        %2111 = vmatpush2.msra.mxu0 0.0
        %2112 = vmatprep.subr.mxu0 0.0
        %2113 = vmatpush2.msra.mxu0 0.0
        %2114 = vmatprep.subr.mxu0 0.0
        %2115 = vmatpush2.msra.mxu0 0.0
        %2116 = vmatprep.subr.mxu0 0.0
        %2117 = vmatpush2.msra.mxu0 0.0
        %2118 = vmatprep.subr.mxu0 0.0
        %2119 = vmatpush2.msra.mxu0 0.0
        %2120 = vmatprep.subr.mxu0 0.0
        %2121 = vmatpush2.msra.mxu0 0.0
        %2122 = vmatprep.subr.mxu0 0.0
        %2123 = vmatpush2.msra.mxu0 0.0
        %2124 = vmatprep.subr.mxu0 0.0
        %2125 = vmatpush2.msra.mxu0 0.0
        %2126 = vmatprep.subr.mxu0 0.0
        %2127 = vmatpush2.msra.mxu0 0.0
        %2128 = vmatprep.subr.mxu0 0.0
        %2129 = vmatpush2.msra.mxu0 0.0
        %2130 = vmatprep.mubr.f32.mxu0 0.0
        %2131 = vmatmul.mubr.f32.gmra.mxu0 %v2064
        %v2132 = vpop.f32.mrf.mxu0
        %v2133 = vadd.f32 %v2059, %v2132
        %v2134 = vpop.f32.mrf.mxu0
        %2135 = vdwg.mxu0
        %2136 = vrot.lane.b32.xlu0 %v467, 88
        %v2137 = vpop.permute.xlu0 %2136
        %v2138 = vsel %vm468, %v2137, 0
        %2140 = vmatprep.subr.mxu0 0.0
        %2141 = vmatpush1.msra.mxu0 0.0
        %2142 = vmatprep.subr.mxu0 0.0
        %2143 = vmatpush1.msra.mxu0 0.0
        %2144 = vmatprep.subr.mxu0 0.0
        %2145 = vmatpush1.msra.mxu0 0.0
        %2146 = vmatprep.subr.mxu0 0.0
        %2147 = vmatpush1.msra.mxu0 0.0
        %2148 = vmatprep.subr.mxu0 0.0
        %2149 = vmatpush1.msra.mxu0 0.0
        %2150 = vmatprep.subr.mxu0 0.0
        %2151 = vmatpush1.msra.mxu0 0.0
        %2152 = vmatprep.subr.mxu0 0.0
        %2153 = vmatpush1.msra.mxu0 0.0
        %2154 = vmatprep.subr.mxu0 0.0
        %2155 = vmatpush1.msra.mxu0 0.0
        %2156 = vmatprep.subr.mxu0 0.0
        %2157 = vmatpush1.msra.mxu0 0.0
        %2158 = vmatprep.subr.mxu0 0.0
        %2159 = vmatpush1.msra.mxu0 0.0
        %2160 = vmatprep.subr.mxu0 0.0
        %2161 = vmatpush1.msra.mxu0 0.0
        %2162 = vmatprep.subr.mxu0 0.0
        %2163 = vmatpush1.msra.mxu0 0.0
        %2164 = vmatprep.subr.mxu0 0.0
        %2165 = vmatpush1.msra.mxu0 0.0
        %2166 = vmatprep.subr.mxu0 0.0
        %2167 = vmatpush1.msra.mxu0 0.0
        %2168 = vmatprep.subr.mxu0 0.0
        %2169 = vmatpush1.msra.mxu0 0.0
        %2170 = vmatprep.subr.mxu0 0.0
        %2171 = vmatpush1.msra.mxu0 %v451
        %2172 = vmatprep.subr.mxu0 0.0
        %2173 = vmatpush2.msra.mxu0 0.0
        %2174 = vmatprep.subr.mxu0 0.0
        %2175 = vmatpush2.msra.mxu0 0.0
        %2176 = vmatprep.subr.mxu0 0.0
        %2177 = vmatpush2.msra.mxu0 0.0
        %2178 = vmatprep.subr.mxu0 0.0
        %2179 = vmatpush2.msra.mxu0 0.0
        %2180 = vmatprep.subr.mxu0 0.0
        %2181 = vmatpush2.msra.mxu0 0.0
        %2182 = vmatprep.subr.mxu0 0.0
        %2183 = vmatpush2.msra.mxu0 0.0
        %2184 = vmatprep.subr.mxu0 0.0
        %2185 = vmatpush2.msra.mxu0 0.0
        %2186 = vmatprep.subr.mxu0 0.0
        %2187 = vmatpush2.msra.mxu0 0.0
        %2188 = vmatprep.subr.mxu0 0.0
        %2189 = vmatpush2.msra.mxu0 0.0
        %2190 = vmatprep.subr.mxu0 0.0
        %2191 = vmatpush2.msra.mxu0 0.0
        %2192 = vmatprep.subr.mxu0 0.0
        %2193 = vmatpush2.msra.mxu0 0.0
        %2194 = vmatprep.subr.mxu0 0.0
        %2195 = vmatpush2.msra.mxu0 0.0
        %2196 = vmatprep.subr.mxu0 0.0
        %2197 = vmatpush2.msra.mxu0 0.0
        %2198 = vmatprep.subr.mxu0 0.0
        %2199 = vmatpush2.msra.mxu0 0.0
        %2200 = vmatprep.subr.mxu0 0.0
        %2201 = vmatpush2.msra.mxu0 0.0
        %2202 = vmatprep.subr.mxu0 0.0
        %2203 = vmatpush2.msra.mxu0 0.0
        %2204 = vmatprep.mubr.f32.mxu0 0.0
        %2205 = vmatmul.mubr.f32.gmra.mxu0 %v2138
        %v2206 = vpop.f32.mrf.mxu0
        %v2207 = vadd.f32 0.0, %v2206
        %v2208 = vpop.f32.mrf.mxu0
        %2209 = vdwg.mxu0
        %2210 = vrot.lane.b32.xlu0 %v466, 88
        %v2211 = vpop.permute.xlu0 %2210
        %v2212 = vsel %vm468, %v2211, 0
        %2214 = vmatprep.subr.mxu0 0.0
        %2215 = vmatpush1.msra.mxu0 0.0
        %2216 = vmatprep.subr.mxu0 0.0
        %2217 = vmatpush1.msra.mxu0 0.0
        %2218 = vmatprep.subr.mxu0 0.0
        %2219 = vmatpush1.msra.mxu0 0.0
        %2220 = vmatprep.subr.mxu0 0.0
        %2221 = vmatpush1.msra.mxu0 0.0
        %2222 = vmatprep.subr.mxu0 0.0
        %2223 = vmatpush1.msra.mxu0 0.0
        %2224 = vmatprep.subr.mxu0 0.0
        %2225 = vmatpush1.msra.mxu0 0.0
        %2226 = vmatprep.subr.mxu0 0.0
        %2227 = vmatpush1.msra.mxu0 0.0
        %2228 = vmatprep.subr.mxu0 0.0
        %2229 = vmatpush1.msra.mxu0 0.0
        %2230 = vmatprep.subr.mxu0 0.0
        %2231 = vmatpush1.msra.mxu0 0.0
        %2232 = vmatprep.subr.mxu0 0.0
        %2233 = vmatpush1.msra.mxu0 0.0
        %2234 = vmatprep.subr.mxu0 0.0
        %2235 = vmatpush1.msra.mxu0 0.0
        %2236 = vmatprep.subr.mxu0 0.0
        %2237 = vmatpush1.msra.mxu0 0.0
        %2238 = vmatprep.subr.mxu0 0.0
        %2239 = vmatpush1.msra.mxu0 0.0
        %2240 = vmatprep.subr.mxu0 0.0
        %2241 = vmatpush1.msra.mxu0 0.0
        %2242 = vmatprep.subr.mxu0 0.0
        %2243 = vmatpush1.msra.mxu0 0.0
        %2244 = vmatprep.subr.mxu0 0.0
        %2245 = vmatpush1.msra.mxu0 %v450
        %2246 = vmatprep.subr.mxu0 0.0
        %2247 = vmatpush2.msra.mxu0 0.0
        %2248 = vmatprep.subr.mxu0 0.0
        %2249 = vmatpush2.msra.mxu0 0.0
        %2250 = vmatprep.subr.mxu0 0.0
        %2251 = vmatpush2.msra.mxu0 0.0
        %2252 = vmatprep.subr.mxu0 0.0
        %2253 = vmatpush2.msra.mxu0 0.0
        %2254 = vmatprep.subr.mxu0 0.0
        %2255 = vmatpush2.msra.mxu0 0.0
        %2256 = vmatprep.subr.mxu0 0.0
        %2257 = vmatpush2.msra.mxu0 0.0
        %2258 = vmatprep.subr.mxu0 0.0
        %2259 = vmatpush2.msra.mxu0 0.0
        %2260 = vmatprep.subr.mxu0 0.0
        %2261 = vmatpush2.msra.mxu0 0.0
        %2262 = vmatprep.subr.mxu0 0.0
        %2263 = vmatpush2.msra.mxu0 0.0
        %2264 = vmatprep.subr.mxu0 0.0
        %2265 = vmatpush2.msra.mxu0 0.0
        %2266 = vmatprep.subr.mxu0 0.0
        %2267 = vmatpush2.msra.mxu0 0.0
        %2268 = vmatprep.subr.mxu0 0.0
        %2269 = vmatpush2.msra.mxu0 0.0
        %2270 = vmatprep.subr.mxu0 0.0
        %2271 = vmatpush2.msra.mxu0 0.0
        %2272 = vmatprep.subr.mxu0 0.0
        %2273 = vmatpush2.msra.mxu0 0.0
        %2274 = vmatprep.subr.mxu0 0.0
        %2275 = vmatpush2.msra.mxu0 0.0
        %2276 = vmatprep.subr.mxu0 0.0
        %2277 = vmatpush2.msra.mxu0 0.0
        %2278 = vmatprep.mubr.f32.mxu0 0.0
        %2279 = vmatmul.mubr.f32.gmra.mxu0 %v2212
        %v2280 = vpop.f32.mrf.mxu0
        %v2281 = vadd.f32 %v2207, %v2280
        %v2282 = vpop.f32.mrf.mxu0
        %2283 = vdwg.mxu0
        %2284 = vrot.lane.b32.xlu0 %v465, 80
        %v2285 = vpop.permute.xlu0 %2284
        %v2286 = vsel %vm468, %v2285, 0
        %2288 = vmatprep.subr.mxu0 0.0
        %2289 = vmatpush1.msra.mxu0 0.0
        %2290 = vmatprep.subr.mxu0 0.0
        %2291 = vmatpush1.msra.mxu0 0.0
        %2292 = vmatprep.subr.mxu0 0.0
        %2293 = vmatpush1.msra.mxu0 0.0
        %2294 = vmatprep.subr.mxu0 0.0
        %2295 = vmatpush1.msra.mxu0 0.0
        %2296 = vmatprep.subr.mxu0 0.0
        %2297 = vmatpush1.msra.mxu0 0.0
        %2298 = vmatprep.subr.mxu0 0.0
        %2299 = vmatpush1.msra.mxu0 0.0
        %2300 = vmatprep.subr.mxu0 0.0
        %2301 = vmatpush1.msra.mxu0 0.0
        %2302 = vmatprep.subr.mxu0 0.0
        %2303 = vmatpush1.msra.mxu0 0.0
        %2304 = vmatprep.subr.mxu0 0.0
        %2305 = vmatpush1.msra.mxu0 0.0
        %2306 = vmatprep.subr.mxu0 0.0
        %2307 = vmatpush1.msra.mxu0 0.0
        %2308 = vmatprep.subr.mxu0 0.0
        %2309 = vmatpush1.msra.mxu0 0.0
        %2310 = vmatprep.subr.mxu0 0.0
        %2311 = vmatpush1.msra.mxu0 0.0
        %2312 = vmatprep.subr.mxu0 0.0
        %2313 = vmatpush1.msra.mxu0 0.0
        %2314 = vmatprep.subr.mxu0 0.0
        %2315 = vmatpush1.msra.mxu0 0.0
        %2316 = vmatprep.subr.mxu0 0.0
        %2317 = vmatpush1.msra.mxu0 0.0
        %2318 = vmatprep.subr.mxu0 0.0
        %2319 = vmatpush1.msra.mxu0 %v451
        %2320 = vmatprep.subr.mxu0 0.0
        %2321 = vmatpush2.msra.mxu0 0.0
        %2322 = vmatprep.subr.mxu0 0.0
        %2323 = vmatpush2.msra.mxu0 0.0
        %2324 = vmatprep.subr.mxu0 0.0
        %2325 = vmatpush2.msra.mxu0 0.0
        %2326 = vmatprep.subr.mxu0 0.0
        %2327 = vmatpush2.msra.mxu0 0.0
        %2328 = vmatprep.subr.mxu0 0.0
        %2329 = vmatpush2.msra.mxu0 0.0
        %2330 = vmatprep.subr.mxu0 0.0
        %2331 = vmatpush2.msra.mxu0 0.0
        %2332 = vmatprep.subr.mxu0 0.0
        %2333 = vmatpush2.msra.mxu0 0.0
        %2334 = vmatprep.subr.mxu0 0.0
        %2335 = vmatpush2.msra.mxu0 0.0
        %2336 = vmatprep.subr.mxu0 0.0
        %2337 = vmatpush2.msra.mxu0 0.0
        %2338 = vmatprep.subr.mxu0 0.0
        %2339 = vmatpush2.msra.mxu0 0.0
        %2340 = vmatprep.subr.mxu0 0.0
        %2341 = vmatpush2.msra.mxu0 0.0
        %2342 = vmatprep.subr.mxu0 0.0
        %2343 = vmatpush2.msra.mxu0 0.0
        %2344 = vmatprep.subr.mxu0 0.0
        %2345 = vmatpush2.msra.mxu0 0.0
        %2346 = vmatprep.subr.mxu0 0.0
        %2347 = vmatpush2.msra.mxu0 0.0
        %2348 = vmatprep.subr.mxu0 0.0
        %2349 = vmatpush2.msra.mxu0 0.0
        %2350 = vmatprep.subr.mxu0 0.0
        %2351 = vmatpush2.msra.mxu0 0.0
        %2352 = vmatprep.mubr.f32.mxu0 0.0
        %2353 = vmatmul.mubr.f32.gmra.mxu0 %v2286
        %v2354 = vpop.f32.mrf.mxu0
        %v2355 = vadd.f32 0.0, %v2354
        %v2356 = vpop.f32.mrf.mxu0
        %2357 = vdwg.mxu0
        %2358 = vrot.lane.b32.xlu0 %v464, 80
        %v2359 = vpop.permute.xlu0 %2358
        %v2360 = vsel %vm468, %v2359, 0
        %2362 = vmatprep.subr.mxu0 0.0
        %2363 = vmatpush1.msra.mxu0 0.0
        %2364 = vmatprep.subr.mxu0 0.0
        %2365 = vmatpush1.msra.mxu0 0.0
        %2366 = vmatprep.subr.mxu0 0.0
        %2367 = vmatpush1.msra.mxu0 0.0
        %2368 = vmatprep.subr.mxu0 0.0
        %2369 = vmatpush1.msra.mxu0 0.0
        %2370 = vmatprep.subr.mxu0 0.0
        %2371 = vmatpush1.msra.mxu0 0.0
        %2372 = vmatprep.subr.mxu0 0.0
        %2373 = vmatpush1.msra.mxu0 0.0
        %2374 = vmatprep.subr.mxu0 0.0
        %2375 = vmatpush1.msra.mxu0 0.0
        %2376 = vmatprep.subr.mxu0 0.0
        %2377 = vmatpush1.msra.mxu0 0.0
        %2378 = vmatprep.subr.mxu0 0.0
        %2379 = vmatpush1.msra.mxu0 0.0
        %2380 = vmatprep.subr.mxu0 0.0
        %2381 = vmatpush1.msra.mxu0 0.0
        %2382 = vmatprep.subr.mxu0 0.0
        %2383 = vmatpush1.msra.mxu0 0.0
        %2384 = vmatprep.subr.mxu0 0.0
        %2385 = vmatpush1.msra.mxu0 0.0
        %2386 = vmatprep.subr.mxu0 0.0
        %2387 = vmatpush1.msra.mxu0 0.0
        %2388 = vmatprep.subr.mxu0 0.0
        %2389 = vmatpush1.msra.mxu0 0.0
        %2390 = vmatprep.subr.mxu0 0.0
        %2391 = vmatpush1.msra.mxu0 0.0
        %2392 = vmatprep.subr.mxu0 0.0
        %2393 = vmatpush1.msra.mxu0 %v450
        %2394 = vmatprep.subr.mxu0 0.0
        %2395 = vmatpush2.msra.mxu0 0.0
        %2396 = vmatprep.subr.mxu0 0.0
        %2397 = vmatpush2.msra.mxu0 0.0
        %2398 = vmatprep.subr.mxu0 0.0
        %2399 = vmatpush2.msra.mxu0 0.0
        %2400 = vmatprep.subr.mxu0 0.0
        %2401 = vmatpush2.msra.mxu0 0.0
        %2402 = vmatprep.subr.mxu0 0.0
        %2403 = vmatpush2.msra.mxu0 0.0
        %2404 = vmatprep.subr.mxu0 0.0
        %2405 = vmatpush2.msra.mxu0 0.0
        %2406 = vmatprep.subr.mxu0 0.0
        %2407 = vmatpush2.msra.mxu0 0.0
        %2408 = vmatprep.subr.mxu0 0.0
        %2409 = vmatpush2.msra.mxu0 0.0
        %2410 = vmatprep.subr.mxu0 0.0
        %2411 = vmatpush2.msra.mxu0 0.0
        %2412 = vmatprep.subr.mxu0 0.0
        %2413 = vmatpush2.msra.mxu0 0.0
        %2414 = vmatprep.subr.mxu0 0.0
        %2415 = vmatpush2.msra.mxu0 0.0
        %2416 = vmatprep.subr.mxu0 0.0
        %2417 = vmatpush2.msra.mxu0 0.0
        %2418 = vmatprep.subr.mxu0 0.0
        %2419 = vmatpush2.msra.mxu0 0.0
        %2420 = vmatprep.subr.mxu0 0.0
        %2421 = vmatpush2.msra.mxu0 0.0
        %2422 = vmatprep.subr.mxu0 0.0
        %2423 = vmatpush2.msra.mxu0 0.0
        %2424 = vmatprep.subr.mxu0 0.0
        %2425 = vmatpush2.msra.mxu0 0.0
        %2426 = vmatprep.mubr.f32.mxu0 0.0
        %2427 = vmatmul.mubr.f32.gmra.mxu0 %v2360
        %v2428 = vpop.f32.mrf.mxu0
        %v2429 = vadd.f32 %v2355, %v2428
        %v2430 = vpop.f32.mrf.mxu0
        %2431 = vdwg.mxu0
        %2432 = vrot.lane.b32.xlu0 %v467, 80
        %v2433 = vpop.permute.xlu0 %2432
        %v2434 = vsel %vm468, %v2433, 0
        %2436 = vmatprep.subr.mxu0 0.0
        %2437 = vmatpush1.msra.mxu0 0.0
        %2438 = vmatprep.subr.mxu0 0.0
        %2439 = vmatpush1.msra.mxu0 0.0
        %2440 = vmatprep.subr.mxu0 0.0
        %2441 = vmatpush1.msra.mxu0 0.0
        %2442 = vmatprep.subr.mxu0 0.0
        %2443 = vmatpush1.msra.mxu0 0.0
        %2444 = vmatprep.subr.mxu0 0.0
        %2445 = vmatpush1.msra.mxu0 0.0
        %2446 = vmatprep.subr.mxu0 0.0
        %2447 = vmatpush1.msra.mxu0 0.0
        %2448 = vmatprep.subr.mxu0 0.0
        %2449 = vmatpush1.msra.mxu0 0.0
        %2450 = vmatprep.subr.mxu0 0.0
        %2451 = vmatpush1.msra.mxu0 0.0
        %2452 = vmatprep.subr.mxu0 0.0
        %2453 = vmatpush1.msra.mxu0 0.0
        %2454 = vmatprep.subr.mxu0 0.0
        %2455 = vmatpush1.msra.mxu0 0.0
        %2456 = vmatprep.subr.mxu0 0.0
        %2457 = vmatpush1.msra.mxu0 0.0
        %2458 = vmatprep.subr.mxu0 0.0
        %2459 = vmatpush1.msra.mxu0 0.0
        %2460 = vmatprep.subr.mxu0 0.0
        %2461 = vmatpush1.msra.mxu0 0.0
        %2462 = vmatprep.subr.mxu0 0.0
        %2463 = vmatpush1.msra.mxu0 0.0
        %2464 = vmatprep.subr.mxu0 0.0
        %2465 = vmatpush1.msra.mxu0 0.0
        %2466 = vmatprep.subr.mxu0 0.0
        %2467 = vmatpush1.msra.mxu0 %v451
        %2468 = vmatprep.subr.mxu0 0.0
        %2469 = vmatpush2.msra.mxu0 0.0
        %2470 = vmatprep.subr.mxu0 0.0
        %2471 = vmatpush2.msra.mxu0 0.0
        %2472 = vmatprep.subr.mxu0 0.0
        %2473 = vmatpush2.msra.mxu0 0.0
        %2474 = vmatprep.subr.mxu0 0.0
        %2475 = vmatpush2.msra.mxu0 0.0
        %2476 = vmatprep.subr.mxu0 0.0
        %2477 = vmatpush2.msra.mxu0 0.0
        %2478 = vmatprep.subr.mxu0 0.0
        %2479 = vmatpush2.msra.mxu0 0.0
        %2480 = vmatprep.subr.mxu0 0.0
        %2481 = vmatpush2.msra.mxu0 0.0
        %2482 = vmatprep.subr.mxu0 0.0
        %2483 = vmatpush2.msra.mxu0 0.0
        %2484 = vmatprep.subr.mxu0 0.0
        %2485 = vmatpush2.msra.mxu0 0.0
        %2486 = vmatprep.subr.mxu0 0.0
        %2487 = vmatpush2.msra.mxu0 0.0
        %2488 = vmatprep.subr.mxu0 0.0
        %2489 = vmatpush2.msra.mxu0 0.0
        %2490 = vmatprep.subr.mxu0 0.0
        %2491 = vmatpush2.msra.mxu0 0.0
        %2492 = vmatprep.subr.mxu0 0.0
        %2493 = vmatpush2.msra.mxu0 0.0
        %2494 = vmatprep.subr.mxu0 0.0
        %2495 = vmatpush2.msra.mxu0 0.0
        %2496 = vmatprep.subr.mxu0 0.0
        %2497 = vmatpush2.msra.mxu0 0.0
        %2498 = vmatprep.subr.mxu0 0.0
        %2499 = vmatpush2.msra.mxu0 0.0
        %2500 = vmatprep.mubr.f32.mxu0 0.0
        %2501 = vmatmul.mubr.f32.gmra.mxu0 %v2434
        %v2502 = vpop.f32.mrf.mxu0
        %v2503 = vadd.f32 0.0, %v2502
        %v2504 = vpop.f32.mrf.mxu0
        %2505 = vdwg.mxu0
        %2506 = vrot.lane.b32.xlu0 %v466, 80
        %v2507 = vpop.permute.xlu0 %2506
        %v2508 = vsel %vm468, %v2507, 0
        %2510 = vmatprep.subr.mxu0 0.0
        %2511 = vmatpush1.msra.mxu0 0.0
        %2512 = vmatprep.subr.mxu0 0.0
        %2513 = vmatpush1.msra.mxu0 0.0
        %2514 = vmatprep.subr.mxu0 0.0
        %2515 = vmatpush1.msra.mxu0 0.0
        %2516 = vmatprep.subr.mxu0 0.0
        %2517 = vmatpush1.msra.mxu0 0.0
        %2518 = vmatprep.subr.mxu0 0.0
        %2519 = vmatpush1.msra.mxu0 0.0
        %2520 = vmatprep.subr.mxu0 0.0
        %2521 = vmatpush1.msra.mxu0 0.0
        %2522 = vmatprep.subr.mxu0 0.0
        %2523 = vmatpush1.msra.mxu0 0.0
        %2524 = vmatprep.subr.mxu0 0.0
        %2525 = vmatpush1.msra.mxu0 0.0
        %2526 = vmatprep.subr.mxu0 0.0
        %2527 = vmatpush1.msra.mxu0 0.0
        %2528 = vmatprep.subr.mxu0 0.0
        %2529 = vmatpush1.msra.mxu0 0.0
        %2530 = vmatprep.subr.mxu0 0.0
        %2531 = vmatpush1.msra.mxu0 0.0
        %2532 = vmatprep.subr.mxu0 0.0
        %2533 = vmatpush1.msra.mxu0 0.0
        %2534 = vmatprep.subr.mxu0 0.0
        %2535 = vmatpush1.msra.mxu0 0.0
        %2536 = vmatprep.subr.mxu0 0.0
        %2537 = vmatpush1.msra.mxu0 0.0
        %2538 = vmatprep.subr.mxu0 0.0
        %2539 = vmatpush1.msra.mxu0 0.0
        %2540 = vmatprep.subr.mxu0 0.0
        %2541 = vmatpush1.msra.mxu0 %v450
        %2542 = vmatprep.subr.mxu0 0.0
        %2543 = vmatpush2.msra.mxu0 0.0
        %2544 = vmatprep.subr.mxu0 0.0
        %2545 = vmatpush2.msra.mxu0 0.0
        %2546 = vmatprep.subr.mxu0 0.0
        %2547 = vmatpush2.msra.mxu0 0.0
        %2548 = vmatprep.subr.mxu0 0.0
        %2549 = vmatpush2.msra.mxu0 0.0
        %2550 = vmatprep.subr.mxu0 0.0
        %2551 = vmatpush2.msra.mxu0 0.0
        %2552 = vmatprep.subr.mxu0 0.0
        %2553 = vmatpush2.msra.mxu0 0.0
        %2554 = vmatprep.subr.mxu0 0.0
        %2555 = vmatpush2.msra.mxu0 0.0
        %2556 = vmatprep.subr.mxu0 0.0
        %2557 = vmatpush2.msra.mxu0 0.0
        %2558 = vmatprep.subr.mxu0 0.0
        %2559 = vmatpush2.msra.mxu0 0.0
        %2560 = vmatprep.subr.mxu0 0.0
        %2561 = vmatpush2.msra.mxu0 0.0
        %2562 = vmatprep.subr.mxu0 0.0
        %2563 = vmatpush2.msra.mxu0 0.0
        %2564 = vmatprep.subr.mxu0 0.0
        %2565 = vmatpush2.msra.mxu0 0.0
        %2566 = vmatprep.subr.mxu0 0.0
        %2567 = vmatpush2.msra.mxu0 0.0
        %2568 = vmatprep.subr.mxu0 0.0
        %2569 = vmatpush2.msra.mxu0 0.0
        %2570 = vmatprep.subr.mxu0 0.0
        %2571 = vmatpush2.msra.mxu0 0.0
        %2572 = vmatprep.subr.mxu0 0.0
        %2573 = vmatpush2.msra.mxu0 0.0
        %2574 = vmatprep.mubr.f32.mxu0 0.0
        %2575 = vmatmul.mubr.f32.gmra.mxu0 %v2508
        %v2576 = vpop.f32.mrf.mxu0
        %v2577 = vadd.f32 %v2503, %v2576
        %v2578 = vpop.f32.mrf.mxu0
        %2579 = vdwg.mxu0
        %2580 = vrot.lane.b32.xlu0 %v465, 72
        %v2581 = vpop.permute.xlu0 %2580
        %v2582 = vsel %vm468, %v2581, 0
        %2584 = vmatprep.subr.mxu0 0.0
        %2585 = vmatpush1.msra.mxu0 0.0
        %2586 = vmatprep.subr.mxu0 0.0
        %2587 = vmatpush1.msra.mxu0 0.0
        %2588 = vmatprep.subr.mxu0 0.0
        %2589 = vmatpush1.msra.mxu0 0.0
        %2590 = vmatprep.subr.mxu0 0.0
        %2591 = vmatpush1.msra.mxu0 0.0
        %2592 = vmatprep.subr.mxu0 0.0
        %2593 = vmatpush1.msra.mxu0 0.0
        %2594 = vmatprep.subr.mxu0 0.0
        %2595 = vmatpush1.msra.mxu0 0.0
        %2596 = vmatprep.subr.mxu0 0.0
        %2597 = vmatpush1.msra.mxu0 0.0
        %2598 = vmatprep.subr.mxu0 0.0
        %2599 = vmatpush1.msra.mxu0 0.0
        %2600 = vmatprep.subr.mxu0 0.0
        %2601 = vmatpush1.msra.mxu0 0.0
        %2602 = vmatprep.subr.mxu0 0.0
        %2603 = vmatpush1.msra.mxu0 0.0
        %2604 = vmatprep.subr.mxu0 0.0
        %2605 = vmatpush1.msra.mxu0 0.0
        %2606 = vmatprep.subr.mxu0 0.0
        %2607 = vmatpush1.msra.mxu0 0.0
        %2608 = vmatprep.subr.mxu0 0.0
        %2609 = vmatpush1.msra.mxu0 0.0
        %2610 = vmatprep.subr.mxu0 0.0
        %2611 = vmatpush1.msra.mxu0 0.0
        %2612 = vmatprep.subr.mxu0 0.0
        %2613 = vmatpush1.msra.mxu0 0.0
        %2614 = vmatprep.subr.mxu0 0.0
        %2615 = vmatpush1.msra.mxu0 %v451
        %2616 = vmatprep.subr.mxu0 0.0
        %2617 = vmatpush2.msra.mxu0 0.0
        %2618 = vmatprep.subr.mxu0 0.0
        %2619 = vmatpush2.msra.mxu0 0.0
        %2620 = vmatprep.subr.mxu0 0.0
        %2621 = vmatpush2.msra.mxu0 0.0
        %2622 = vmatprep.subr.mxu0 0.0
        %2623 = vmatpush2.msra.mxu0 0.0
        %2624 = vmatprep.subr.mxu0 0.0
        %2625 = vmatpush2.msra.mxu0 0.0
        %2626 = vmatprep.subr.mxu0 0.0
        %2627 = vmatpush2.msra.mxu0 0.0
        %2628 = vmatprep.subr.mxu0 0.0
        %2629 = vmatpush2.msra.mxu0 0.0
        %2630 = vmatprep.subr.mxu0 0.0
        %2631 = vmatpush2.msra.mxu0 0.0
        %2632 = vmatprep.subr.mxu0 0.0
        %2633 = vmatpush2.msra.mxu0 0.0
        %2634 = vmatprep.subr.mxu0 0.0
        %2635 = vmatpush2.msra.mxu0 0.0
        %2636 = vmatprep.subr.mxu0 0.0
        %2637 = vmatpush2.msra.mxu0 0.0
        %2638 = vmatprep.subr.mxu0 0.0
        %2639 = vmatpush2.msra.mxu0 0.0
        %2640 = vmatprep.subr.mxu0 0.0
        %2641 = vmatpush2.msra.mxu0 0.0
        %2642 = vmatprep.subr.mxu0 0.0
        %2643 = vmatpush2.msra.mxu0 0.0
        %2644 = vmatprep.subr.mxu0 0.0
        %2645 = vmatpush2.msra.mxu0 0.0
        %2646 = vmatprep.subr.mxu0 0.0
        %2647 = vmatpush2.msra.mxu0 0.0
        %2648 = vmatprep.mubr.f32.mxu0 0.0
        %2649 = vmatmul.mubr.f32.gmra.mxu0 %v2582
        %v2650 = vpop.f32.mrf.mxu0
        %v2651 = vadd.f32 0.0, %v2650
        %v2652 = vpop.f32.mrf.mxu0
        %2653 = vdwg.mxu0
        %2654 = vrot.lane.b32.xlu0 %v464, 72
        %v2655 = vpop.permute.xlu0 %2654
        %v2656 = vsel %vm468, %v2655, 0
        %2658 = vmatprep.subr.mxu0 0.0
        %2659 = vmatpush1.msra.mxu0 0.0
        %2660 = vmatprep.subr.mxu0 0.0
        %2661 = vmatpush1.msra.mxu0 0.0
        %2662 = vmatprep.subr.mxu0 0.0
        %2663 = vmatpush1.msra.mxu0 0.0
        %2664 = vmatprep.subr.mxu0 0.0
        %2665 = vmatpush1.msra.mxu0 0.0
        %2666 = vmatprep.subr.mxu0 0.0
        %2667 = vmatpush1.msra.mxu0 0.0
        %2668 = vmatprep.subr.mxu0 0.0
        %2669 = vmatpush1.msra.mxu0 0.0
        %2670 = vmatprep.subr.mxu0 0.0
        %2671 = vmatpush1.msra.mxu0 0.0
        %2672 = vmatprep.subr.mxu0 0.0
        %2673 = vmatpush1.msra.mxu0 0.0
        %2674 = vmatprep.subr.mxu0 0.0
        %2675 = vmatpush1.msra.mxu0 0.0
        %2676 = vmatprep.subr.mxu0 0.0
        %2677 = vmatpush1.msra.mxu0 0.0
        %2678 = vmatprep.subr.mxu0 0.0
        %2679 = vmatpush1.msra.mxu0 0.0
        %2680 = vmatprep.subr.mxu0 0.0
        %2681 = vmatpush1.msra.mxu0 0.0
        %2682 = vmatprep.subr.mxu0 0.0
        %2683 = vmatpush1.msra.mxu0 0.0
        %2684 = vmatprep.subr.mxu0 0.0
        %2685 = vmatpush1.msra.mxu0 0.0
        %2686 = vmatprep.subr.mxu0 0.0
        %2687 = vmatpush1.msra.mxu0 0.0
        %2688 = vmatprep.subr.mxu0 0.0
        %2689 = vmatpush1.msra.mxu0 %v450
        %2690 = vmatprep.subr.mxu0 0.0
        %2691 = vmatpush2.msra.mxu0 0.0
        %2692 = vmatprep.subr.mxu0 0.0
        %2693 = vmatpush2.msra.mxu0 0.0
        %2694 = vmatprep.subr.mxu0 0.0
        %2695 = vmatpush2.msra.mxu0 0.0
        %2696 = vmatprep.subr.mxu0 0.0
        %2697 = vmatpush2.msra.mxu0 0.0
        %2698 = vmatprep.subr.mxu0 0.0
        %2699 = vmatpush2.msra.mxu0 0.0
        %2700 = vmatprep.subr.mxu0 0.0
        %2701 = vmatpush2.msra.mxu0 0.0
        %2702 = vmatprep.subr.mxu0 0.0
        %2703 = vmatpush2.msra.mxu0 0.0
        %2704 = vmatprep.subr.mxu0 0.0
        %2705 = vmatpush2.msra.mxu0 0.0
        %2706 = vmatprep.subr.mxu0 0.0
        %2707 = vmatpush2.msra.mxu0 0.0
        %2708 = vmatprep.subr.mxu0 0.0
        %2709 = vmatpush2.msra.mxu0 0.0
        %2710 = vmatprep.subr.mxu0 0.0
        %2711 = vmatpush2.msra.mxu0 0.0
        %2712 = vmatprep.subr.mxu0 0.0
        %2713 = vmatpush2.msra.mxu0 0.0
        %2714 = vmatprep.subr.mxu0 0.0
        %2715 = vmatpush2.msra.mxu0 0.0
        %2716 = vmatprep.subr.mxu0 0.0
        %2717 = vmatpush2.msra.mxu0 0.0
        %2718 = vmatprep.subr.mxu0 0.0
        %2719 = vmatpush2.msra.mxu0 0.0
        %2720 = vmatprep.subr.mxu0 0.0
        %2721 = vmatpush2.msra.mxu0 0.0
        %2722 = vmatprep.mubr.f32.mxu0 0.0
        %2723 = vmatmul.mubr.f32.gmra.mxu0 %v2656
        %v2724 = vpop.f32.mrf.mxu0
        %v2725 = vadd.f32 %v2651, %v2724
        %v2726 = vpop.f32.mrf.mxu0
        %2727 = vdwg.mxu0
        %2728 = vrot.lane.b32.xlu0 %v467, 72
        %v2729 = vpop.permute.xlu0 %2728
        %v2730 = vsel %vm468, %v2729, 0
        %2732 = vmatprep.subr.mxu0 0.0
        %2733 = vmatpush1.msra.mxu0 0.0
        %2734 = vmatprep.subr.mxu0 0.0
        %2735 = vmatpush1.msra.mxu0 0.0
        %2736 = vmatprep.subr.mxu0 0.0
        %2737 = vmatpush1.msra.mxu0 0.0
        %2738 = vmatprep.subr.mxu0 0.0
        %2739 = vmatpush1.msra.mxu0 0.0
        %2740 = vmatprep.subr.mxu0 0.0
        %2741 = vmatpush1.msra.mxu0 0.0
        %2742 = vmatprep.subr.mxu0 0.0
        %2743 = vmatpush1.msra.mxu0 0.0
        %2744 = vmatprep.subr.mxu0 0.0
        %2745 = vmatpush1.msra.mxu0 0.0
        %2746 = vmatprep.subr.mxu0 0.0
        %2747 = vmatpush1.msra.mxu0 0.0
        %2748 = vmatprep.subr.mxu0 0.0
        %2749 = vmatpush1.msra.mxu0 0.0
        %2750 = vmatprep.subr.mxu0 0.0
        %2751 = vmatpush1.msra.mxu0 0.0
        %2752 = vmatprep.subr.mxu0 0.0
        %2753 = vmatpush1.msra.mxu0 0.0
        %2754 = vmatprep.subr.mxu0 0.0
        %2755 = vmatpush1.msra.mxu0 0.0
        %2756 = vmatprep.subr.mxu0 0.0
        %2757 = vmatpush1.msra.mxu0 0.0
        %2758 = vmatprep.subr.mxu0 0.0
        %2759 = vmatpush1.msra.mxu0 0.0
        %2760 = vmatprep.subr.mxu0 0.0
        %2761 = vmatpush1.msra.mxu0 0.0
        %2762 = vmatprep.subr.mxu0 0.0
        %2763 = vmatpush1.msra.mxu0 %v451
        %2764 = vmatprep.subr.mxu0 0.0
        %2765 = vmatpush2.msra.mxu0 0.0
        %2766 = vmatprep.subr.mxu0 0.0
        %2767 = vmatpush2.msra.mxu0 0.0
        %2768 = vmatprep.subr.mxu0 0.0
        %2769 = vmatpush2.msra.mxu0 0.0
        %2770 = vmatprep.subr.mxu0 0.0
        %2771 = vmatpush2.msra.mxu0 0.0
        %2772 = vmatprep.subr.mxu0 0.0
        %2773 = vmatpush2.msra.mxu0 0.0
        %2774 = vmatprep.subr.mxu0 0.0
        %2775 = vmatpush2.msra.mxu0 0.0
        %2776 = vmatprep.subr.mxu0 0.0
        %2777 = vmatpush2.msra.mxu0 0.0
        %2778 = vmatprep.subr.mxu0 0.0
        %2779 = vmatpush2.msra.mxu0 0.0
        %2780 = vmatprep.subr.mxu0 0.0
        %2781 = vmatpush2.msra.mxu0 0.0
        %2782 = vmatprep.subr.mxu0 0.0
        %2783 = vmatpush2.msra.mxu0 0.0
        %2784 = vmatprep.subr.mxu0 0.0
        %2785 = vmatpush2.msra.mxu0 0.0
        %2786 = vmatprep.subr.mxu0 0.0
        %2787 = vmatpush2.msra.mxu0 0.0
        %2788 = vmatprep.subr.mxu0 0.0
        %2789 = vmatpush2.msra.mxu0 0.0
        %2790 = vmatprep.subr.mxu0 0.0
        %2791 = vmatpush2.msra.mxu0 0.0
        %2792 = vmatprep.subr.mxu0 0.0
        %2793 = vmatpush2.msra.mxu0 0.0
        %2794 = vmatprep.subr.mxu0 0.0
        %2795 = vmatpush2.msra.mxu0 0.0
        %2796 = vmatprep.mubr.f32.mxu0 0.0
        %2797 = vmatmul.mubr.f32.gmra.mxu0 %v2730
        %v2798 = vpop.f32.mrf.mxu0
        %v2799 = vadd.f32 0.0, %v2798
        %v2800 = vpop.f32.mrf.mxu0
        %2801 = vdwg.mxu0
        %2802 = vrot.lane.b32.xlu0 %v466, 72
        %v2803 = vpop.permute.xlu0 %2802
        %v2804 = vsel %vm468, %v2803, 0
        %2806 = vmatprep.subr.mxu0 0.0
        %2807 = vmatpush1.msra.mxu0 0.0
        %2808 = vmatprep.subr.mxu0 0.0
        %2809 = vmatpush1.msra.mxu0 0.0
        %2810 = vmatprep.subr.mxu0 0.0
        %2811 = vmatpush1.msra.mxu0 0.0
        %2812 = vmatprep.subr.mxu0 0.0
        %2813 = vmatpush1.msra.mxu0 0.0
        %2814 = vmatprep.subr.mxu0 0.0
        %2815 = vmatpush1.msra.mxu0 0.0
        %2816 = vmatprep.subr.mxu0 0.0
        %2817 = vmatpush1.msra.mxu0 0.0
        %2818 = vmatprep.subr.mxu0 0.0
        %2819 = vmatpush1.msra.mxu0 0.0
        %2820 = vmatprep.subr.mxu0 0.0
        %2821 = vmatpush1.msra.mxu0 0.0
        %2822 = vmatprep.subr.mxu0 0.0
        %2823 = vmatpush1.msra.mxu0 0.0
        %2824 = vmatprep.subr.mxu0 0.0
        %2825 = vmatpush1.msra.mxu0 0.0
        %2826 = vmatprep.subr.mxu0 0.0
        %2827 = vmatpush1.msra.mxu0 0.0
        %2828 = vmatprep.subr.mxu0 0.0
        %2829 = vmatpush1.msra.mxu0 0.0
        %2830 = vmatprep.subr.mxu0 0.0
        %2831 = vmatpush1.msra.mxu0 0.0
        %2832 = vmatprep.subr.mxu0 0.0
        %2833 = vmatpush1.msra.mxu0 0.0
        %2834 = vmatprep.subr.mxu0 0.0
        %2835 = vmatpush1.msra.mxu0 0.0
        %2836 = vmatprep.subr.mxu0 0.0
        %2837 = vmatpush1.msra.mxu0 %v450
        %2838 = vmatprep.subr.mxu0 0.0
        %2839 = vmatpush2.msra.mxu0 0.0
        %2840 = vmatprep.subr.mxu0 0.0
        %2841 = vmatpush2.msra.mxu0 0.0
        %2842 = vmatprep.subr.mxu0 0.0
        %2843 = vmatpush2.msra.mxu0 0.0
        %2844 = vmatprep.subr.mxu0 0.0
        %2845 = vmatpush2.msra.mxu0 0.0
        %2846 = vmatprep.subr.mxu0 0.0
        %2847 = vmatpush2.msra.mxu0 0.0
        %2848 = vmatprep.subr.mxu0 0.0
        %2849 = vmatpush2.msra.mxu0 0.0
        %2850 = vmatprep.subr.mxu0 0.0
        %2851 = vmatpush2.msra.mxu0 0.0
        %2852 = vmatprep.subr.mxu0 0.0
        %2853 = vmatpush2.msra.mxu0 0.0
        %2854 = vmatprep.subr.mxu0 0.0
        %2855 = vmatpush2.msra.mxu0 0.0
        %2856 = vmatprep.subr.mxu0 0.0
        %2857 = vmatpush2.msra.mxu0 0.0
        %2858 = vmatprep.subr.mxu0 0.0
        %2859 = vmatpush2.msra.mxu0 0.0
        %2860 = vmatprep.subr.mxu0 0.0
        %2861 = vmatpush2.msra.mxu0 0.0
        %2862 = vmatprep.subr.mxu0 0.0
        %2863 = vmatpush2.msra.mxu0 0.0
        %2864 = vmatprep.subr.mxu0 0.0
        %2865 = vmatpush2.msra.mxu0 0.0
        %2866 = vmatprep.subr.mxu0 0.0
        %2867 = vmatpush2.msra.mxu0 0.0
        %2868 = vmatprep.subr.mxu0 0.0
        %2869 = vmatpush2.msra.mxu0 0.0
        %2870 = vmatprep.mubr.f32.mxu0 0.0
        %2871 = vmatmul.mubr.f32.gmra.mxu0 %v2804
        %v2872 = vpop.f32.mrf.mxu0
        %v2873 = vadd.f32 %v2799, %v2872
        %v2874 = vpop.f32.mrf.mxu0
        %2875 = vdwg.mxu0
        %2877 = vrot.lane.b32.xlu0 %v1985, 16
        %v2878 = vpop.permute.xlu0 %2877
        %2881 = vrot.lane.b32.xlu0 %v2133, 32
        %v2882 = vpop.permute.xlu0 %2881
        %2885 = vrot.lane.b32.xlu0 %v2281, 48
        %v2886 = vpop.permute.xlu0 %2885
        %2889 = vrot.lane.b32.xlu0 %v2429, 64
        %v2890 = vpop.permute.xlu0 %2889
        %2893 = vrot.lane.b32.xlu0 %v2577, 80
        %v2894 = vpop.permute.xlu0 %2893
        %2897 = vrot.lane.b32.xlu0 %v2725, 96
        %v2898 = vpop.permute.xlu0 %2897
        %2901 = vrot.lane.b32.xlu0 %v2873, 112
        %v2902 = vpop.permute.xlu0 %2901
        %v2904 = vsel %vm1677, %v1837, %v2878
        %v2905 = vsel %vm1679, %v2904, %v2882
        %v2906 = vsel %vm1681, %v2905, %v2886
        %v2907 = vsel %vm1683, %v2906, %v2890
        %v2908 = vsel %vm1685, %v2907, %v2894
        %v2909 = vsel %vm1687, %v2908, %v2898
        %v2910 = vsel %vm1689, %v2909, %v2902
        %2911 = vst [vmem:[%s449 + $0x8] sm:$0xf] %v2910
        %v2912 = vld [vmem:[%s395] sm:$0xff]
        %v2914 = vcombine.low %v2912, %v2912
        %2916 = vst [vmem:[%s449] sm:$0xf0] %v2914
        %2917 = vst [vmem:[%s449 + $0x8] sm:$0xf0] %v2912
        %s2918 = sand.u32 %s211, 1
        %s2919 = scalar_lea.sflag [#allocation4], %s2918
        %s2920 = sand.u32 %s211, 1
        %s2921 = smul.addr %s2920, 16
        %s2922 = scalar_lea.vmem [#allocation13], %s2921
        // Predicated region
        $region73: #{tpu_custom_call.1} parent=47 // pred_check
          %p2923 = pneg %p221
        $region74: #{tpu_custom_call.1} parent=47 // pred_check_branch
          %2925 = sbr.rel (%p2923) target = $region76
        $region75: #{tpu_custom_call.1} parent=47 // pred_region
          %s2927 = ssub.s32 256, 256
          %2928 = vsyncadd %s2919, %s2927
          %s2929 = smul.addr %s31, 2
          %s2930 = smul.addr %s2929, 128
          %s2931 = scalar_lea.hbm %s7, %s2930
          %s2933 = sshll.u32 %s2922, 4
          %s2934 = int_to_ptr.vmem [resolvable:$true] %s2933
          %2936 = dma.vmem_to_hbm [thread:$0]  %s2934, 256, %s2931, %s2919
        $region76: #{tpu_custom_call.1} parent=47 // pred_fallthru
          _
      $region48: #{tpu_custom_call.1} parent=5 // pred_fallthru
        _
      %p2937 = scmp.le.s32.totalorder 2, %s26
      // Predicated region
      $region77: #{tpu_custom_call.1} parent=5 // pred_check
        %p2938 = pneg %p2937
      $region78: #{tpu_custom_call.1} parent=5 // pred_check_branch
        %2940 = sbr.rel (%p2938) target = $region80
      $region79: #{tpu_custom_call.1} parent=5 // pred_region
        %s2941 = ssub.s32 %s26, 2
        // Predicated region
        $region81: #{tpu_custom_call.1} parent=79 // pred_check
          %p2942 = pneg %p227
        $region82: #{tpu_custom_call.1} parent=79 // pred_check_branch
          %2944 = sbr.rel (%p2942) target = $region84
        $region83: #{tpu_custom_call.1} parent=79 // pred_region
          %s2945 = sand.u32 %s212, 1
          %s2946 = scalar_lea.sflag [#allocation4], %s2945
          %s2947 = sand.u32 %s212, 1
          %s2948 = smul.addr %s2947, 16
          %s2949 = scalar_lea.vmem [#allocation13], %s2948
          %2950 = dma.done %s2946, 256
        $region84: #{tpu_custom_call.1} parent=79 // pred_fallthru
          _
      $region80: #{tpu_custom_call.1} parent=5 // pred_fallthru
        _
    $region6: #{tpu_custom_call.1} parent=1 // loop_footer
      %s30 = sadd.s32 1, %s26
    $region7: #{tpu_custom_call.1} parent=1 // loop_footer_branch
      %25 = sbr.rel target = $region3
    $region8: #{tpu_custom_call.1} parent=1 // loop_exit
      _
    %2951 = vsyncpa [#allocation3], 1
    %s2952 = scalar_lea.sflag [#allocation3], 1
    %2953 = vsyncpa %s2952, 1
    %2954 = vsyncpa [#allocation6], 1
    %s2955 = scalar_lea.sflag [#allocation6], 1
    %2956 = vsyncpa %s2955, 1
    %2957 = vsyncpa [#allocation9], 1
    %s2958 = scalar_lea.sflag [#allocation9], 1
    %2959 = vsyncpa %s2958, 1
    %2960 = vsyncpa [#allocation12], 1
    %2961 = vsyncpa [#allocation4], 1
    %s2962 = scalar_lea.sflag [#allocation4], 1
    %2963 = vsyncpa %s2962, 1

</llo_original>
